<compile_context>
chip_gen: v7x
topology: tpu7x:2x2x1
jax: 0.10.0
libtpu: 0.0.40
codegen_flags: <defaults>
</compile_context>

<pallas_src>
import jax
import jax.numpy as jnp
from jax.experimental import pallas as pl
from jax.experimental.pallas import tpu as pltpu


# ------------------------------ fused kernel --------------------------------
def _vgg_fused_kernel(x_ref, cw1_ref, cb1_ref, cw2_ref, cb2_ref,
                      w1r_ref, b1_ref, a1_ref, w2_ref, b2_ref, a2_ref,
                      w3_ref, b3_ref, o_ref,
                      xp1, scr1, xp2, scr2):
    # All shapes below are static Python ints.
    _, H, W, Cin = x_ref.shape
    C1 = cw1_ref.shape[-1]
    C2 = cw2_ref.shape[-1]
    Wp = W + 2                    # padded row pitch, stage 1
    H2, W2 = H // 2, W // 2       # spatial dims after pool 1
    Wp2 = W2 + 2                  # padded row pitch, stage 2
    H4, W4 = H2 // 2, W2 // 2     # spatial dims after pool 2
    f32 = jnp.float32

    # ---------------- stage 1: conv3x3(Cin->C1) + bias + ReLU ---------------
    # SAME zero padding done directly in the VMEM slab (no HBM pad copy).
    xp1[...] = jnp.zeros(xp1.shape, xp1.dtype)
    for h in range(H):
        xp1[pl.ds((h + 1) * Wp + 1, W), :] = x_ref[0, h]           # (W, Cin)

    acc1 = jnp.zeros((H * Wp, C1), f32)
    for kh in range(3):
        for kw in range(3):
            slab = xp1[pl.ds(kh * Wp + kw, H * Wp), :]             # (H*Wp, Cin)
            acc1 = acc1 + jnp.dot(slab, cw1_ref[kh * 3 + kw],
                                  preferred_element_type=f32)
    scr1[...] = jnp.maximum(acc1 + cb1_ref[...], 0.0)              # fused ReLU

    # ---------------- 2x2 maxpool epilogue (VMEM-resident) ------------------
    # horizontal: even/odd w columns via stride-2 row reads; vertical:
    # contiguous row-block max.  Result lands straight in the padded stage-2
    # input slab, so the conv1 activation never hits HBM.
    xp2[...] = jnp.zeros(xp2.shape, xp2.dtype)
    half1 = Wp // 2
    hp1 = jnp.maximum(scr1[pl.ds(0, H * half1, 2), :],
                      scr1[pl.ds(1, H * half1, 2), :])             # rows h*half1+we
    for ho in range(H2):
        top = hp1[2 * ho * half1:2 * ho * half1 + W2, :]
        bot = hp1[(2 * ho + 1) * half1:(2 * ho + 1) * half1 + W2, :]
        xp2[pl.ds((ho + 1) * Wp2 + 1, W2), :] = jnp.maximum(top, bot)

    # ---------------- stage 2: conv3x3(C1->C2) + bias + ReLU ----------------
    acc2 = jnp.zeros((H2 * Wp2, C2), f32)
    for kh in range(3):
        for kw in range(3):
            slab = xp2[pl.ds(kh * Wp2 + kw, H2 * Wp2), :]          # (H2*Wp2, C1)
            acc2 = acc2 + jnp.dot(slab, cw2_ref[kh * 3 + kw],
                                  preferred_element_type=f32)
    scr2[...] = jnp.maximum(acc2 + cb2_ref[...], 0.0)

    # -------- 2x2 maxpool + NCHW-flatten folded into Linear #1 --------------
    # torch flatten index = c*(H4*W4) + ho*W4 + wo ; the wrapper pre-permutes
    # W1 rows into w1r[p, c, :] (p = ho*W4 + wo), so the contraction is done
    # blockwise over the H4*W4 pooled positions with no in-kernel reshape.
    half2 = Wp2 // 2
    hp2 = jnp.maximum(scr2[pl.ds(0, H2 * half2, 2), :],
                      scr2[pl.ds(1, H2 * half2, 2), :])            # rows h*half2+we
    h1 = b1_ref[...]                                               # (1, 512)
    for ho in range(H4):
        top = hp2[2 * ho * half2:2 * ho * half2 + W4, :]
        bot = hp2[(2 * ho + 1) * half2:(2 * ho + 1) * half2 + W4, :]
        pooled = jnp.maximum(top, bot)                             # (W4, C2)
        for wo in range(W4):
            p = ho * W4 + wo
            h1 = h1 + jnp.dot(pooled[wo:wo + 1, :], w1r_ref[p],
                              preferred_element_type=f32)

    # -------- classifier tail: PReLU -> Dropout(eval) -> Linear x2 ----------
    # PReLU(init=0): y = where(x >= 0, x, alpha * x); Dropout is identity in
    # eval mode.  Alphas are SMEM scalars.
    h1 = jnp.where(h1 >= 0.0, h1, a1_ref[0, 0] * h1)
    h2 = jnp.dot(h1, w2_ref[...], preferred_element_type=f32) + b2_ref[...]
    h2 = jnp.where(h2 >= 0.0, h2, a2_ref[0, 0] * h2)
    out = jnp.dot(h2, w3_ref[...], preferred_element_type=f32) + b3_ref[...]
    o_ref[0] = out


# ------------------------------ host wrapper --------------------------------
def _vgg_forward_impl(x_nchw, params):
    N, Cin, H, W = x_nchw.shape
    x = jnp.transpose(x_nchw, (0, 2, 3, 1))                        # NCHW -> NHWC glue

    cw1 = params["cw1"].reshape(9, Cin, params["cw1"].shape[-1])   # tap-major
    C1 = cw1.shape[-1]
    cw2 = params["cw2"].reshape(9, C1, params["cw2"].shape[-1])
    C2 = cw2.shape[-1]

    H2, W2 = H // 2, W // 2
    H4, W4 = H2 // 2, W2 // 2
    nsp = H4 * W4                                                  # pooled spatial positions
    hidden = params["w1"].shape[1]
    num_classes = params["w3"].shape[1]
    assert nsp * C2 == params["w1"].shape[0]

    # Fold torch's NCHW flatten order into W1: w1r[p, c, :] = W1.T[c*nsp + p, :]
    w1r = params["w1"].reshape(C2, nsp, hidden).transpose(1, 0, 2)

    Wp, Wp2 = W + 2, W2 + 2
    pad1_rows = (H + 2) * Wp + 2      # +2: last tap's slab slice over-reach (zeros)
    pad2_rows = (H2 + 2) * Wp2 + 2

    out = pl.pallas_call(
        _vgg_fused_kernel,
        out_shape=jax.ShapeDtypeStruct((N, 1, num_classes), jnp.float32),
        grid=(N,),
        in_specs=[
            pl.BlockSpec((1, H, W, Cin), lambda n: (n, 0, 0, 0)),          # x
            pl.BlockSpec((9, Cin, C1), lambda n: (0, 0, 0)),               # conv1 w
            pl.BlockSpec((1, C1), lambda n: (0, 0)),                       # conv1 b
            pl.BlockSpec((9, C1, C2), lambda n: (0, 0, 0)),                # conv2 w
            pl.BlockSpec((1, C2), lambda n: (0, 0)),                       # conv2 b
            pl.BlockSpec((nsp, C2, hidden), lambda n: (0, 0, 0)),          # W1 (permuted)
            pl.BlockSpec((1, hidden), lambda n: (0, 0)),                   # b1
            pl.BlockSpec(memory_space=pltpu.MemorySpace.SMEM),             # PReLU a1
            pl.BlockSpec((hidden, hidden), lambda n: (0, 0)),              # W2
            pl.BlockSpec((1, hidden), lambda n: (0, 0)),                   # b2
            pl.BlockSpec(memory_space=pltpu.MemorySpace.SMEM),             # PReLU a2
            pl.BlockSpec((hidden, num_classes), lambda n: (0, 0)),         # W3
            pl.BlockSpec((1, num_classes), lambda n: (0, 0)),              # b3
        ],
        out_specs=pl.BlockSpec((1, 1, num_classes), lambda n: (n, 0, 0)),
        scratch_shapes=[
            pltpu.VMEM((pad1_rows, Cin), jnp.float32),    # padded stage-1 input slab
            pltpu.VMEM((H * Wp, C1), jnp.float32),        # conv1 output (pre-pool)
            pltpu.VMEM((pad2_rows, C1), jnp.float32),     # padded stage-2 input slab
            pltpu.VMEM((H2 * Wp2, C2), jnp.float32),      # conv2 output (pre-pool)
        ],
        compiler_params=pltpu.CompilerParams(
            dimension_semantics=("parallel",),            # batch shards across TCs
            vmem_limit_bytes=32 * 1024 * 1024),
    )(x, cw1, params["cb1"], cw2, params["cb2"],
      w1r, params["b1"], params["a1"], params["w2"], params["b2"], params["a2"],
      params["w3"], params["b3"])
    return out.reshape(N, num_classes)


vgg_forward = jax.jit(_vgg_forward_impl)


# ------------------------------ parameter init ------------------------------
def init_params(key, in_channels=4, num_classes=10):
    ks = jax.random.split(key, 5)

    def kaiming_conv(k, kh, kw, cin, cout):
        # kaiming_normal_(mode='fan_out', nonlinearity='relu'): std = sqrt(2/fan_out)
        fan_out = kh * kw * cout
        std = (2.0 / fan_out) ** 0.5
        return std * jax.random.normal(k, (kh, kw, cin, cout), jnp.float32)

    return {
        # synthetic `features`: conv(Cin->64)+ReLU+pool, conv(64->128)+ReLU+pool
        "cw1": kaiming_conv(ks[0], 3, 3, in_channels, 64),
        "cb1": jnp.zeros((1, 64), jnp.float32),
        "cw2": kaiming_conv(ks[1], 3, 3, 64, 128),
        "cb2": jnp.zeros((1, 128), jnp.float32),
        # classifier: Linear weights stored transposed as (in, out) == torch W.T
        "w1": 0.01 * jax.random.normal(ks[2], (512, 512), jnp.float32),
        "b1": jnp.zeros((1, 512), jnp.float32),
        "a1": jnp.zeros((1, 1), jnp.float32),   # PReLU(init=0) slope
        "w2": 0.01 * jax.random.normal(ks[3], (512, 512), jnp.float32),
        "b2": jnp.zeros((1, 512), jnp.float32),
        "a2": jnp.zeros((1, 1), jnp.float32),   # PReLU(init=0) slope
        "w3": 0.01 * jax.random.normal(ks[4], (512, num_classes), jnp.float32),
        "b3": jnp.zeros((1, num_classes), jnp.float32),
    }


# ----------------------------------- main ------------------------------------
if __name__ == "__main__":
    key = jax.random.PRNGKey(0)
    pk, xk = jax.random.split(key)
    params = init_params(pk, in_channels=4, num_classes=10)
    x = jax.random.normal(xk, (2, 4, 8, 8), jnp.float32)     # NCHW input (small)
    out = vgg_forward(x, params)
    jax.block_until_ready(out)
    assert out.shape == (2, 10)
    assert out.dtype == jnp.float32
    print("KERNEL_OK")
</pallas_src>

<mosaic_0001>
module attributes {stable_mosaic.version = 11 : i64} {
  func.func @_vgg_fused_kernel(%arg0: i32, %arg1: memref<1x8x8x4xf32, #tpu.memory_space<vmem>>, %arg2: memref<9x4x64xf32, #tpu.memory_space<vmem>>, %arg3: memref<1x64xf32, #tpu.memory_space<vmem>>, %arg4: memref<9x64x128xf32, #tpu.memory_space<vmem>>, %arg5: memref<1x128xf32, #tpu.memory_space<vmem>>, %arg6: memref<4x128x512xf32, #tpu.memory_space<vmem>>, %arg7: memref<1x512xf32, #tpu.memory_space<vmem>>, %arg8: memref<1x1xf32, #tpu.memory_space<smem>>, %arg9: memref<512x512xf32, #tpu.memory_space<vmem>>, %arg10: memref<1x512xf32, #tpu.memory_space<vmem>>, %arg11: memref<1x1xf32, #tpu.memory_space<smem>>, %arg12: memref<512x10xf32, #tpu.memory_space<vmem>>, %arg13: memref<1x10xf32, #tpu.memory_space<vmem>>, %arg14: memref<1x1x10xf32, #tpu.memory_space<vmem>>, %arg15: memref<102x4xf32, #tpu.memory_space<vmem>>, %arg16: memref<80x64xf32, #tpu.memory_space<vmem>>, %arg17: memref<38x64xf32, #tpu.memory_space<vmem>>, %arg18: memref<24x128xf32, #tpu.memory_space<vmem>>) attributes {dimension_semantics = [#tpu.dimension_semantics<parallel>], iteration_bounds = array<i64: 2>, scalar_prefetch = 0 : i64, scratch_operands = 4 : i64, tpu.core_type = #tpu.core_type<tc>, window_params = [{transform_indices = @transform_0, window_bounds = array<i64: 1, 8, 8, 4>}, {pipeline_mode = #tpu.pipeline_mode<synchronous>, transform_indices = @transform_1, window_bounds = array<i64: 9, 4, 64>}, {pipeline_mode = #tpu.pipeline_mode<synchronous>, transform_indices = @transform_2, window_bounds = array<i64: 1, 64>}, {pipeline_mode = #tpu.pipeline_mode<synchronous>, transform_indices = @transform_3, window_bounds = array<i64: 9, 64, 128>}, {pipeline_mode = #tpu.pipeline_mode<synchronous>, transform_indices = @transform_4, window_bounds = array<i64: 1, 128>}, {pipeline_mode = #tpu.pipeline_mode<synchronous>, transform_indices = @transform_5, window_bounds = array<i64: 4, 128, 512>}, {pipeline_mode = #tpu.pipeline_mode<synchronous>, transform_indices = @transform_6, window_bounds = array<i64: 1, 512>}, {transform_indices = @transform_7, window_bounds = array<i64: 1, 1>}, {pipeline_mode = #tpu.pipeline_mode<synchronous>, transform_indices = @transform_8, window_bounds = array<i64: 512, 512>}, {pipeline_mode = #tpu.pipeline_mode<synchronous>, transform_indices = @transform_9, window_bounds = array<i64: 1, 512>}, {transform_indices = @transform_10, window_bounds = array<i64: 1, 1>}, {pipeline_mode = #tpu.pipeline_mode<synchronous>, transform_indices = @transform_11, window_bounds = array<i64: 512, 10>}, {pipeline_mode = #tpu.pipeline_mode<synchronous>, transform_indices = @transform_12, window_bounds = array<i64: 1, 10>}, {transform_indices = @transform_13, window_bounds = array<i64: 1, 1, 10>}]} {
    %cst = arith.constant 0.000000e+00 : f32
    %0 = vector.broadcast %cst : f32 to vector<102x4xf32>
    %c0 = arith.constant 0 : index
    %c0_0 = arith.constant 0 : index
    %1 = vector.load %arg15[%c0, %c0_0] : memref<102x4xf32, #tpu.memory_space<vmem>>, vector<102x4xf32>
    tpu.vector_store %arg15[%c0, %c0_0], %0 {strides = array<i32>} : memref<102x4xf32, #tpu.memory_space<vmem>>, vector<102x4xf32>,
    %c0_1 = arith.constant 0 : index
    %c0_2 = arith.constant 0 : index
    %c0_3 = arith.constant 0 : index
    %c0_4 = arith.constant 0 : index
    %2 = vector.load %arg1[%c0_1, %c0_2, %c0_3, %c0_4] : memref<1x8x8x4xf32, #tpu.memory_space<vmem>>, vector<1x1x8x4xf32>
    %3 = vector.shape_cast %2 : vector<1x1x8x4xf32> to vector<8x4xf32>
    %c11 = arith.constant 11 : index
    %c0_5 = arith.constant 0 : index
    %4 = vector.load %arg15[%c11, %c0_5] : memref<102x4xf32, #tpu.memory_space<vmem>>, vector<8x4xf32>
    tpu.vector_store %arg15[%c11, %c0_5], %3 {strides = array<i32>} : memref<102x4xf32, #tpu.memory_space<vmem>>, vector<8x4xf32>,
    %c0_6 = arith.constant 0 : index
    %c1 = arith.constant 1 : index
    %c0_7 = arith.constant 0 : index
    %c0_8 = arith.constant 0 : index
    %5 = vector.load %arg1[%c0_6, %c1, %c0_7, %c0_8] : memref<1x8x8x4xf32, #tpu.memory_space<vmem>>, vector<1x1x8x4xf32>
    %6 = vector.shape_cast %5 : vector<1x1x8x4xf32> to vector<8x4xf32>
    %c21 = arith.constant 21 : index
    %c0_9 = arith.constant 0 : index
    %7 = vector.load %arg15[%c21, %c0_9] : memref<102x4xf32, #tpu.memory_space<vmem>>, vector<8x4xf32>
    tpu.vector_store %arg15[%c21, %c0_9], %6 {strides = array<i32>} : memref<102x4xf32, #tpu.memory_space<vmem>>, vector<8x4xf32>,
    %c0_10 = arith.constant 0 : index
    %c2 = arith.constant 2 : index
    %c0_11 = arith.constant 0 : index
    %c0_12 = arith.constant 0 : index
    %8 = vector.load %arg1[%c0_10, %c2, %c0_11, %c0_12] : memref<1x8x8x4xf32, #tpu.memory_space<vmem>>, vector<1x1x8x4xf32>
    %9 = vector.shape_cast %8 : vector<1x1x8x4xf32> to vector<8x4xf32>
    %c31 = arith.constant 31 : index
    %c0_13 = arith.constant 0 : index
    %10 = vector.load %arg15[%c31, %c0_13] : memref<102x4xf32, #tpu.memory_space<vmem>>, vector<8x4xf32>
    tpu.vector_store %arg15[%c31, %c0_13], %9 {strides = array<i32>} : memref<102x4xf32, #tpu.memory_space<vmem>>, vector<8x4xf32>,
    %c0_14 = arith.constant 0 : index
    %c3 = arith.constant 3 : index
    %c0_15 = arith.constant 0 : index
    %c0_16 = arith.constant 0 : index
    %11 = vector.load %arg1[%c0_14, %c3, %c0_15, %c0_16] : memref<1x8x8x4xf32, #tpu.memory_space<vmem>>, vector<1x1x8x4xf32>
    %12 = vector.shape_cast %11 : vector<1x1x8x4xf32> to vector<8x4xf32>
    %c41 = arith.constant 41 : index
    %c0_17 = arith.constant 0 : index
    %13 = vector.load %arg15[%c41, %c0_17] : memref<102x4xf32, #tpu.memory_space<vmem>>, vector<8x4xf32>
    tpu.vector_store %arg15[%c41, %c0_17], %12 {strides = array<i32>} : memref<102x4xf32, #tpu.memory_space<vmem>>, vector<8x4xf32>,
    %c0_18 = arith.constant 0 : index
    %c4 = arith.constant 4 : index
    %c0_19 = arith.constant 0 : index
    %c0_20 = arith.constant 0 : index
    %14 = vector.load %arg1[%c0_18, %c4, %c0_19, %c0_20] : memref<1x8x8x4xf32, #tpu.memory_space<vmem>>, vector<1x1x8x4xf32>
    %15 = vector.shape_cast %14 : vector<1x1x8x4xf32> to vector<8x4xf32>
    %c51 = arith.constant 51 : index
    %c0_21 = arith.constant 0 : index
    %16 = vector.load %arg15[%c51, %c0_21] : memref<102x4xf32, #tpu.memory_space<vmem>>, vector<8x4xf32>
    tpu.vector_store %arg15[%c51, %c0_21], %15 {strides = array<i32>} : memref<102x4xf32, #tpu.memory_space<vmem>>, vector<8x4xf32>,
    %c0_22 = arith.constant 0 : index
    %c5 = arith.constant 5 : index
    %c0_23 = arith.constant 0 : index
    %c0_24 = arith.constant 0 : index
    %17 = vector.load %arg1[%c0_22, %c5, %c0_23, %c0_24] : memref<1x8x8x4xf32, #tpu.memory_space<vmem>>, vector<1x1x8x4xf32>
    %18 = vector.shape_cast %17 : vector<1x1x8x4xf32> to vector<8x4xf32>
    %c61 = arith.constant 61 : index
    %c0_25 = arith.constant 0 : index
    %19 = vector.load %arg15[%c61, %c0_25] : memref<102x4xf32, #tpu.memory_space<vmem>>, vector<8x4xf32>
    tpu.vector_store %arg15[%c61, %c0_25], %18 {strides = array<i32>} : memref<102x4xf32, #tpu.memory_space<vmem>>, vector<8x4xf32>,
    %c0_26 = arith.constant 0 : index
    %c6 = arith.constant 6 : index
    %c0_27 = arith.constant 0 : index
    %c0_28 = arith.constant 0 : index
    %20 = vector.load %arg1[%c0_26, %c6, %c0_27, %c0_28] : memref<1x8x8x4xf32, #tpu.memory_space<vmem>>, vector<1x1x8x4xf32>
    %21 = vector.shape_cast %20 : vector<1x1x8x4xf32> to vector<8x4xf32>
    %c71 = arith.constant 71 : index
    %c0_29 = arith.constant 0 : index
    %22 = vector.load %arg15[%c71, %c0_29] : memref<102x4xf32, #tpu.memory_space<vmem>>, vector<8x4xf32>
    tpu.vector_store %arg15[%c71, %c0_29], %21 {strides = array<i32>} : memref<102x4xf32, #tpu.memory_space<vmem>>, vector<8x4xf32>,
    %c0_30 = arith.constant 0 : index
    %c7 = arith.constant 7 : index
    %c0_31 = arith.constant 0 : index
    %c0_32 = arith.constant 0 : index
    %23 = vector.load %arg1[%c0_30, %c7, %c0_31, %c0_32] : memref<1x8x8x4xf32, #tpu.memory_space<vmem>>, vector<1x1x8x4xf32>
    %24 = vector.shape_cast %23 : vector<1x1x8x4xf32> to vector<8x4xf32>
    %c81 = arith.constant 81 : index
    %c0_33 = arith.constant 0 : index
    %25 = vector.load %arg15[%c81, %c0_33] : memref<102x4xf32, #tpu.memory_space<vmem>>, vector<8x4xf32>
    tpu.vector_store %arg15[%c81, %c0_33], %24 {strides = array<i32>} : memref<102x4xf32, #tpu.memory_space<vmem>>, vector<8x4xf32>,
    %cst_34 = arith.constant 0.000000e+00 : f32
    %26 = vector.broadcast %cst_34 : f32 to vector<80x64xf32>
    %c0_35 = arith.constant 0 : index
    %c0_36 = arith.constant 0 : index
    %27 = vector.load %arg15[%c0_35, %c0_36] : memref<102x4xf32, #tpu.memory_space<vmem>>, vector<80x4xf32>
    %c0_37 = arith.constant 0 : index
    %c0_38 = arith.constant 0 : index
    %c0_39 = arith.constant 0 : index
    %28 = vector.load %arg2[%c0_37, %c0_38, %c0_39] : memref<9x4x64xf32, #tpu.memory_space<vmem>>, vector<1x4x64xf32>
    %29 = vector.shape_cast %28 : vector<1x4x64xf32> to vector<4x64xf32>
    %cst_40 = arith.constant dense<0.000000e+00> : vector<80x64xf32>
    %30 = tpu.matmul %27, %29, %cst_40 {dimension_numbers = #tpu.dot_dimension_numbers<[1], [0], [0], [1], [0, 0, 1, 1], [], []>} : vector<80x4xf32>, vector<4x64xf32>, vector<80x64xf32> -> vector<80x64xf32>
    %31 = arith.addf %26, %30 : vector<80x64xf32>
    %c1_41 = arith.constant 1 : index
    %c0_42 = arith.constant 0 : index
    %32 = vector.load %arg15[%c1_41, %c0_42] : memref<102x4xf32, #tpu.memory_space<vmem>>, vector<80x4xf32>
    %c1_43 = arith.constant 1 : index
    %c0_44 = arith.constant 0 : index
    %c0_45 = arith.constant 0 : index
    %33 = vector.load %arg2[%c1_43, %c0_44, %c0_45] : memref<9x4x64xf32, #tpu.memory_space<vmem>>, vector<1x4x64xf32>
    %34 = vector.shape_cast %33 : vector<1x4x64xf32> to vector<4x64xf32>
    %cst_46 = arith.constant dense<0.000000e+00> : vector<80x64xf32>
    %35 = tpu.matmul %32, %34, %cst_46 {dimension_numbers = #tpu.dot_dimension_numbers<[1], [0], [0], [1], [0, 0, 1, 1], [], []>} : vector<80x4xf32>, vector<4x64xf32>, vector<80x64xf32> -> vector<80x64xf32>
    %36 = arith.addf %31, %35 : vector<80x64xf32>
    %c2_47 = arith.constant 2 : index
    %c0_48 = arith.constant 0 : index
    %37 = vector.load %arg15[%c2_47, %c0_48] : memref<102x4xf32, #tpu.memory_space<vmem>>, vector<80x4xf32>
    %c2_49 = arith.constant 2 : index
    %c0_50 = arith.constant 0 : index
    %c0_51 = arith.constant 0 : index
    %38 = vector.load %arg2[%c2_49, %c0_50, %c0_51] : memref<9x4x64xf32, #tpu.memory_space<vmem>>, vector<1x4x64xf32>
    %39 = vector.shape_cast %38 : vector<1x4x64xf32> to vector<4x64xf32>
    %cst_52 = arith.constant dense<0.000000e+00> : vector<80x64xf32>
    %40 = tpu.matmul %37, %39, %cst_52 {dimension_numbers = #tpu.dot_dimension_numbers<[1], [0], [0], [1], [0, 0, 1, 1], [], []>} : vector<80x4xf32>, vector<4x64xf32>, vector<80x64xf32> -> vector<80x64xf32>
    %41 = arith.addf %36, %40 : vector<80x64xf32>
    %c10 = arith.constant 10 : index
    %c0_53 = arith.constant 0 : index
    %42 = vector.load %arg15[%c10, %c0_53] : memref<102x4xf32, #tpu.memory_space<vmem>>, vector<80x4xf32>
    %c3_54 = arith.constant 3 : index
    %c0_55 = arith.constant 0 : index
    %c0_56 = arith.constant 0 : index
    %43 = vector.load %arg2[%c3_54, %c0_55, %c0_56] : memref<9x4x64xf32, #tpu.memory_space<vmem>>, vector<1x4x64xf32>
    %44 = vector.shape_cast %43 : vector<1x4x64xf32> to vector<4x64xf32>
    %cst_57 = arith.constant dense<0.000000e+00> : vector<80x64xf32>
    %45 = tpu.matmul %42, %44, %cst_57 {dimension_numbers = #tpu.dot_dimension_numbers<[1], [0], [0], [1], [0, 0, 1, 1], [], []>} : vector<80x4xf32>, vector<4x64xf32>, vector<80x64xf32> -> vector<80x64xf32>
    %46 = arith.addf %41, %45 : vector<80x64xf32>
    %c11_58 = arith.constant 11 : index
    %c0_59 = arith.constant 0 : index
    %47 = vector.load %arg15[%c11_58, %c0_59] : memref<102x4xf32, #tpu.memory_space<vmem>>, vector<80x4xf32>
    %c4_60 = arith.constant 4 : index
    %c0_61 = arith.constant 0 : index
    %c0_62 = arith.constant 0 : index
    %48 = vector.load %arg2[%c4_60, %c0_61, %c0_62] : memref<9x4x64xf32, #tpu.memory_space<vmem>>, vector<1x4x64xf32>
    %49 = vector.shape_cast %48 : vector<1x4x64xf32> to vector<4x64xf32>
    %cst_63 = arith.constant dense<0.000000e+00> : vector<80x64xf32>
    %50 = tpu.matmul %47, %49, %cst_63 {dimension_numbers = #tpu.dot_dimension_numbers<[1], [0], [0], [1], [0, 0, 1, 1], [], []>} : vector<80x4xf32>, vector<4x64xf32>, vector<80x64xf32> -> vector<80x64xf32>
    %51 = arith.addf %46, %50 : vector<80x64xf32>
    %c12 = arith.constant 12 : index
    %c0_64 = arith.constant 0 : index
    %52 = vector.load %arg15[%c12, %c0_64] : memref<102x4xf32, #tpu.memory_space<vmem>>, vector<80x4xf32>
    %c5_65 = arith.constant 5 : index
    %c0_66 = arith.constant 0 : index
    %c0_67 = arith.constant 0 : index
    %53 = vector.load %arg2[%c5_65, %c0_66, %c0_67] : memref<9x4x64xf32, #tpu.memory_space<vmem>>, vector<1x4x64xf32>
    %54 = vector.shape_cast %53 : vector<1x4x64xf32> to vector<4x64xf32>
    %cst_68 = arith.constant dense<0.000000e+00> : vector<80x64xf32>
    %55 = tpu.matmul %52, %54, %cst_68 {dimension_numbers = #tpu.dot_dimension_numbers<[1], [0], [0], [1], [0, 0, 1, 1], [], []>} : vector<80x4xf32>, vector<4x64xf32>, vector<80x64xf32> -> vector<80x64xf32>
    %56 = arith.addf %51, %55 : vector<80x64xf32>
    %c20 = arith.constant 20 : index
    %c0_69 = arith.constant 0 : index
    %57 = vector.load %arg15[%c20, %c0_69] : memref<102x4xf32, #tpu.memory_space<vmem>>, vector<80x4xf32>
    %c6_70 = arith.constant 6 : index
    %c0_71 = arith.constant 0 : index
    %c0_72 = arith.constant 0 : index
    %58 = vector.load %arg2[%c6_70, %c0_71, %c0_72] : memref<9x4x64xf32, #tpu.memory_space<vmem>>, vector<1x4x64xf32>
    %59 = vector.shape_cast %58 : vector<1x4x64xf32> to vector<4x64xf32>
    %cst_73 = arith.constant dense<0.000000e+00> : vector<80x64xf32>
    %60 = tpu.matmul %57, %59, %cst_73 {dimension_numbers = #tpu.dot_dimension_numbers<[1], [0], [0], [1], [0, 0, 1, 1], [], []>} : vector<80x4xf32>, vector<4x64xf32>, vector<80x64xf32> -> vector<80x64xf32>
    %61 = arith.addf %56, %60 : vector<80x64xf32>
    %c21_74 = arith.constant 21 : index
    %c0_75 = arith.constant 0 : index
    %62 = vector.load %arg15[%c21_74, %c0_75] : memref<102x4xf32, #tpu.memory_space<vmem>>, vector<80x4xf32>
    %c7_76 = arith.constant 7 : index
    %c0_77 = arith.constant 0 : index
    %c0_78 = arith.constant 0 : index
    %63 = vector.load %arg2[%c7_76, %c0_77, %c0_78] : memref<9x4x64xf32, #tpu.memory_space<vmem>>, vector<1x4x64xf32>
    %64 = vector.shape_cast %63 : vector<1x4x64xf32> to vector<4x64xf32>
    %cst_79 = arith.constant dense<0.000000e+00> : vector<80x64xf32>
    %65 = tpu.matmul %62, %64, %cst_79 {dimension_numbers = #tpu.dot_dimension_numbers<[1], [0], [0], [1], [0, 0, 1, 1], [], []>} : vector<80x4xf32>, vector<4x64xf32>, vector<80x64xf32> -> vector<80x64xf32>
    %66 = arith.addf %61, %65 : vector<80x64xf32>
    %c22 = arith.constant 22 : index
    %c0_80 = arith.constant 0 : index
    %67 = vector.load %arg15[%c22, %c0_80] : memref<102x4xf32, #tpu.memory_space<vmem>>, vector<80x4xf32>
    %c8 = arith.constant 8 : index
    %c0_81 = arith.constant 0 : index
    %c0_82 = arith.constant 0 : index
    %68 = vector.load %arg2[%c8, %c0_81, %c0_82] : memref<9x4x64xf32, #tpu.memory_space<vmem>>, vector<1x4x64xf32>
    %69 = vector.shape_cast %68 : vector<1x4x64xf32> to vector<4x64xf32>
    %cst_83 = arith.constant dense<0.000000e+00> : vector<80x64xf32>
    %70 = tpu.matmul %67, %69, %cst_83 {dimension_numbers = #tpu.dot_dimension_numbers<[1], [0], [0], [1], [0, 0, 1, 1], [], []>} : vector<80x4xf32>, vector<4x64xf32>, vector<80x64xf32> -> vector<80x64xf32>
    %71 = arith.addf %66, %70 : vector<80x64xf32>
    %c0_84 = arith.constant 0 : index
    %c0_85 = arith.constant 0 : index
    %72 = vector.load %arg3[%c0_84, %c0_85] : memref<1x64xf32, #tpu.memory_space<vmem>>, vector<1x64xf32>
    %73 = vector.broadcast %72 : vector<1x64xf32> to vector<80x64xf32>
    %74 = arith.addf %71, %73 : vector<80x64xf32>
    %cst_86 = arith.constant 0.000000e+00 : f32
    %75 = vector.broadcast %cst_86 : f32 to vector<80x64xf32>
    %76 = arith.maximumf %74, %75 : vector<80x64xf32>
    %c0_87 = arith.constant 0 : index
    %c0_88 = arith.constant 0 : index
    %77 = vector.load %arg16[%c0_87, %c0_88] : memref<80x64xf32, #tpu.memory_space<vmem>>, vector<80x64xf32>
    tpu.vector_store %arg16[%c0_87, %c0_88], %76 {strides = array<i32>} : memref<80x64xf32, #tpu.memory_space<vmem>>, vector<80x64xf32>,
    %cst_89 = arith.constant 0.000000e+00 : f32
    %78 = vector.broadcast %cst_89 : f32 to vector<38x64xf32>
    %c0_90 = arith.constant 0 : index
    %c0_91 = arith.constant 0 : index
    %79 = vector.load %arg17[%c0_90, %c0_91] : memref<38x64xf32, #tpu.memory_space<vmem>>, vector<38x64xf32>
    tpu.vector_store %arg17[%c0_90, %c0_91], %78 {strides = array<i32>} : memref<38x64xf32, #tpu.memory_space<vmem>>, vector<38x64xf32>,
    %c0_92 = arith.constant 0 : index
    %c0_93 = arith.constant 0 : index
    %80 = tpu.strided_load %arg16[%c0_92, %c0_93] {strides = array<i32: 2, 1>} : memref<80x64xf32, #tpu.memory_space<vmem>>, vector<40x64xf32>
    %c1_94 = arith.constant 1 : index
    %c0_95 = arith.constant 0 : index
    %81 = tpu.strided_load %arg16[%c1_94, %c0_95] {strides = array<i32: 2, 1>} : memref<80x64xf32, #tpu.memory_space<vmem>>, vector<40x64xf32>
    %82 = arith.maximumf %80, %81 : vector<40x64xf32>
    %83 = vector.extract_strided_slice %82 {offsets = [0, 0], sizes = [4, 64], strides = [1, 1]} : vector<40x64xf32> to vector<4x64xf32>
    %84 = vector.extract_strided_slice %82 {offsets = [5, 0], sizes = [4, 64], strides = [1, 1]} : vector<40x64xf32> to vector<4x64xf32>
    %85 = arith.maximumf %83, %84 : vector<4x64xf32>
    %c7_96 = arith.constant 7 : index
    %c0_97 = arith.constant 0 : index
    %86 = vector.load %arg17[%c7_96, %c0_97] : memref<38x64xf32, #tpu.memory_space<vmem>>, vector<4x64xf32>
    tpu.vector_store %arg17[%c7_96, %c0_97], %85 {strides = array<i32>} : memref<38x64xf32, #tpu.memory_space<vmem>>, vector<4x64xf32>,
    %87 = vector.extract_strided_slice %82 {offsets = [10, 0], sizes = [4, 64], strides = [1, 1]} : vector<40x64xf32> to vector<4x64xf32>
    %88 = vector.extract_strided_slice %82 {offsets = [15, 0], sizes = [4, 64], strides = [1, 1]} : vector<40x64xf32> to vector<4x64xf32>
    %89 = arith.maximumf %87, %88 : vector<4x64xf32>
    %c13 = arith.constant 13 : index
    %c0_98 = arith.constant 0 : index
    %90 = vector.load %arg17[%c13, %c0_98] : memref<38x64xf32, #tpu.memory_space<vmem>>, vector<4x64xf32>
    tpu.vector_store %arg17[%c13, %c0_98], %89 {strides = array<i32>} : memref<38x64xf32, #tpu.memory_space<vmem>>, vector<4x64xf32>,
    %91 = vector.extract_strided_slice %82 {offsets = [20, 0], sizes = [4, 64], strides = [1, 1]} : vector<40x64xf32> to vector<4x64xf32>
    %92 = vector.extract_strided_slice %82 {offsets = [25, 0], sizes = [4, 64], strides = [1, 1]} : vector<40x64xf32> to vector<4x64xf32>
    %93 = arith.maximumf %91, %92 : vector<4x64xf32>
    %c19 = arith.constant 19 : index
    %c0_99 = arith.constant 0 : index
    %94 = vector.load %arg17[%c19, %c0_99] : memref<38x64xf32, #tpu.memory_space<vmem>>, vector<4x64xf32>
    tpu.vector_store %arg17[%c19, %c0_99], %93 {strides = array<i32>} : memref<38x64xf32, #tpu.memory_space<vmem>>, vector<4x64xf32>,
    %95 = vector.extract_strided_slice %82 {offsets = [30, 0], sizes = [4, 64], strides = [1, 1]} : vector<40x64xf32> to vector<4x64xf32>
    %96 = vector.extract_strided_slice %82 {offsets = [35, 0], sizes = [4, 64], strides = [1, 1]} : vector<40x64xf32> to vector<4x64xf32>
    %97 = arith.maximumf %95, %96 : vector<4x64xf32>
    %c25 = arith.constant 25 : index
    %c0_100 = arith.constant 0 : index
    %98 = vector.load %arg17[%c25, %c0_100] : memref<38x64xf32, #tpu.memory_space<vmem>>, vector<4x64xf32>
    tpu.vector_store %arg17[%c25, %c0_100], %97 {strides = array<i32>} : memref<38x64xf32, #tpu.memory_space<vmem>>, vector<4x64xf32>,
    %cst_101 = arith.constant 0.000000e+00 : f32
    %99 = vector.broadcast %cst_101 : f32 to vector<24x128xf32>
    %c0_102 = arith.constant 0 : index
    %c0_103 = arith.constant 0 : index
    %100 = vector.load %arg17[%c0_102, %c0_103] : memref<38x64xf32, #tpu.memory_space<vmem>>, vector<24x64xf32>
    %c0_104 = arith.constant 0 : index
    %c0_105 = arith.constant 0 : index
    %c0_106 = arith.constant 0 : index
    %101 = vector.load %arg4[%c0_104, %c0_105, %c0_106] : memref<9x64x128xf32, #tpu.memory_space<vmem>>, vector<1x64x128xf32>
    %102 = vector.shape_cast %101 : vector<1x64x128xf32> to vector<64x128xf32>
    %cst_107 = arith.constant dense<0.000000e+00> : vector<24x128xf32>
    %103 = tpu.matmul %100, %102, %cst_107 {dimension_numbers = #tpu.dot_dimension_numbers<[1], [0], [0], [1], [0, 0, 1, 1], [], []>} : vector<24x64xf32>, vector<64x128xf32>, vector<24x128xf32> -> vector<24x128xf32>
    %104 = arith.addf %99, %103 : vector<24x128xf32>
    %c1_108 = arith.constant 1 : index
    %c0_109 = arith.constant 0 : index
    %105 = vector.load %arg17[%c1_108, %c0_109] : memref<38x64xf32, #tpu.memory_space<vmem>>, vector<24x64xf32>
    %c1_110 = arith.constant 1 : index
    %c0_111 = arith.constant 0 : index
    %c0_112 = arith.constant 0 : index
    %106 = vector.load %arg4[%c1_110, %c0_111, %c0_112] : memref<9x64x128xf32, #tpu.memory_space<vmem>>, vector<1x64x128xf32>
    %107 = vector.shape_cast %106 : vector<1x64x128xf32> to vector<64x128xf32>
    %cst_113 = arith.constant dense<0.000000e+00> : vector<24x128xf32>
    %108 = tpu.matmul %105, %107, %cst_113 {dimension_numbers = #tpu.dot_dimension_numbers<[1], [0], [0], [1], [0, 0, 1, 1], [], []>} : vector<24x64xf32>, vector<64x128xf32>, vector<24x128xf32> -> vector<24x128xf32>
    %109 = arith.addf %104, %108 : vector<24x128xf32>
    %c2_114 = arith.constant 2 : index
    %c0_115 = arith.constant 0 : index
    %110 = vector.load %arg17[%c2_114, %c0_115] : memref<38x64xf32, #tpu.memory_space<vmem>>, vector<24x64xf32>
    %c2_116 = arith.constant 2 : index
    %c0_117 = arith.constant 0 : index
    %c0_118 = arith.constant 0 : index
    %111 = vector.load %arg4[%c2_116, %c0_117, %c0_118] : memref<9x64x128xf32, #tpu.memory_space<vmem>>, vector<1x64x128xf32>
    %112 = vector.shape_cast %111 : vector<1x64x128xf32> to vector<64x128xf32>
    %cst_119 = arith.constant dense<0.000000e+00> : vector<24x128xf32>
    %113 = tpu.matmul %110, %112, %cst_119 {dimension_numbers = #tpu.dot_dimension_numbers<[1], [0], [0], [1], [0, 0, 1, 1], [], []>} : vector<24x64xf32>, vector<64x128xf32>, vector<24x128xf32> -> vector<24x128xf32>
    %114 = arith.addf %109, %113 : vector<24x128xf32>
    %c6_120 = arith.constant 6 : index
    %c0_121 = arith.constant 0 : index
    %115 = vector.load %arg17[%c6_120, %c0_121] : memref<38x64xf32, #tpu.memory_space<vmem>>, vector<24x64xf32>
    %c3_122 = arith.constant 3 : index
    %c0_123 = arith.constant 0 : index
    %c0_124 = arith.constant 0 : index
    %116 = vector.load %arg4[%c3_122, %c0_123, %c0_124] : memref<9x64x128xf32, #tpu.memory_space<vmem>>, vector<1x64x128xf32>
    %117 = vector.shape_cast %116 : vector<1x64x128xf32> to vector<64x128xf32>
    %cst_125 = arith.constant dense<0.000000e+00> : vector<24x128xf32>
    %118 = tpu.matmul %115, %117, %cst_125 {dimension_numbers = #tpu.dot_dimension_numbers<[1], [0], [0], [1], [0, 0, 1, 1], [], []>} : vector<24x64xf32>, vector<64x128xf32>, vector<24x128xf32> -> vector<24x128xf32>
    %119 = arith.addf %114, %118 : vector<24x128xf32>
    %c7_126 = arith.constant 7 : index
    %c0_127 = arith.constant 0 : index
    %120 = vector.load %arg17[%c7_126, %c0_127] : memref<38x64xf32, #tpu.memory_space<vmem>>, vector<24x64xf32>
    %c4_128 = arith.constant 4 : index
    %c0_129 = arith.constant 0 : index
    %c0_130 = arith.constant 0 : index
    %121 = vector.load %arg4[%c4_128, %c0_129, %c0_130] : memref<9x64x128xf32, #tpu.memory_space<vmem>>, vector<1x64x128xf32>
    %122 = vector.shape_cast %121 : vector<1x64x128xf32> to vector<64x128xf32>
    %cst_131 = arith.constant dense<0.000000e+00> : vector<24x128xf32>
    %123 = tpu.matmul %120, %122, %cst_131 {dimension_numbers = #tpu.dot_dimension_numbers<[1], [0], [0], [1], [0, 0, 1, 1], [], []>} : vector<24x64xf32>, vector<64x128xf32>, vector<24x128xf32> -> vector<24x128xf32>
    %124 = arith.addf %119, %123 : vector<24x128xf32>
    %c8_132 = arith.constant 8 : index
    %c0_133 = arith.constant 0 : index
    %125 = vector.load %arg17[%c8_132, %c0_133] : memref<38x64xf32, #tpu.memory_space<vmem>>, vector<24x64xf32>
    %c5_134 = arith.constant 5 : index
    %c0_135 = arith.constant 0 : index
    %c0_136 = arith.constant 0 : index
    %126 = vector.load %arg4[%c5_134, %c0_135, %c0_136] : memref<9x64x128xf32, #tpu.memory_space<vmem>>, vector<1x64x128xf32>
    %127 = vector.shape_cast %126 : vector<1x64x128xf32> to vector<64x128xf32>
    %cst_137 = arith.constant dense<0.000000e+00> : vector<24x128xf32>
    %128 = tpu.matmul %125, %127, %cst_137 {dimension_numbers = #tpu.dot_dimension_numbers<[1], [0], [0], [1], [0, 0, 1, 1], [], []>} : vector<24x64xf32>, vector<64x128xf32>, vector<24x128xf32> -> vector<24x128xf32>
    %129 = arith.addf %124, %128 : vector<24x128xf32>
    %c12_138 = arith.constant 12 : index
    %c0_139 = arith.constant 0 : index
    %130 = vector.load %arg17[%c12_138, %c0_139] : memref<38x64xf32, #tpu.memory_space<vmem>>, vector<24x64xf32>
    %c6_140 = arith.constant 6 : index
    %c0_141 = arith.constant 0 : index
    %c0_142 = arith.constant 0 : index
    %131 = vector.load %arg4[%c6_140, %c0_141, %c0_142] : memref<9x64x128xf32, #tpu.memory_space<vmem>>, vector<1x64x128xf32>
    %132 = vector.shape_cast %131 : vector<1x64x128xf32> to vector<64x128xf32>
    %cst_143 = arith.constant dense<0.000000e+00> : vector<24x128xf32>
    %133 = tpu.matmul %130, %132, %cst_143 {dimension_numbers = #tpu.dot_dimension_numbers<[1], [0], [0], [1], [0, 0, 1, 1], [], []>} : vector<24x64xf32>, vector<64x128xf32>, vector<24x128xf32> -> vector<24x128xf32>
    %134 = arith.addf %129, %133 : vector<24x128xf32>
    %c13_144 = arith.constant 13 : index
    %c0_145 = arith.constant 0 : index
    %135 = vector.load %arg17[%c13_144, %c0_145] : memref<38x64xf32, #tpu.memory_space<vmem>>, vector<24x64xf32>
    %c7_146 = arith.constant 7 : index
    %c0_147 = arith.constant 0 : index
    %c0_148 = arith.constant 0 : index
    %136 = vector.load %arg4[%c7_146, %c0_147, %c0_148] : memref<9x64x128xf32, #tpu.memory_space<vmem>>, vector<1x64x128xf32>
    %137 = vector.shape_cast %136 : vector<1x64x128xf32> to vector<64x128xf32>
    %cst_149 = arith.constant dense<0.000000e+00> : vector<24x128xf32>
    %138 = tpu.matmul %135, %137, %cst_149 {dimension_numbers = #tpu.dot_dimension_numbers<[1], [0], [0], [1], [0, 0, 1, 1], [], []>} : vector<24x64xf32>, vector<64x128xf32>, vector<24x128xf32> -> vector<24x128xf32>
    %139 = arith.addf %134, %138 : vector<24x128xf32>
    %c14 = arith.constant 14 : index
    %c0_150 = arith.constant 0 : index
    %140 = vector.load %arg17[%c14, %c0_150] : memref<38x64xf32, #tpu.memory_space<vmem>>, vector<24x64xf32>
    %c8_151 = arith.constant 8 : index
    %c0_152 = arith.constant 0 : index
    %c0_153 = arith.constant 0 : index
    %141 = vector.load %arg4[%c8_151, %c0_152, %c0_153] : memref<9x64x128xf32, #tpu.memory_space<vmem>>, vector<1x64x128xf32>
    %142 = vector.shape_cast %141 : vector<1x64x128xf32> to vector<64x128xf32>
    %cst_154 = arith.constant dense<0.000000e+00> : vector<24x128xf32>
    %143 = tpu.matmul %140, %142, %cst_154 {dimension_numbers = #tpu.dot_dimension_numbers<[1], [0], [0], [1], [0, 0, 1, 1], [], []>} : vector<24x64xf32>, vector<64x128xf32>, vector<24x128xf32> -> vector<24x128xf32>
    %144 = arith.addf %139, %143 : vector<24x128xf32>
    %c0_155 = arith.constant 0 : index
    %c0_156 = arith.constant 0 : index
    %145 = vector.load %arg5[%c0_155, %c0_156] : memref<1x128xf32, #tpu.memory_space<vmem>>, vector<1x128xf32>
    %146 = vector.broadcast %145 : vector<1x128xf32> to vector<24x128xf32>
    %147 = arith.addf %144, %146 : vector<24x128xf32>
    %cst_157 = arith.constant 0.000000e+00 : f32
    %148 = vector.broadcast %cst_157 : f32 to vector<24x128xf32>
    %149 = arith.maximumf %147, %148 : vector<24x128xf32>
    %c0_158 = arith.constant 0 : index
    %c0_159 = arith.constant 0 : index
    %150 = vector.load %arg18[%c0_158, %c0_159] : memref<24x128xf32, #tpu.memory_space<vmem>>, vector<24x128xf32>
    tpu.vector_store %arg18[%c0_158, %c0_159], %149 {strides = array<i32>} : memref<24x128xf32, #tpu.memory_space<vmem>>, vector<24x128xf32>,
    %c0_160 = arith.constant 0 : index
    %c0_161 = arith.constant 0 : index
    %151 = tpu.strided_load %arg18[%c0_160, %c0_161] {strides = array<i32: 2, 1>} : memref<24x128xf32, #tpu.memory_space<vmem>>, vector<12x128xf32>
    %c1_162 = arith.constant 1 : index
    %c0_163 = arith.constant 0 : index
    %152 = tpu.strided_load %arg18[%c1_162, %c0_163] {strides = array<i32: 2, 1>} : memref<24x128xf32, #tpu.memory_space<vmem>>, vector<12x128xf32>
    %153 = arith.maximumf %151, %152 : vector<12x128xf32>
    %c0_164 = arith.constant 0 : index
    %c0_165 = arith.constant 0 : index
    %154 = vector.load %arg7[%c0_164, %c0_165] : memref<1x512xf32, #tpu.memory_space<vmem>>, vector<1x512xf32>
    %155 = vector.extract_strided_slice %153 {offsets = [0, 0], sizes = [2, 128], strides = [1, 1]} : vector<12x128xf32> to vector<2x128xf32>
    %156 = vector.extract_strided_slice %153 {offsets = [3, 0], sizes = [2, 128], strides = [1, 1]} : vector<12x128xf32> to vector<2x128xf32>
    %157 = arith.maximumf %155, %156 : vector<2x128xf32>
    %158 = vector.extract_strided_slice %157 {offsets = [0, 0], sizes = [1, 128], strides = [1, 1]} : vector<2x128xf32> to vector<1x128xf32>
    %c0_166 = arith.constant 0 : index
    %c0_167 = arith.constant 0 : index
    %c0_168 = arith.constant 0 : index
    %159 = vector.load %arg6[%c0_166, %c0_167, %c0_168] : memref<4x128x512xf32, #tpu.memory_space<vmem>>, vector<1x128x512xf32>
    %160 = vector.shape_cast %159 : vector<1x128x512xf32> to vector<128x512xf32>
    %cst_169 = arith.constant dense<0.000000e+00> : vector<1x512xf32>
    %161 = tpu.matmul %158, %160, %cst_169 {dimension_numbers = #tpu.dot_dimension_numbers<[1], [0], [0], [1], [0, 0, 1, 1], [], []>} : vector<1x128xf32>, vector<128x512xf32>, vector<1x512xf32> -> vector<1x512xf32>
    %162 = arith.addf %154, %161 : vector<1x512xf32>
    %163 = vector.extract_strided_slice %157 {offsets = [1, 0], sizes = [1, 128], strides = [1, 1]} : vector<2x128xf32> to vector<1x128xf32>
    %c1_170 = arith.constant 1 : index
    %c0_171 = arith.constant 0 : index
    %c0_172 = arith.constant 0 : index
    %164 = vector.load %arg6[%c1_170, %c0_171, %c0_172] : memref<4x128x512xf32, #tpu.memory_space<vmem>>, vector<1x128x512xf32>
    %165 = vector.shape_cast %164 : vector<1x128x512xf32> to vector<128x512xf32>
    %cst_173 = arith.constant dense<0.000000e+00> : vector<1x512xf32>
    %166 = tpu.matmul %163, %165, %cst_173 {dimension_numbers = #tpu.dot_dimension_numbers<[1], [0], [0], [1], [0, 0, 1, 1], [], []>} : vector<1x128xf32>, vector<128x512xf32>, vector<1x512xf32> -> vector<1x512xf32>
    %167 = arith.addf %162, %166 : vector<1x512xf32>
    %168 = vector.extract_strided_slice %153 {offsets = [6, 0], sizes = [2, 128], strides = [1, 1]} : vector<12x128xf32> to vector<2x128xf32>
    %169 = vector.extract_strided_slice %153 {offsets = [9, 0], sizes = [2, 128], strides = [1, 1]} : vector<12x128xf32> to vector<2x128xf32>
    %170 = arith.maximumf %168, %169 : vector<2x128xf32>
    %171 = vector.extract_strided_slice %170 {offsets = [0, 0], sizes = [1, 128], strides = [1, 1]} : vector<2x128xf32> to vector<1x128xf32>
    %c2_174 = arith.constant 2 : index
    %c0_175 = arith.constant 0 : index
    %c0_176 = arith.constant 0 : index
    %172 = vector.load %arg6[%c2_174, %c0_175, %c0_176] : memref<4x128x512xf32, #tpu.memory_space<vmem>>, vector<1x128x512xf32>
    %173 = vector.shape_cast %172 : vector<1x128x512xf32> to vector<128x512xf32>
    %cst_177 = arith.constant dense<0.000000e+00> : vector<1x512xf32>
    %174 = tpu.matmul %171, %173, %cst_177 {dimension_numbers = #tpu.dot_dimension_numbers<[1], [0], [0], [1], [0, 0, 1, 1], [], []>} : vector<1x128xf32>, vector<128x512xf32>, vector<1x512xf32> -> vector<1x512xf32>
    %175 = arith.addf %167, %174 : vector<1x512xf32>
    %176 = vector.extract_strided_slice %170 {offsets = [1, 0], sizes = [1, 128], strides = [1, 1]} : vector<2x128xf32> to vector<1x128xf32>
    %c3_178 = arith.constant 3 : index
    %c0_179 = arith.constant 0 : index
    %c0_180 = arith.constant 0 : index
    %177 = vector.load %arg6[%c3_178, %c0_179, %c0_180] : memref<4x128x512xf32, #tpu.memory_space<vmem>>, vector<1x128x512xf32>
    %178 = vector.shape_cast %177 : vector<1x128x512xf32> to vector<128x512xf32>
    %cst_181 = arith.constant dense<0.000000e+00> : vector<1x512xf32>
    %179 = tpu.matmul %176, %178, %cst_181 {dimension_numbers = #tpu.dot_dimension_numbers<[1], [0], [0], [1], [0, 0, 1, 1], [], []>} : vector<1x128xf32>, vector<128x512xf32>, vector<1x512xf32> -> vector<1x512xf32>
    %180 = arith.addf %175, %179 : vector<1x512xf32>
    %cst_182 = arith.constant 0.000000e+00 : f32
    %181 = vector.broadcast %cst_182 : f32 to vector<1x512xf32>
    %182 = arith.cmpf oge, %180, %181 : vector<1x512xf32>
    %c0_183 = arith.constant 0 : index
    %c0_184 = arith.constant 0 : index
    %183 = memref.load %arg8[%c0_183, %c0_184] : memref<1x1xf32, #tpu.memory_space<smem>>
    %184 = vector.broadcast %183 : f32 to vector<1x512xf32>
    %185 = arith.mulf %184, %180 : vector<1x512xf32>
    %186 = arith.select %182, %180, %185 : vector<1x512xi1>, vector<1x512xf32>
    %c0_185 = arith.constant 0 : index
    %c0_186 = arith.constant 0 : index
    %187 = vector.load %arg9[%c0_185, %c0_186] : memref<512x512xf32, #tpu.memory_space<vmem>>, vector<512x512xf32>
    %cst_187 = arith.constant dense<0.000000e+00> : vector<1x512xf32>
    %188 = tpu.matmul %186, %187, %cst_187 {dimension_numbers = #tpu.dot_dimension_numbers<[1], [0], [0], [1], [0, 0, 1, 1], [], []>} : vector<1x512xf32>, vector<512x512xf32>, vector<1x512xf32> -> vector<1x512xf32>
    %c0_188 = arith.constant 0 : index
    %c0_189 = arith.constant 0 : index
    %189 = vector.load %arg10[%c0_188, %c0_189] : memref<1x512xf32, #tpu.memory_space<vmem>>, vector<1x512xf32>
    %190 = arith.addf %188, %189 : vector<1x512xf32>
    %cst_190 = arith.constant 0.000000e+00 : f32
    %191 = vector.broadcast %cst_190 : f32 to vector<1x512xf32>
    %192 = arith.cmpf oge, %190, %191 : vector<1x512xf32>
    %c0_191 = arith.constant 0 : index
    %c0_192 = arith.constant 0 : index
    %193 = memref.load %arg11[%c0_191, %c0_192] : memref<1x1xf32, #tpu.memory_space<smem>>
    %194 = vector.broadcast %193 : f32 to vector<1x512xf32>
    %195 = arith.mulf %194, %190 : vector<1x512xf32>
    %196 = arith.select %192, %190, %195 : vector<1x512xi1>, vector<1x512xf32>
    %c0_193 = arith.constant 0 : index
    %c0_194 = arith.constant 0 : index
    %197 = vector.load %arg12[%c0_193, %c0_194] : memref<512x10xf32, #tpu.memory_space<vmem>>, vector<512x10xf32>
    %cst_195 = arith.constant dense<0.000000e+00> : vector<1x10xf32>
    %198 = tpu.matmul %196, %197, %cst_195 {dimension_numbers = #tpu.dot_dimension_numbers<[1], [0], [0], [1], [0, 0, 1, 1], [], []>} : vector<1x512xf32>, vector<512x10xf32>, vector<1x10xf32> -> vector<1x10xf32>
    %c0_196 = arith.constant 0 : index
    %c0_197 = arith.constant 0 : index
    %199 = vector.load %arg13[%c0_196, %c0_197] : memref<1x10xf32, #tpu.memory_space<vmem>>, vector<1x10xf32>
    %200 = arith.addf %198, %199 : vector<1x10xf32>
    %c0_198 = arith.constant 0 : index
    %c0_199 = arith.constant 0 : index
    %c0_200 = arith.constant 0 : index
    %201 = vector.load %arg14[%c0_198, %c0_199, %c0_200] : memref<1x1x10xf32, #tpu.memory_space<vmem>>, vector<1x1x10xf32>
    %202 = vector.shape_cast %201 : vector<1x1x10xf32> to vector<1x10xf32>
    %203 = vector.shape_cast %200 : vector<1x10xf32> to vector<1x1x10xf32>
    tpu.vector_store %arg14[%c0_198, %c0_199, %c0_200], %203 {strides = array<i32>} : memref<1x1x10xf32, #tpu.memory_space<vmem>>, vector<1x1x10xf32>,
    return
  }
  func.func @transform_0(%arg0: i32) -> (i32, i32, i32, i32) {
    %c0_i32 = arith.constant 0 : i32
    %c0_i32_0 = arith.constant 0 : i32
    %c0_i32_1 = arith.constant 0 : i32
    %c0_i32_2 = arith.constant 0 : i32
    return %arg0, %c0_i32, %c0_i32_0, %c0_i32_1 : i32, i32, i32, i32
  }
  func.func @transform_1(%arg0: i32) -> (i32, i32, i32) {
    %c0_i32 = arith.constant 0 : i32
    %c0_i32_0 = arith.constant 0 : i32
    %c0_i32_1 = arith.constant 0 : i32
    %c0_i32_2 = arith.constant 0 : i32
    return %c0_i32, %c0_i32_0, %c0_i32_1 : i32, i32, i32
  }
  func.func @transform_2(%arg0: i32) -> (i32, i32) {
    %c0_i32 = arith.constant 0 : i32
    %c0_i32_0 = arith.constant 0 : i32
    %c0_i32_1 = arith.constant 0 : i32
    return %c0_i32, %c0_i32_0 : i32, i32
  }
  func.func @transform_3(%arg0: i32) -> (i32, i32, i32) {
    %c0_i32 = arith.constant 0 : i32
    %c0_i32_0 = arith.constant 0 : i32
    %c0_i32_1 = arith.constant 0 : i32
    %c0_i32_2 = arith.constant 0 : i32
    return %c0_i32, %c0_i32_0, %c0_i32_1 : i32, i32, i32
  }
  func.func @transform_4(%arg0: i32) -> (i32, i32) {
    %c0_i32 = arith.constant 0 : i32
    %c0_i32_0 = arith.constant 0 : i32
    %c0_i32_1 = arith.constant 0 : i32
    return %c0_i32, %c0_i32_0 : i32, i32
  }
  func.func @transform_5(%arg0: i32) -> (i32, i32, i32) {
    %c0_i32 = arith.constant 0 : i32
    %c0_i32_0 = arith.constant 0 : i32
    %c0_i32_1 = arith.constant 0 : i32
    %c0_i32_2 = arith.constant 0 : i32
    return %c0_i32, %c0_i32_0, %c0_i32_1 : i32, i32, i32
  }
  func.func @transform_6(%arg0: i32) -> (i32, i32) {
    %c0_i32 = arith.constant 0 : i32
    %c0_i32_0 = arith.constant 0 : i32
    %c0_i32_1 = arith.constant 0 : i32
    return %c0_i32, %c0_i32_0 : i32, i32
  }
  func.func @transform_7(%arg0: i32) -> (i32, i32) {
    %c0_i32 = arith.constant 0 : i32
    %c0_i32_0 = arith.constant 0 : i32
    %c0_i32_1 = arith.constant 0 : i32
    return %c0_i32, %c0_i32_0 : i32, i32
  }
  func.func @transform_8(%arg0: i32) -> (i32, i32) {
    %c0_i32 = arith.constant 0 : i32
    %c0_i32_0 = arith.constant 0 : i32
    %c0_i32_1 = arith.constant 0 : i32
    return %c0_i32, %c0_i32_0 : i32, i32
  }
  func.func @transform_9(%arg0: i32) -> (i32, i32) {
    %c0_i32 = arith.constant 0 : i32
    %c0_i32_0 = arith.constant 0 : i32
    %c0_i32_1 = arith.constant 0 : i32
    return %c0_i32, %c0_i32_0 : i32, i32
  }
  func.func @transform_10(%arg0: i32) -> (i32, i32) {
    %c0_i32 = arith.constant 0 : i32
    %c0_i32_0 = arith.constant 0 : i32
    %c0_i32_1 = arith.constant 0 : i32
    return %c0_i32, %c0_i32_0 : i32, i32
  }
  func.func @transform_11(%arg0: i32) -> (i32, i32) {
    %c0_i32 = arith.constant 0 : i32
    %c0_i32_0 = arith.constant 0 : i32
    %c0_i32_1 = arith.constant 0 : i32
    return %c0_i32, %c0_i32_0 : i32, i32
  }
  func.func @transform_12(%arg0: i32) -> (i32, i32) {
    %c0_i32 = arith.constant 0 : i32
    %c0_i32_0 = arith.constant 0 : i32
    %c0_i32_1 = arith.constant 0 : i32
    return %c0_i32, %c0_i32_0 : i32, i32
  }
  func.func @transform_13(%arg0: i32) -> (i32, i32, i32) {
    %c0_i32 = arith.constant 0 : i32
    %c0_i32_0 = arith.constant 0 : i32
    %c0_i32_1 = arith.constant 0 : i32
    return %arg0, %c0_i32, %c0_i32_0 : i32, i32, i32
  }
}

</mosaic_0001>

<llo_original>
// kernel: _vgg_forward_impl.1
$region0: #{_vgg_forward_impl.1}
  #allocation0 [shape = 'u32[]', space=smem, size = 0x4, offset = 0x4, fixed_abs, tag = 'smem constant byte address 0x4 - core index']
  #allocation1 [shape = 'u32[144,128]{1,0:T(1,128)}', space=vmem, size = 0x12000, scoped, tag = 'internal scratch']
  #allocation2 [shape = 'f32[102,4]{1,0:T(8,128)}', space=vmem, size = 0xd000, scoped, tag = 'scratch operand']
  #allocation3 [shape = 'f32[80,64]{1,0:T(8,128)}', space=vmem, size = 0xa000, scoped, tag = 'scratch operand']
  #allocation4 [shape = 'f32[38,64]{1,0:T(8,128)}', space=vmem, size = 0x5000, scoped, tag = 'scratch operand']
  #allocation5 [shape = 'f32[24,128]{1,0:T(8,128)}', space=vmem, size = 0x3000, scoped, tag = 'scratch operand']
  #allocation6 [shape = 'f32[1,1]{1,0:T(1,128)S(6)}', space=smem, size = 0x200, scoped, tag = 'scoped memory for _vgg_forward_impl.1']
  #allocation7 [shape = 'f32[1,1]{1,0:T(1,128)S(6)}', space=smem, size = 0x200, scoped, tag = 'scoped memory for _vgg_forward_impl.1']
  %s0 = inlined_call_operand.vmem [shape: f32[2,8,8,4], index: 0, kind: input, shape index: {}]
  %s1 = inlined_call_operand.vmem [shape: f32[9,4,64], index: 1, kind: input, shape index: {}]
  %s2 = inlined_call_operand.vmem [shape: f32[1,64], index: 2, kind: input, shape index: {}]
  %s3 = inlined_call_operand.vmem [shape: f32[9,64,128], index: 3, kind: input, shape index: {}]
  %s4 = inlined_call_operand.vmem [shape: f32[1,128], index: 4, kind: input, shape index: {}]
  %s5 = inlined_call_operand.vmem [shape: f32[4,128,512], index: 5, kind: input, shape index: {}]
  %s6 = inlined_call_operand.vmem [shape: f32[1,512], index: 6, kind: input, shape index: {}]
  %s7 = inlined_call_operand.<no memory space> [shape: f32[1,1], index: 7, kind: input, shape index: {}]
  %s8 = inlined_call_operand.vmem [shape: f32[512,512], index: 8, kind: input, shape index: {}]
  %s9 = inlined_call_operand.vmem [shape: f32[1,512], index: 9, kind: input, shape index: {}]
  %s10 = inlined_call_operand.<no memory space> [shape: f32[1,1], index: 10, kind: input, shape index: {}]
  %s11 = inlined_call_operand.vmem [shape: f32[512,10], index: 11, kind: input, shape index: {}]
  %s12 = inlined_call_operand.vmem [shape: f32[1,10], index: 12, kind: input, shape index: {}]
  %s13 = inlined_call_operand.hbm [shape: f32[2,1,10], index: 13, kind: output, shape index: {}]
  %s14 = sld [smem:[#allocation0]]
  $region85: #{_vgg_forward_impl.1} parent=0
    _
  %s16 = ssub.s32 1, %s14
  %s17 = scalar_select 0, %s16, %s14
  %18 = sst [smem:[#allocation6]] %s7
  %19 = sst [smem:[#allocation7]] %s10
  $region1: #{_vgg_forward_impl.1} parent=0
    #allocation8 [shape = 'u8[1024]{0}', space=vmem, size = 0x400, scoped, tag = 'output window, operand 0']
    #allocation9 [shape = 's32[2]{0}', space=sflag, size = 0x8, scoped, tag = 'scoped memory for _vgg_forward_impl.1']
    %20 = vsyncpa [#allocation9], 0
    %s21 = scalar_lea.sflag [#allocation9], 1
    %22 = vsyncpa %s21, 0
    loop: start=0, step=1, limit=4
    $region2: #{_vgg_forward_impl.1} parent=1 // loop_pre_header
      _
    $region3: #{_vgg_forward_impl.1} parent=1 // loop_header
      %s24 = sphi 0, %s28
      %p25 = scmp.ge.s32.totalorder %s24, 4
      %s34 = sphi 0, %s36
      %s37 = sphi 0, %s34
      %s38 = sphi 0, %s37
      %s54 = sphi 0, %s38
      %s58 = sphi 0, %s58
      %s60 = sphi 0, %s58
      %s61 = sphi 0, %s60
      %s75 = sphi 0, %s61
      %s79 = sphi 0, %s79
      %s81 = sphi 0, %s79
      %s82 = sphi 0, %s81
      %s96 = sphi 0, %s82
      %s100 = sphi 0, %s100
      %s102 = sphi 0, %s100
      %s103 = sphi 0, %s102
      %s117 = sphi 0, %s103
      %s121 = sphi 0, %s121
      %s123 = sphi 0, %s121
      %s124 = sphi 0, %s123
      %s138 = sphi 0, %s124
      %s142 = sphi 0, %s142
      %s144 = sphi 0, %s142
      %s145 = sphi 0, %s144
      %s159 = sphi 0, %s145
      %s163 = sphi 0, %s163
      %s165 = sphi 0, %s163
      %s166 = sphi 0, %s165
      %s180 = sphi 0, %s166
      %s184 = sphi 0, %s184
      %s186 = sphi 0, %s184
      %s187 = sphi 0, %s186
      %s201 = sphi 0, %s187
      %s205 = sphi 0, %s205
      %s207 = sphi 0, %s205
      %s208 = sphi 0, %s207
      %s222 = sphi 0, %s208
      %s226 = sphi 0, %s226
      %s228 = sphi 0, %s226
      %s229 = sphi 0, %s228
      %s243 = sphi 0, %s229
      %s247 = sphi 0, %s247
      %s249 = sphi 0, %s247
      %s250 = sphi 0, %s249
      %s264 = sphi 0, %s250
      %s268 = sphi 0, %s268
      %s270 = sphi 0, %s268
      %s271 = sphi 0, %s270
      %s285 = sphi 0, %s271
      %s289 = sphi 0, %s289
      %s291 = sphi 0, %s289
      %s292 = sphi 0, %s291
      %s306 = sphi 0, %s292
      %s312 = sphi 0, %s314
      %s315 = sphi 0, %s312
      %s316 = sphi 0, %s315
      %s332 = sphi 0, %s316
    $region4: #{_vgg_forward_impl.1} parent=1 // loop_header_branch
      %27 = sbr.rel (%p25) target = $region8
    $region5: #{_vgg_forward_impl.1} parent=1 // loop_body
      %s29 = ssub.s32 %s24, 1
      %s30 = ssub.s32 %s24, 2
      %s31 = sadd.s32 %s24, 1
      %s32 = ssub.s32 %s24, %s31
      %p33 = scmp.eq.s32.totalorder %s32, 0
      %s35 = sadd.s32 %s34, 1
      %s36 = scalar_select %p33, %s34, %s35
      %p39 = pneg %p33
      %p40 = scmp.eq.s32.totalorder %s24, 1
      %p41 = por %p39, %p40
      %p42 = scmp.ne.s32.totalorder %s34, %s37
      %p43 = scmp.eq.s32.totalorder %s24, 0
      %p44 = por %p42, %p43
      %p45 = scmp.ne.s32.totalorder %s34, %s37
      %p46 = scmp.eq.s32.totalorder %s29, 1
      %p47 = por %p45, %p46
      %p48 = scmp.ne.s32.totalorder %s37, %s38
      %p49 = scmp.eq.s32.totalorder %s29, 0
      %p50 = por %p48, %p49
      %p51 = scmp.ne.s32.totalorder %s37, %s38
      %p52 = scmp.eq.s32.totalorder %s30, 1
      %p53 = por %p51, %p52
      %p55 = scmp.ne.s32.totalorder %s38, %s54
      %p56 = scmp.eq.s32.totalorder %s30, 0
      %p57 = por %p55, %p56
      %s59 = sadd.s32 %s58, 1
      %p62 = scmp.eq.s32.totalorder %s24, 1
      %p63 = scmp.ne.s32.totalorder %s58, %s60
      %p64 = scmp.eq.s32.totalorder %s24, 0
      %p65 = por %p63, %p64
      %p66 = scmp.ne.s32.totalorder %s58, %s60
      %p67 = scmp.eq.s32.totalorder %s29, 1
      %p68 = por %p66, %p67
      %p69 = scmp.ne.s32.totalorder %s60, %s61
      %p70 = scmp.eq.s32.totalorder %s29, 0
      %p71 = por %p69, %p70
      %p72 = scmp.ne.s32.totalorder %s60, %s61
      %p73 = scmp.eq.s32.totalorder %s30, 1
      %p74 = por %p72, %p73
      %p76 = scmp.ne.s32.totalorder %s61, %s75
      %p77 = scmp.eq.s32.totalorder %s30, 0
      %p78 = por %p76, %p77
      %s80 = sadd.s32 %s79, 1
      %p83 = scmp.eq.s32.totalorder %s24, 1
      %p84 = scmp.ne.s32.totalorder %s79, %s81
      %p85 = scmp.eq.s32.totalorder %s24, 0
      %p86 = por %p84, %p85
      %p87 = scmp.ne.s32.totalorder %s79, %s81
      %p88 = scmp.eq.s32.totalorder %s29, 1
      %p89 = por %p87, %p88
      %p90 = scmp.ne.s32.totalorder %s81, %s82
      %p91 = scmp.eq.s32.totalorder %s29, 0
      %p92 = por %p90, %p91
      %p93 = scmp.ne.s32.totalorder %s81, %s82
      %p94 = scmp.eq.s32.totalorder %s30, 1
      %p95 = por %p93, %p94
      %p97 = scmp.ne.s32.totalorder %s82, %s96
      %p98 = scmp.eq.s32.totalorder %s30, 0
      %p99 = por %p97, %p98
      %s101 = sadd.s32 %s100, 1
      %p104 = scmp.eq.s32.totalorder %s24, 1
      %p105 = scmp.ne.s32.totalorder %s100, %s102
      %p106 = scmp.eq.s32.totalorder %s24, 0
      %p107 = por %p105, %p106
      %p108 = scmp.ne.s32.totalorder %s100, %s102
      %p109 = scmp.eq.s32.totalorder %s29, 1
      %p110 = por %p108, %p109
      %p111 = scmp.ne.s32.totalorder %s102, %s103
      %p112 = scmp.eq.s32.totalorder %s29, 0
      %p113 = por %p111, %p112
      %p114 = scmp.ne.s32.totalorder %s102, %s103
      %p115 = scmp.eq.s32.totalorder %s30, 1
      %p116 = por %p114, %p115
      %p118 = scmp.ne.s32.totalorder %s103, %s117
      %p119 = scmp.eq.s32.totalorder %s30, 0
      %p120 = por %p118, %p119
      %s122 = sadd.s32 %s121, 1
      %p125 = scmp.eq.s32.totalorder %s24, 1
      %p126 = scmp.ne.s32.totalorder %s121, %s123
      %p127 = scmp.eq.s32.totalorder %s24, 0
      %p128 = por %p126, %p127
      %p129 = scmp.ne.s32.totalorder %s121, %s123
      %p130 = scmp.eq.s32.totalorder %s29, 1
      %p131 = por %p129, %p130
      %p132 = scmp.ne.s32.totalorder %s123, %s124
      %p133 = scmp.eq.s32.totalorder %s29, 0
      %p134 = por %p132, %p133
      %p135 = scmp.ne.s32.totalorder %s123, %s124
      %p136 = scmp.eq.s32.totalorder %s30, 1
      %p137 = por %p135, %p136
      %p139 = scmp.ne.s32.totalorder %s124, %s138
      %p140 = scmp.eq.s32.totalorder %s30, 0
      %p141 = por %p139, %p140
      %s143 = sadd.s32 %s142, 1
      %p146 = scmp.eq.s32.totalorder %s24, 1
      %p147 = scmp.ne.s32.totalorder %s142, %s144
      %p148 = scmp.eq.s32.totalorder %s24, 0
      %p149 = por %p147, %p148
      %p150 = scmp.ne.s32.totalorder %s142, %s144
      %p151 = scmp.eq.s32.totalorder %s29, 1
      %p152 = por %p150, %p151
      %p153 = scmp.ne.s32.totalorder %s144, %s145
      %p154 = scmp.eq.s32.totalorder %s29, 0
      %p155 = por %p153, %p154
      %p156 = scmp.ne.s32.totalorder %s144, %s145
      %p157 = scmp.eq.s32.totalorder %s30, 1
      %p158 = por %p156, %p157
      %p160 = scmp.ne.s32.totalorder %s145, %s159
      %p161 = scmp.eq.s32.totalorder %s30, 0
      %p162 = por %p160, %p161
      %s164 = sadd.s32 %s163, 1
      %p167 = scmp.eq.s32.totalorder %s24, 1
      %p168 = scmp.ne.s32.totalorder %s163, %s165
      %p169 = scmp.eq.s32.totalorder %s24, 0
      %p170 = por %p168, %p169
      %p171 = scmp.ne.s32.totalorder %s163, %s165
      %p172 = scmp.eq.s32.totalorder %s29, 1
      %p173 = por %p171, %p172
      %p174 = scmp.ne.s32.totalorder %s165, %s166
      %p175 = scmp.eq.s32.totalorder %s29, 0
      %p176 = por %p174, %p175
      %p177 = scmp.ne.s32.totalorder %s165, %s166
      %p178 = scmp.eq.s32.totalorder %s30, 1
      %p179 = por %p177, %p178
      %p181 = scmp.ne.s32.totalorder %s166, %s180
      %p182 = scmp.eq.s32.totalorder %s30, 0
      %p183 = por %p181, %p182
      %s185 = sadd.s32 %s184, 1
      %p188 = scmp.eq.s32.totalorder %s24, 1
      %p189 = scmp.ne.s32.totalorder %s184, %s186
      %p190 = scmp.eq.s32.totalorder %s24, 0
      %p191 = por %p189, %p190
      %p192 = scmp.ne.s32.totalorder %s184, %s186
      %p193 = scmp.eq.s32.totalorder %s29, 1
      %p194 = por %p192, %p193
      %p195 = scmp.ne.s32.totalorder %s186, %s187
      %p196 = scmp.eq.s32.totalorder %s29, 0
      %p197 = por %p195, %p196
      %p198 = scmp.ne.s32.totalorder %s186, %s187
      %p199 = scmp.eq.s32.totalorder %s30, 1
      %p200 = por %p198, %p199
      %p202 = scmp.ne.s32.totalorder %s187, %s201
      %p203 = scmp.eq.s32.totalorder %s30, 0
      %p204 = por %p202, %p203
      %s206 = sadd.s32 %s205, 1
      %p209 = scmp.eq.s32.totalorder %s24, 1
      %p210 = scmp.ne.s32.totalorder %s205, %s207
      %p211 = scmp.eq.s32.totalorder %s24, 0
      %p212 = por %p210, %p211
      %p213 = scmp.ne.s32.totalorder %s205, %s207
      %p214 = scmp.eq.s32.totalorder %s29, 1
      %p215 = por %p213, %p214
      %p216 = scmp.ne.s32.totalorder %s207, %s208
      %p217 = scmp.eq.s32.totalorder %s29, 0
      %p218 = por %p216, %p217
      %p219 = scmp.ne.s32.totalorder %s207, %s208
      %p220 = scmp.eq.s32.totalorder %s30, 1
      %p221 = por %p219, %p220
      %p223 = scmp.ne.s32.totalorder %s208, %s222
      %p224 = scmp.eq.s32.totalorder %s30, 0
      %p225 = por %p223, %p224
      %s227 = sadd.s32 %s226, 1
      %p230 = scmp.eq.s32.totalorder %s24, 1
      %p231 = scmp.ne.s32.totalorder %s226, %s228
      %p232 = scmp.eq.s32.totalorder %s24, 0
      %p233 = por %p231, %p232
      %p234 = scmp.ne.s32.totalorder %s226, %s228
      %p235 = scmp.eq.s32.totalorder %s29, 1
      %p236 = por %p234, %p235
      %p237 = scmp.ne.s32.totalorder %s228, %s229
      %p238 = scmp.eq.s32.totalorder %s29, 0
      %p239 = por %p237, %p238
      %p240 = scmp.ne.s32.totalorder %s228, %s229
      %p241 = scmp.eq.s32.totalorder %s30, 1
      %p242 = por %p240, %p241
      %p244 = scmp.ne.s32.totalorder %s229, %s243
      %p245 = scmp.eq.s32.totalorder %s30, 0
      %p246 = por %p244, %p245
      %s248 = sadd.s32 %s247, 1
      %p251 = scmp.eq.s32.totalorder %s24, 1
      %p252 = scmp.ne.s32.totalorder %s247, %s249
      %p253 = scmp.eq.s32.totalorder %s24, 0
      %p254 = por %p252, %p253
      %p255 = scmp.ne.s32.totalorder %s247, %s249
      %p256 = scmp.eq.s32.totalorder %s29, 1
      %p257 = por %p255, %p256
      %p258 = scmp.ne.s32.totalorder %s249, %s250
      %p259 = scmp.eq.s32.totalorder %s29, 0
      %p260 = por %p258, %p259
      %p261 = scmp.ne.s32.totalorder %s249, %s250
      %p262 = scmp.eq.s32.totalorder %s30, 1
      %p263 = por %p261, %p262
      %p265 = scmp.ne.s32.totalorder %s250, %s264
      %p266 = scmp.eq.s32.totalorder %s30, 0
      %p267 = por %p265, %p266
      %s269 = sadd.s32 %s268, 1
      %p272 = scmp.eq.s32.totalorder %s24, 1
      %p273 = scmp.ne.s32.totalorder %s268, %s270
      %p274 = scmp.eq.s32.totalorder %s24, 0
      %p275 = por %p273, %p274
      %p276 = scmp.ne.s32.totalorder %s268, %s270
      %p277 = scmp.eq.s32.totalorder %s29, 1
      %p278 = por %p276, %p277
      %p279 = scmp.ne.s32.totalorder %s270, %s271
      %p280 = scmp.eq.s32.totalorder %s29, 0
      %p281 = por %p279, %p280
      %p282 = scmp.ne.s32.totalorder %s270, %s271
      %p283 = scmp.eq.s32.totalorder %s30, 1
      %p284 = por %p282, %p283
      %p286 = scmp.ne.s32.totalorder %s271, %s285
      %p287 = scmp.eq.s32.totalorder %s30, 0
      %p288 = por %p286, %p287
      %s290 = sadd.s32 %s289, 1
      %p293 = scmp.eq.s32.totalorder %s24, 1
      %p294 = scmp.ne.s32.totalorder %s289, %s291
      %p295 = scmp.eq.s32.totalorder %s24, 0
      %p296 = por %p294, %p295
      %p297 = scmp.ne.s32.totalorder %s289, %s291
      %p298 = scmp.eq.s32.totalorder %s29, 1
      %p299 = por %p297, %p298
      %p300 = scmp.ne.s32.totalorder %s291, %s292
      %p301 = scmp.eq.s32.totalorder %s29, 0
      %p302 = por %p300, %p301
      %p303 = scmp.ne.s32.totalorder %s291, %s292
      %p304 = scmp.eq.s32.totalorder %s30, 1
      %p305 = por %p303, %p304
      %p307 = scmp.ne.s32.totalorder %s292, %s306
      %p308 = scmp.eq.s32.totalorder %s30, 0
      %p309 = por %p307, %p308
      %s310 = ssub.s32 %s24, %s31
      %p311 = scmp.eq.s32.totalorder %s310, 0
      %s313 = sadd.s32 %s312, 1
      %s314 = scalar_select %p311, %s312, %s313
      %p317 = pneg %p311
      %p318 = scmp.eq.s32.totalorder %s24, 1
      %p319 = por %p317, %p318
      %p320 = scmp.ne.s32.totalorder %s312, %s315
      %p321 = scmp.eq.s32.totalorder %s24, 0
      %p322 = por %p320, %p321
      %p323 = scmp.ne.s32.totalorder %s312, %s315
      %p324 = scmp.eq.s32.totalorder %s29, 1
      %p325 = por %p323, %p324
      %p326 = scmp.ne.s32.totalorder %s315, %s316
      %p327 = scmp.eq.s32.totalorder %s29, 0
      %p328 = por %p326, %p327
      %p329 = scmp.ne.s32.totalorder %s315, %s316
      %p330 = scmp.eq.s32.totalorder %s30, 1
      %p331 = por %p329, %p330
      %p333 = scmp.ne.s32.totalorder %s316, %s332
      %p334 = scmp.eq.s32.totalorder %s30, 0
      %p335 = por %p333, %p334
      %p336 = scmp.le.s32.totalorder 1, %s24
      %p337 = scmp.lt.s32.totalorder %s24, 3
      %p338 = pnand %p336, %p337
      %p339 = pneg %p338
      // Predicated region
      $region9: #{_vgg_forward_impl.1} parent=5 // pred_check
        _
      $region10: #{_vgg_forward_impl.1} parent=5 // pred_check_branch
        %341 = sbr.rel (%p338) target = $region12
      $region11: #{_vgg_forward_impl.1} parent=5 // pred_region
        %s342 = ssub.s32 %s24, 1
        // Predicated region
        $region13: #{_vgg_forward_impl.1} parent=11 // pred_check
          %p343 = pneg %p71
        $region14: #{_vgg_forward_impl.1} parent=11 // pred_check_branch
          %345 = sbr.rel (%p343) target = $region16
        $region15: #{_vgg_forward_impl.1} parent=11 // pred_region
          _
        $region16: #{_vgg_forward_impl.1} parent=11 // pred_fallthru
          _
        // Predicated region
        $region17: #{_vgg_forward_impl.1} parent=11 // pred_check
          %p346 = pneg %p92
        $region18: #{_vgg_forward_impl.1} parent=11 // pred_check_branch
          %348 = sbr.rel (%p346) target = $region20
        $region19: #{_vgg_forward_impl.1} parent=11 // pred_region
          _
        $region20: #{_vgg_forward_impl.1} parent=11 // pred_fallthru
          _
        // Predicated region
        $region21: #{_vgg_forward_impl.1} parent=11 // pred_check
          %p349 = pneg %p113
        $region22: #{_vgg_forward_impl.1} parent=11 // pred_check_branch
          %351 = sbr.rel (%p349) target = $region24
        $region23: #{_vgg_forward_impl.1} parent=11 // pred_region
          _
        $region24: #{_vgg_forward_impl.1} parent=11 // pred_fallthru
          _
        // Predicated region
        $region25: #{_vgg_forward_impl.1} parent=11 // pred_check
          %p352 = pneg %p134
        $region26: #{_vgg_forward_impl.1} parent=11 // pred_check_branch
          %354 = sbr.rel (%p352) target = $region28
        $region27: #{_vgg_forward_impl.1} parent=11 // pred_region
          _
        $region28: #{_vgg_forward_impl.1} parent=11 // pred_fallthru
          _
        // Predicated region
        $region29: #{_vgg_forward_impl.1} parent=11 // pred_check
          %p355 = pneg %p155
        $region30: #{_vgg_forward_impl.1} parent=11 // pred_check_branch
          %357 = sbr.rel (%p355) target = $region32
        $region31: #{_vgg_forward_impl.1} parent=11 // pred_region
          _
        $region32: #{_vgg_forward_impl.1} parent=11 // pred_fallthru
          _
        // Predicated region
        $region33: #{_vgg_forward_impl.1} parent=11 // pred_check
          %p358 = pneg %p176
        $region34: #{_vgg_forward_impl.1} parent=11 // pred_check_branch
          %360 = sbr.rel (%p358) target = $region36
        $region35: #{_vgg_forward_impl.1} parent=11 // pred_region
          _
        $region36: #{_vgg_forward_impl.1} parent=11 // pred_fallthru
          _
        // Predicated region
        $region37: #{_vgg_forward_impl.1} parent=11 // pred_check
          %p361 = pneg %p197
        $region38: #{_vgg_forward_impl.1} parent=11 // pred_check_branch
          %363 = sbr.rel (%p361) target = $region40
        $region39: #{_vgg_forward_impl.1} parent=11 // pred_region
          _
        $region40: #{_vgg_forward_impl.1} parent=11 // pred_fallthru
          _
        // Predicated region
        $region41: #{_vgg_forward_impl.1} parent=11 // pred_check
          %p364 = pneg %p218
        $region42: #{_vgg_forward_impl.1} parent=11 // pred_check_branch
          %366 = sbr.rel (%p364) target = $region44
        $region43: #{_vgg_forward_impl.1} parent=11 // pred_region
          _
        $region44: #{_vgg_forward_impl.1} parent=11 // pred_fallthru
          _
        // Predicated region
        $region45: #{_vgg_forward_impl.1} parent=11 // pred_check
          %p367 = pneg %p239
        $region46: #{_vgg_forward_impl.1} parent=11 // pred_check_branch
          %369 = sbr.rel (%p367) target = $region48
        $region47: #{_vgg_forward_impl.1} parent=11 // pred_region
          _
        $region48: #{_vgg_forward_impl.1} parent=11 // pred_fallthru
          _
        // Predicated region
        $region49: #{_vgg_forward_impl.1} parent=11 // pred_check
          %p370 = pneg %p260
        $region50: #{_vgg_forward_impl.1} parent=11 // pred_check_branch
          %372 = sbr.rel (%p370) target = $region52
        $region51: #{_vgg_forward_impl.1} parent=11 // pred_region
          _
        $region52: #{_vgg_forward_impl.1} parent=11 // pred_fallthru
          _
        // Predicated region
        $region53: #{_vgg_forward_impl.1} parent=11 // pred_check
          %p373 = pneg %p281
        $region54: #{_vgg_forward_impl.1} parent=11 // pred_check_branch
          %375 = sbr.rel (%p373) target = $region56
        $region55: #{_vgg_forward_impl.1} parent=11 // pred_region
          _
        $region56: #{_vgg_forward_impl.1} parent=11 // pred_fallthru
          _
        // Predicated region
        $region57: #{_vgg_forward_impl.1} parent=11 // pred_check
          %p376 = pneg %p302
        $region58: #{_vgg_forward_impl.1} parent=11 // pred_check_branch
          %378 = sbr.rel (%p376) target = $region60
        $region59: #{_vgg_forward_impl.1} parent=11 // pred_region
          _
        $region60: #{_vgg_forward_impl.1} parent=11 // pred_fallthru
          _
      $region12: #{_vgg_forward_impl.1} parent=5 // pred_fallthru
        _
      %p379 = scmp.lt.s32.totalorder %s24, 2
      // Predicated region
      $region61: #{_vgg_forward_impl.1} parent=5 // pred_check
        %p380 = pneg %p379
      $region62: #{_vgg_forward_impl.1} parent=5 // pred_check_branch
        %382 = sbr.rel (%p380) target = $region64
      $region63: #{_vgg_forward_impl.1} parent=5 // pred_region
        // Predicated region
        $region65: #{_vgg_forward_impl.1} parent=63 // pred_check
          %p383 = pneg %p44
        $region66: #{_vgg_forward_impl.1} parent=63 // pred_check_branch
          %385 = sbr.rel (%p383) target = $region68
        $region67: #{_vgg_forward_impl.1} parent=63 // pred_region
          %p386 = scmp.lt.s32.totalorder %s24, 1
          %s387 = scalar_select %p386, %s24, 1
          %s388 = smul.addr %s387, 8
          %s389 = smul.addr %s388, 8
          %s390 = scalar_lea.vmem %s0, %s389
        $region68: #{_vgg_forward_impl.1} parent=63 // pred_fallthru
          _
      $region64: #{_vgg_forward_impl.1} parent=5 // pred_fallthru
        _
      %p391 = scmp.le.s32.totalorder 1, %s24
      %p392 = scmp.lt.s32.totalorder %s24, 3
      %p393 = pnand %p391, %p392
      %p394 = pneg %p393
      // Predicated region
      $region69: #{_vgg_forward_impl.1} parent=5 // pred_check
        _
      $region70: #{_vgg_forward_impl.1} parent=5 // pred_check_branch
        %396 = sbr.rel (%p393) target = $region72
      $region71: #{_vgg_forward_impl.1} parent=5 // pred_region
        %s397 = ssub.s32 %s24, 1
        %p398 = scmp.lt.s32.totalorder %s29, 1
        %s399 = scalar_select %p398, %s29, 1
        %s400 = smul.addr %s399, 8
        %s401 = smul.addr %s400, 8
        %s402 = scalar_lea.vmem %s0, %s401
        %p403 = pneg %p50
        %p404 = pneg %p47
        %p405 = pneg %p71
        %p406 = pneg %p68
        %p407 = pneg %p92
        %p408 = pneg %p89
        %p409 = pneg %p113
        %p410 = pneg %p110
        %p411 = pneg %p134
        %p412 = pneg %p131
        %p413 = pneg %p155
        %p414 = pneg %p152
        %p415 = pneg %p176
        %p416 = pneg %p173
        %p417 = pneg %p197
        %p418 = pneg %p194
        %p419 = pneg %p218
        %p420 = pneg %p215
        %p421 = pneg %p239
        %p422 = pneg %p236
        %p423 = pneg %p260
        %p424 = pneg %p257
        %p425 = pneg %p281
        %p426 = pneg %p278
        %p427 = pneg %p302
        %p428 = pneg %p299
        %p429 = pneg %p328
        %p430 = pneg %p325
        %s431 = sand.u32 %s315, 1
        %s432 = scalar_lea.sflag [#allocation9], %s431
        %s433 = sand.u32 %s315, 1
        %s434 = scalar_lea.vmem [#allocation8], %s433
        %p435 = scmp.lt.s32.totalorder %s29, 1
        %s436 = scalar_select %p435, %s29, 1
        %s437 = smul.addr %s436, 8
        %s438 = smul.addr %s437, 8
        %s439 = scalar_lea.vmem %s0, %s438
        %vm440 = vcmask 31744
        %441 = vst.msk [vmem:[#allocation2] sm:$0xff] %vm440, 0.0
        %442 = vst.msk [vmem:[#allocation2 + $0x8] sm:$0xff] %vm440, 0.0
        %443 = vst.msk [vmem:[#allocation2 + $0x10] sm:$0xff] %vm440, 0.0
        %444 = vst.msk [vmem:[#allocation2 + $0x18] sm:$0xff] %vm440, 0.0
        %445 = vst.msk [vmem:[#allocation2 + $0x20] sm:$0xff] %vm440, 0.0
        %446 = vst.msk [vmem:[#allocation2 + $0x28] sm:$0xff] %vm440, 0.0
        %447 = vst.msk [vmem:[#allocation2 + $0x30] sm:$0xff] %vm440, 0.0
        %448 = vst.msk [vmem:[#allocation2 + $0x38] sm:$0xff] %vm440, 0.0
        %449 = vst.msk [vmem:[#allocation2 + $0x40] sm:$0xff] %vm440, 0.0
        %450 = vst.msk [vmem:[#allocation2 + $0x48] sm:$0xff] %vm440, 0.0
        %451 = vst.msk [vmem:[#allocation2 + $0x50] sm:$0xff] %vm440, 0.0
        %452 = vst.msk [vmem:[#allocation2 + $0x58] sm:$0xff] %vm440, 0.0
        %vm453 = vcmask 29696
        %454 = vst.msk [vmem:[#allocation2 + $0x60] sm:$0x3f] %vm453, 0.0
        %v455 = vld [vmem:[%s439] sm:$0xff]
        %456 = vst.msk [vmem:[#allocation2 + $0xb] sm:$0xff] %vm440, %v455
        %s457 = scalar_lea.vmem %s439, 8
        %v458 = vld [vmem:[%s457] sm:$0xff]
        %459 = vst.msk [vmem:[#allocation2 + $0x15] sm:$0xff] %vm440, %v458
        %s460 = scalar_lea.vmem %s439, 16
        %v461 = vld [vmem:[%s460] sm:$0xff]
        %462 = vst.msk [vmem:[#allocation2 + $0x1f] sm:$0xff] %vm440, %v461
        %s463 = scalar_lea.vmem %s439, 24
        %v464 = vld [vmem:[%s463] sm:$0xff]
        %465 = vst.msk [vmem:[#allocation2 + $0x29] sm:$0xff] %vm440, %v464
        %s466 = scalar_lea.vmem %s439, 32
        %v467 = vld [vmem:[%s466] sm:$0xff]
        %468 = vst.msk [vmem:[#allocation2 + $0x33] sm:$0xff] %vm440, %v467
        %s469 = scalar_lea.vmem %s439, 40
        %v470 = vld [vmem:[%s469] sm:$0xff]
        %471 = vst.msk [vmem:[#allocation2 + $0x3d] sm:$0xff] %vm440, %v470
        %s472 = scalar_lea.vmem %s439, 48
        %v473 = vld [vmem:[%s472] sm:$0xff]
        %474 = vst.msk [vmem:[#allocation2 + $0x47] sm:$0xff] %vm440, %v473
        %s475 = scalar_lea.vmem %s439, 56
        %v476 = vld [vmem:[%s475] sm:$0xff]
        %477 = vst.msk [vmem:[#allocation2 + $0x51] sm:$0xff] %vm440, %v476
        %v478 = vld [vmem:[#allocation2] sm:$0xff]
        %v479 = vld [vmem:[#allocation2 + $0x8] sm:$0xff]
        %v480 = vld [vmem:[#allocation2 + $0x10] sm:$0xff]
        %v481 = vld [vmem:[#allocation2 + $0x18] sm:$0xff]
        %v482 = vld [vmem:[#allocation2 + $0x20] sm:$0xff]
        %v483 = vld [vmem:[#allocation2 + $0x28] sm:$0xff]
        %v484 = vld [vmem:[#allocation2 + $0x30] sm:$0xff]
        %v485 = vld [vmem:[#allocation2 + $0x38] sm:$0xff]
        %v486 = vld [vmem:[#allocation2 + $0x40] sm:$0xff]
        %v487 = vld [vmem:[#allocation2 + $0x48] sm:$0xff]
        %v488 = vld [vmem:[%s1] sm:$0xf]
        %v489 = vld [vmem:[#allocation2 + $0x1] sm:$0xff]
        %v490 = vld [vmem:[#allocation2 + $0x9] sm:$0xff]
        %v491 = vld [vmem:[#allocation2 + $0x11] sm:$0xff]
        %v492 = vld [vmem:[#allocation2 + $0x19] sm:$0xff]
        %v493 = vld [vmem:[#allocation2 + $0x21] sm:$0xff]
        %v494 = vld [vmem:[#allocation2 + $0x29] sm:$0xff]
        %v495 = vld [vmem:[#allocation2 + $0x31] sm:$0xff]
        %v496 = vld [vmem:[#allocation2 + $0x39] sm:$0xff]
        %v497 = vld [vmem:[#allocation2 + $0x41] sm:$0xff]
        %v498 = vld [vmem:[#allocation2 + $0x49] sm:$0xff]
        %s499 = scalar_lea.vmem %s1, 4
        %v500 = vld [vmem:[%s499] sm:$0xf]
        %v502 = vsel %vm440, %v489, 0
        %v505 = vsel %vm440, %v490, 0
        %v508 = vsel %vm440, %v491, 0
        %v511 = vsel %vm440, %v492, 0
        %v514 = vsel %vm440, %v493, 0
        %v517 = vsel %vm440, %v494, 0
        %v520 = vsel %vm440, %v495, 0
        %v523 = vsel %vm440, %v496, 0
        %v526 = vsel %vm440, %v497, 0
        %v529 = vsel %vm440, %v498, 0
        %vm531 = vcmask 1043456
        %v533 = vsel %vm531, %v500, 0
        %535 = vmatprep.subr.mxu0 0.0
        %536 = vmatpush1.msra.mxu0 %v533
        %537 = vmatprep.subr.mxu0 0.0
        %538 = vmatpush1.msra.mxu0 0.0
        %539 = vmatprep.subr.mxu0 0.0
        %540 = vmatpush1.msra.mxu0 0.0
        %541 = vmatprep.subr.mxu0 0.0
        %542 = vmatpush1.msra.mxu0 0.0
        %543 = vmatprep.subr.mxu0 0.0
        %544 = vmatpush1.msra.mxu0 0.0
        %545 = vmatprep.subr.mxu0 0.0
        %546 = vmatpush1.msra.mxu0 0.0
        %547 = vmatprep.subr.mxu0 0.0
        %548 = vmatpush1.msra.mxu0 0.0
        %549 = vmatprep.subr.mxu0 0.0
        %550 = vmatpush1.msra.mxu0 0.0
        %551 = vmatprep.subr.mxu0 0.0
        %552 = vmatpush1.msra.mxu0 0.0
        %553 = vmatprep.subr.mxu0 0.0
        %554 = vmatpush1.msra.mxu0 0.0
        %555 = vmatprep.subr.mxu0 0.0
        %556 = vmatpush1.msra.mxu0 0.0
        %557 = vmatprep.subr.mxu0 0.0
        %558 = vmatpush1.msra.mxu0 0.0
        %559 = vmatprep.subr.mxu0 0.0
        %560 = vmatpush1.msra.mxu0 0.0
        %561 = vmatprep.subr.mxu0 0.0
        %562 = vmatpush1.msra.mxu0 0.0
        %563 = vmatprep.subr.mxu0 0.0
        %564 = vmatpush1.msra.mxu0 0.0
        %565 = vmatprep.subr.mxu0 0.0
        %566 = vmatpush1.msra.mxu0 0.0
        %567 = vmatprep.subr.mxu0 0.0
        %568 = vmatpush1.msra.mxu0 0.0
        %569 = vmatprep.subr.mxu0 0.0
        %570 = vmatpush1.msra.mxu0 0.0
        %571 = vmatprep.subr.mxu0 0.0
        %572 = vmatpush1.msra.mxu0 0.0
        %573 = vmatprep.subr.mxu0 0.0
        %574 = vmatpush1.msra.mxu0 0.0
        %575 = vmatprep.subr.mxu0 0.0
        %576 = vmatpush1.msra.mxu0 0.0
        %577 = vmatprep.subr.mxu0 0.0
        %578 = vmatpush1.msra.mxu0 0.0
        %579 = vmatprep.subr.mxu0 0.0
        %580 = vmatpush1.msra.mxu0 0.0
        %581 = vmatprep.subr.mxu0 0.0
        %582 = vmatpush1.msra.mxu0 0.0
        %583 = vmatprep.subr.mxu0 0.0
        %584 = vmatpush1.msra.mxu0 0.0
        %585 = vmatprep.subr.mxu0 0.0
        %586 = vmatpush1.msra.mxu0 0.0
        %587 = vmatprep.subr.mxu0 0.0
        %588 = vmatpush1.msra.mxu0 0.0
        %589 = vmatprep.subr.mxu0 0.0
        %590 = vmatpush1.msra.mxu0 0.0
        %591 = vmatprep.subr.mxu0 0.0
        %592 = vmatpush1.msra.mxu0 0.0
        %593 = vmatprep.subr.mxu0 0.0
        %594 = vmatpush1.msra.mxu0 0.0
        %595 = vmatprep.subr.mxu0 0.0
        %596 = vmatpush1.msra.mxu0 0.0
        %597 = vmatprep.subr.mxu0 0.0
        %598 = vmatpush1.msra.mxu0 0.0
        %599 = vmatprep.mubr.f32.mxu0 0.0
        %600 = vmatmul.mubr.f32.gmra.mrb[0].mxu0 %v502
        %v601 = vpop.f32.mrb[0].mxu0
        %v602 = vadd.f32 0.0, %v601
        %v603 = vpop.f32.mrb[0].mxu0
        %604 = vmatprep.mubr.f32.mxu0 0.0
        %605 = vmatmul.mubr.f32.gmra.mrb[0].mxu0 %v505
        %v606 = vpop.f32.mrb[0].mxu0
        %v607 = vadd.f32 0.0, %v606
        %v608 = vpop.f32.mrb[0].mxu0
        %609 = vmatprep.mubr.f32.mxu0 0.0
        %610 = vmatmul.mubr.f32.gmra.mrb[0].mxu0 %v508
        %v611 = vpop.f32.mrb[0].mxu0
        %v612 = vadd.f32 0.0, %v611
        %v613 = vpop.f32.mrb[0].mxu0
        %614 = vmatprep.mubr.f32.mxu0 0.0
        %615 = vmatmul.mubr.f32.gmra.mrb[0].mxu0 %v511
        %v616 = vpop.f32.mrb[0].mxu0
        %v617 = vadd.f32 0.0, %v616
        %v618 = vpop.f32.mrb[0].mxu0
        %619 = vmatprep.mubr.f32.mxu0 0.0
        %620 = vmatmul.mubr.f32.gmra.mrb[0].mxu0 %v514
        %v621 = vpop.f32.mrb[0].mxu0
        %v622 = vadd.f32 0.0, %v621
        %v623 = vpop.f32.mrb[0].mxu0
        %624 = vmatprep.mubr.f32.mxu0 0.0
        %625 = vmatmul.mubr.f32.gmra.mrb[0].mxu0 %v517
        %v626 = vpop.f32.mrb[0].mxu0
        %v627 = vadd.f32 0.0, %v626
        %v628 = vpop.f32.mrb[0].mxu0
        %629 = vmatprep.mubr.f32.mxu0 0.0
        %630 = vmatmul.mubr.f32.gmra.mrb[0].mxu0 %v520
        %v631 = vpop.f32.mrb[0].mxu0
        %v632 = vadd.f32 0.0, %v631
        %v633 = vpop.f32.mrb[0].mxu0
        %634 = vmatprep.mubr.f32.mxu0 0.0
        %635 = vmatmul.mubr.f32.gmra.mrb[0].mxu0 %v523
        %v636 = vpop.f32.mrb[0].mxu0
        %v637 = vadd.f32 0.0, %v636
        %v638 = vpop.f32.mrb[0].mxu0
        %639 = vmatprep.mubr.f32.mxu0 0.0
        %640 = vmatmul.mubr.f32.gmra.mrb[0].mxu0 %v526
        %v641 = vpop.f32.mrb[0].mxu0
        %v642 = vadd.f32 0.0, %v641
        %v643 = vpop.f32.mrb[0].mxu0
        %644 = vmatprep.mubr.f32.mxu0 0.0
        %645 = vmatmul.mubr.f32.gmra.mrb[0].mxu0 %v529
        %v646 = vpop.f32.mrb[0].mxu0
        %v647 = vadd.f32 0.0, %v646
        %v648 = vpop.f32.mrb[0].mxu0
        %649 = vdwg.mxu0
        %v651 = vsel %vm440, %v478, 0
        %v654 = vsel %vm440, %v479, 0
        %v657 = vsel %vm440, %v480, 0
        %v660 = vsel %vm440, %v481, 0
        %v663 = vsel %vm440, %v482, 0
        %v666 = vsel %vm440, %v483, 0
        %v669 = vsel %vm440, %v484, 0
        %v672 = vsel %vm440, %v485, 0
        %v675 = vsel %vm440, %v486, 0
        %v678 = vsel %vm440, %v487, 0
        %v681 = vsel %vm531, %v488, 0
        %683 = vmatprep.subr.mxu0 0.0
        %684 = vmatpush1.msra.mxu0 %v681
        %685 = vmatprep.subr.mxu0 0.0
        %686 = vmatpush1.msra.mxu0 0.0
        %687 = vmatprep.subr.mxu0 0.0
        %688 = vmatpush1.msra.mxu0 0.0
        %689 = vmatprep.subr.mxu0 0.0
        %690 = vmatpush1.msra.mxu0 0.0
        %691 = vmatprep.subr.mxu0 0.0
        %692 = vmatpush1.msra.mxu0 0.0
        %693 = vmatprep.subr.mxu0 0.0
        %694 = vmatpush1.msra.mxu0 0.0
        %695 = vmatprep.subr.mxu0 0.0
        %696 = vmatpush1.msra.mxu0 0.0
        %697 = vmatprep.subr.mxu0 0.0
        %698 = vmatpush1.msra.mxu0 0.0
        %699 = vmatprep.subr.mxu0 0.0
        %700 = vmatpush1.msra.mxu0 0.0
        %701 = vmatprep.subr.mxu0 0.0
        %702 = vmatpush1.msra.mxu0 0.0
        %703 = vmatprep.subr.mxu0 0.0
        %704 = vmatpush1.msra.mxu0 0.0
        %705 = vmatprep.subr.mxu0 0.0
        %706 = vmatpush1.msra.mxu0 0.0
        %707 = vmatprep.subr.mxu0 0.0
        %708 = vmatpush1.msra.mxu0 0.0
        %709 = vmatprep.subr.mxu0 0.0
        %710 = vmatpush1.msra.mxu0 0.0
        %711 = vmatprep.subr.mxu0 0.0
        %712 = vmatpush1.msra.mxu0 0.0
        %713 = vmatprep.subr.mxu0 0.0
        %714 = vmatpush1.msra.mxu0 0.0
        %715 = vmatprep.subr.mxu0 0.0
        %716 = vmatpush1.msra.mxu0 0.0
        %717 = vmatprep.subr.mxu0 0.0
        %718 = vmatpush1.msra.mxu0 0.0
        %719 = vmatprep.subr.mxu0 0.0
        %720 = vmatpush1.msra.mxu0 0.0
        %721 = vmatprep.subr.mxu0 0.0
        %722 = vmatpush1.msra.mxu0 0.0
        %723 = vmatprep.subr.mxu0 0.0
        %724 = vmatpush1.msra.mxu0 0.0
        %725 = vmatprep.subr.mxu0 0.0
        %726 = vmatpush1.msra.mxu0 0.0
        %727 = vmatprep.subr.mxu0 0.0
        %728 = vmatpush1.msra.mxu0 0.0
        %729 = vmatprep.subr.mxu0 0.0
        %730 = vmatpush1.msra.mxu0 0.0
        %731 = vmatprep.subr.mxu0 0.0
        %732 = vmatpush1.msra.mxu0 0.0
        %733 = vmatprep.subr.mxu0 0.0
        %734 = vmatpush1.msra.mxu0 0.0
        %735 = vmatprep.subr.mxu0 0.0
        %736 = vmatpush1.msra.mxu0 0.0
        %737 = vmatprep.subr.mxu0 0.0
        %738 = vmatpush1.msra.mxu0 0.0
        %739 = vmatprep.subr.mxu0 0.0
        %740 = vmatpush1.msra.mxu0 0.0
        %741 = vmatprep.subr.mxu0 0.0
        %742 = vmatpush1.msra.mxu0 0.0
        %743 = vmatprep.subr.mxu0 0.0
        %744 = vmatpush1.msra.mxu0 0.0
        %745 = vmatprep.subr.mxu0 0.0
        %746 = vmatpush1.msra.mxu0 0.0
        %747 = vmatprep.mubr.f32.mxu0 0.0
        %748 = vmatmul.mubr.f32.gmra.mrb[0].mxu0 %v651
        %v749 = vpop.f32.mrb[0].mxu0
        %v750 = vadd.f32 %v602, %v749
        %v751 = vpop.f32.mrb[0].mxu0
        %752 = vmatprep.mubr.f32.mxu0 0.0
        %753 = vmatmul.mubr.f32.gmra.mrb[0].mxu0 %v654
        %v754 = vpop.f32.mrb[0].mxu0
        %v755 = vadd.f32 %v607, %v754
        %v756 = vpop.f32.mrb[0].mxu0
        %757 = vmatprep.mubr.f32.mxu0 0.0
        %758 = vmatmul.mubr.f32.gmra.mrb[0].mxu0 %v657
        %v759 = vpop.f32.mrb[0].mxu0
        %v760 = vadd.f32 %v612, %v759
        %v761 = vpop.f32.mrb[0].mxu0
        %762 = vmatprep.mubr.f32.mxu0 0.0
        %763 = vmatmul.mubr.f32.gmra.mrb[0].mxu0 %v660
        %v764 = vpop.f32.mrb[0].mxu0
        %v765 = vadd.f32 %v617, %v764
        %v766 = vpop.f32.mrb[0].mxu0
        %767 = vmatprep.mubr.f32.mxu0 0.0
        %768 = vmatmul.mubr.f32.gmra.mrb[0].mxu0 %v663
        %v769 = vpop.f32.mrb[0].mxu0
        %v770 = vadd.f32 %v622, %v769
        %v771 = vpop.f32.mrb[0].mxu0
        %772 = vmatprep.mubr.f32.mxu0 0.0
        %773 = vmatmul.mubr.f32.gmra.mrb[0].mxu0 %v666
        %v774 = vpop.f32.mrb[0].mxu0
        %v775 = vadd.f32 %v627, %v774
        %v776 = vpop.f32.mrb[0].mxu0
        %777 = vmatprep.mubr.f32.mxu0 0.0
        %778 = vmatmul.mubr.f32.gmra.mrb[0].mxu0 %v669
        %v779 = vpop.f32.mrb[0].mxu0
        %v780 = vadd.f32 %v632, %v779
        %v781 = vpop.f32.mrb[0].mxu0
        %782 = vmatprep.mubr.f32.mxu0 0.0
        %783 = vmatmul.mubr.f32.gmra.mrb[0].mxu0 %v672
        %v784 = vpop.f32.mrb[0].mxu0
        %v785 = vadd.f32 %v637, %v784
        %v786 = vpop.f32.mrb[0].mxu0
        %787 = vmatprep.mubr.f32.mxu0 0.0
        %788 = vmatmul.mubr.f32.gmra.mrb[0].mxu0 %v675
        %v789 = vpop.f32.mrb[0].mxu0
        %v790 = vadd.f32 %v642, %v789
        %v791 = vpop.f32.mrb[0].mxu0
        %792 = vmatprep.mubr.f32.mxu0 0.0
        %793 = vmatmul.mubr.f32.gmra.mrb[0].mxu0 %v678
        %v794 = vpop.f32.mrb[0].mxu0
        %v795 = vadd.f32 %v647, %v794
        %v796 = vpop.f32.mrb[0].mxu0
        %797 = vdwg.mxu0
        %v798 = vld [vmem:[#allocation2 + $0x2] sm:$0xff]
        %v799 = vld [vmem:[#allocation2 + $0xa] sm:$0xff]
        %v800 = vld [vmem:[#allocation2 + $0x12] sm:$0xff]
        %v801 = vld [vmem:[#allocation2 + $0x1a] sm:$0xff]
        %v802 = vld [vmem:[#allocation2 + $0x22] sm:$0xff]
        %v803 = vld [vmem:[#allocation2 + $0x2a] sm:$0xff]
        %v804 = vld [vmem:[#allocation2 + $0x32] sm:$0xff]
        %v805 = vld [vmem:[#allocation2 + $0x3a] sm:$0xff]
        %v806 = vld [vmem:[#allocation2 + $0x42] sm:$0xff]
        %v807 = vld [vmem:[#allocation2 + $0x4a] sm:$0xff]
        %s808 = scalar_lea.vmem %s1, 8
        %v809 = vld [vmem:[%s808] sm:$0xf]
        %v811 = vsel %vm440, %v798, 0
        %v814 = vsel %vm440, %v799, 0
        %v817 = vsel %vm440, %v800, 0
        %v820 = vsel %vm440, %v801, 0
        %v823 = vsel %vm440, %v802, 0
        %v826 = vsel %vm440, %v803, 0
        %v829 = vsel %vm440, %v804, 0
        %v832 = vsel %vm440, %v805, 0
        %v835 = vsel %vm440, %v806, 0
        %v838 = vsel %vm440, %v807, 0
        %v841 = vsel %vm531, %v809, 0
        %843 = vmatprep.subr.mxu0 0.0
        %844 = vmatpush1.msra.mxu0 %v841
        %845 = vmatprep.subr.mxu0 0.0
        %846 = vmatpush1.msra.mxu0 0.0
        %847 = vmatprep.subr.mxu0 0.0
        %848 = vmatpush1.msra.mxu0 0.0
        %849 = vmatprep.subr.mxu0 0.0
        %850 = vmatpush1.msra.mxu0 0.0
        %851 = vmatprep.subr.mxu0 0.0
        %852 = vmatpush1.msra.mxu0 0.0
        %853 = vmatprep.subr.mxu0 0.0
        %854 = vmatpush1.msra.mxu0 0.0
        %855 = vmatprep.subr.mxu0 0.0
        %856 = vmatpush1.msra.mxu0 0.0
        %857 = vmatprep.subr.mxu0 0.0
        %858 = vmatpush1.msra.mxu0 0.0
        %859 = vmatprep.subr.mxu0 0.0
        %860 = vmatpush1.msra.mxu0 0.0
        %861 = vmatprep.subr.mxu0 0.0
        %862 = vmatpush1.msra.mxu0 0.0
        %863 = vmatprep.subr.mxu0 0.0
        %864 = vmatpush1.msra.mxu0 0.0
        %865 = vmatprep.subr.mxu0 0.0
        %866 = vmatpush1.msra.mxu0 0.0
        %867 = vmatprep.subr.mxu0 0.0
        %868 = vmatpush1.msra.mxu0 0.0
        %869 = vmatprep.subr.mxu0 0.0
        %870 = vmatpush1.msra.mxu0 0.0
        %871 = vmatprep.subr.mxu0 0.0
        %872 = vmatpush1.msra.mxu0 0.0
        %873 = vmatprep.subr.mxu0 0.0
        %874 = vmatpush1.msra.mxu0 0.0
        %875 = vmatprep.subr.mxu0 0.0
        %876 = vmatpush1.msra.mxu0 0.0
        %877 = vmatprep.subr.mxu0 0.0
        %878 = vmatpush1.msra.mxu0 0.0
        %879 = vmatprep.subr.mxu0 0.0
        %880 = vmatpush1.msra.mxu0 0.0
        %881 = vmatprep.subr.mxu0 0.0
        %882 = vmatpush1.msra.mxu0 0.0
        %883 = vmatprep.subr.mxu0 0.0
        %884 = vmatpush1.msra.mxu0 0.0
        %885 = vmatprep.subr.mxu0 0.0
        %886 = vmatpush1.msra.mxu0 0.0
        %887 = vmatprep.subr.mxu0 0.0
        %888 = vmatpush1.msra.mxu0 0.0
        %889 = vmatprep.subr.mxu0 0.0
        %890 = vmatpush1.msra.mxu0 0.0
        %891 = vmatprep.subr.mxu0 0.0
        %892 = vmatpush1.msra.mxu0 0.0
        %893 = vmatprep.subr.mxu0 0.0
        %894 = vmatpush1.msra.mxu0 0.0
        %895 = vmatprep.subr.mxu0 0.0
        %896 = vmatpush1.msra.mxu0 0.0
        %897 = vmatprep.subr.mxu0 0.0
        %898 = vmatpush1.msra.mxu0 0.0
        %899 = vmatprep.subr.mxu0 0.0
        %900 = vmatpush1.msra.mxu0 0.0
        %901 = vmatprep.subr.mxu0 0.0
        %902 = vmatpush1.msra.mxu0 0.0
        %903 = vmatprep.subr.mxu0 0.0
        %904 = vmatpush1.msra.mxu0 0.0
        %905 = vmatprep.subr.mxu0 0.0
        %906 = vmatpush1.msra.mxu0 0.0
        %907 = vmatprep.mubr.f32.mxu0 0.0
        %908 = vmatmul.mubr.f32.gmra.mrb[0].mxu0 %v811
        %v909 = vpop.f32.mrb[0].mxu0
        %v910 = vadd.f32 0.0, %v909
        %v911 = vpop.f32.mrb[0].mxu0
        %912 = vmatprep.mubr.f32.mxu0 0.0
        %913 = vmatmul.mubr.f32.gmra.mrb[0].mxu0 %v814
        %v914 = vpop.f32.mrb[0].mxu0
        %v915 = vadd.f32 0.0, %v914
        %v916 = vpop.f32.mrb[0].mxu0
        %917 = vmatprep.mubr.f32.mxu0 0.0
        %918 = vmatmul.mubr.f32.gmra.mrb[0].mxu0 %v817
        %v919 = vpop.f32.mrb[0].mxu0
        %v920 = vadd.f32 0.0, %v919
        %v921 = vpop.f32.mrb[0].mxu0
        %922 = vmatprep.mubr.f32.mxu0 0.0
        %923 = vmatmul.mubr.f32.gmra.mrb[0].mxu0 %v820
        %v924 = vpop.f32.mrb[0].mxu0
        %v925 = vadd.f32 0.0, %v924
        %v926 = vpop.f32.mrb[0].mxu0
        %927 = vmatprep.mubr.f32.mxu0 0.0
        %928 = vmatmul.mubr.f32.gmra.mrb[0].mxu0 %v823
        %v929 = vpop.f32.mrb[0].mxu0
        %v930 = vadd.f32 0.0, %v929
        %v931 = vpop.f32.mrb[0].mxu0
        %932 = vmatprep.mubr.f32.mxu0 0.0
        %933 = vmatmul.mubr.f32.gmra.mrb[0].mxu0 %v826
        %v934 = vpop.f32.mrb[0].mxu0
        %v935 = vadd.f32 0.0, %v934
        %v936 = vpop.f32.mrb[0].mxu0
        %937 = vmatprep.mubr.f32.mxu0 0.0
        %938 = vmatmul.mubr.f32.gmra.mrb[0].mxu0 %v829
        %v939 = vpop.f32.mrb[0].mxu0
        %v940 = vadd.f32 0.0, %v939
        %v941 = vpop.f32.mrb[0].mxu0
        %942 = vmatprep.mubr.f32.mxu0 0.0
        %943 = vmatmul.mubr.f32.gmra.mrb[0].mxu0 %v832
        %v944 = vpop.f32.mrb[0].mxu0
        %v945 = vadd.f32 0.0, %v944
        %v946 = vpop.f32.mrb[0].mxu0
        %947 = vmatprep.mubr.f32.mxu0 0.0
        %948 = vmatmul.mubr.f32.gmra.mrb[0].mxu0 %v835
        %v949 = vpop.f32.mrb[0].mxu0
        %v950 = vadd.f32 0.0, %v949
        %v951 = vpop.f32.mrb[0].mxu0
        %952 = vmatprep.mubr.f32.mxu0 0.0
        %953 = vmatmul.mubr.f32.gmra.mrb[0].mxu0 %v838
        %v954 = vpop.f32.mrb[0].mxu0
        %v955 = vadd.f32 0.0, %v954
        %v956 = vpop.f32.mrb[0].mxu0
        %957 = vdwg.mxu0
        %v958 = vadd.f32 %v750, %v910
        %v959 = vadd.f32 %v755, %v915
        %v960 = vadd.f32 %v760, %v920
        %v961 = vadd.f32 %v765, %v925
        %v962 = vadd.f32 %v770, %v930
        %v963 = vadd.f32 %v775, %v935
        %v964 = vadd.f32 %v780, %v940
        %v965 = vadd.f32 %v785, %v945
        %v966 = vadd.f32 %v790, %v950
        %v967 = vadd.f32 %v795, %v955
        %v968 = vld [vmem:[#allocation2 + $0xa] sm:$0xff]
        %v969 = vld [vmem:[#allocation2 + $0x12] sm:$0xff]
        %v970 = vld [vmem:[#allocation2 + $0x1a] sm:$0xff]
        %v971 = vld [vmem:[#allocation2 + $0x22] sm:$0xff]
        %v972 = vld [vmem:[#allocation2 + $0x2a] sm:$0xff]
        %v973 = vld [vmem:[#allocation2 + $0x32] sm:$0xff]
        %v974 = vld [vmem:[#allocation2 + $0x3a] sm:$0xff]
        %v975 = vld [vmem:[#allocation2 + $0x42] sm:$0xff]
        %v976 = vld [vmem:[#allocation2 + $0x4a] sm:$0xff]
        %v977 = vld [vmem:[#allocation2 + $0x52] sm:$0xff]
        %s978 = scalar_lea.vmem %s1, 12
        %v979 = vld [vmem:[%s978] sm:$0xf]
        %v981 = vsel %vm440, %v968, 0
        %v984 = vsel %vm440, %v969, 0
        %v987 = vsel %vm440, %v970, 0
        %v990 = vsel %vm440, %v971, 0
        %v993 = vsel %vm440, %v972, 0
        %v996 = vsel %vm440, %v973, 0
        %v999 = vsel %vm440, %v974, 0
        %v1002 = vsel %vm440, %v975, 0
        %v1005 = vsel %vm440, %v976, 0
        %v1008 = vsel %vm440, %v977, 0
        %v1011 = vsel %vm531, %v979, 0
        %1013 = vmatprep.subr.mxu0 0.0
        %1014 = vmatpush1.msra.mxu0 %v1011
        %1015 = vmatprep.subr.mxu0 0.0
        %1016 = vmatpush1.msra.mxu0 0.0
        %1017 = vmatprep.subr.mxu0 0.0
        %1018 = vmatpush1.msra.mxu0 0.0
        %1019 = vmatprep.subr.mxu0 0.0
        %1020 = vmatpush1.msra.mxu0 0.0
        %1021 = vmatprep.subr.mxu0 0.0
        %1022 = vmatpush1.msra.mxu0 0.0
        %1023 = vmatprep.subr.mxu0 0.0
        %1024 = vmatpush1.msra.mxu0 0.0
        %1025 = vmatprep.subr.mxu0 0.0
        %1026 = vmatpush1.msra.mxu0 0.0
        %1027 = vmatprep.subr.mxu0 0.0
        %1028 = vmatpush1.msra.mxu0 0.0
        %1029 = vmatprep.subr.mxu0 0.0
        %1030 = vmatpush1.msra.mxu0 0.0
        %1031 = vmatprep.subr.mxu0 0.0
        %1032 = vmatpush1.msra.mxu0 0.0
        %1033 = vmatprep.subr.mxu0 0.0
        %1034 = vmatpush1.msra.mxu0 0.0
        %1035 = vmatprep.subr.mxu0 0.0
        %1036 = vmatpush1.msra.mxu0 0.0
        %1037 = vmatprep.subr.mxu0 0.0
        %1038 = vmatpush1.msra.mxu0 0.0
        %1039 = vmatprep.subr.mxu0 0.0
        %1040 = vmatpush1.msra.mxu0 0.0
        %1041 = vmatprep.subr.mxu0 0.0
        %1042 = vmatpush1.msra.mxu0 0.0
        %1043 = vmatprep.subr.mxu0 0.0
        %1044 = vmatpush1.msra.mxu0 0.0
        %1045 = vmatprep.subr.mxu0 0.0
        %1046 = vmatpush1.msra.mxu0 0.0
        %1047 = vmatprep.subr.mxu0 0.0
        %1048 = vmatpush1.msra.mxu0 0.0
        %1049 = vmatprep.subr.mxu0 0.0
        %1050 = vmatpush1.msra.mxu0 0.0
        %1051 = vmatprep.subr.mxu0 0.0
        %1052 = vmatpush1.msra.mxu0 0.0
        %1053 = vmatprep.subr.mxu0 0.0
        %1054 = vmatpush1.msra.mxu0 0.0
        %1055 = vmatprep.subr.mxu0 0.0
        %1056 = vmatpush1.msra.mxu0 0.0
        %1057 = vmatprep.subr.mxu0 0.0
        %1058 = vmatpush1.msra.mxu0 0.0
        %1059 = vmatprep.subr.mxu0 0.0
        %1060 = vmatpush1.msra.mxu0 0.0
        %1061 = vmatprep.subr.mxu0 0.0
        %1062 = vmatpush1.msra.mxu0 0.0
        %1063 = vmatprep.subr.mxu0 0.0
        %1064 = vmatpush1.msra.mxu0 0.0
        %1065 = vmatprep.subr.mxu0 0.0
        %1066 = vmatpush1.msra.mxu0 0.0
        %1067 = vmatprep.subr.mxu0 0.0
        %1068 = vmatpush1.msra.mxu0 0.0
        %1069 = vmatprep.subr.mxu0 0.0
        %1070 = vmatpush1.msra.mxu0 0.0
        %1071 = vmatprep.subr.mxu0 0.0
        %1072 = vmatpush1.msra.mxu0 0.0
        %1073 = vmatprep.subr.mxu0 0.0
        %1074 = vmatpush1.msra.mxu0 0.0
        %1075 = vmatprep.subr.mxu0 0.0
        %1076 = vmatpush1.msra.mxu0 0.0
        %1077 = vmatprep.mubr.f32.mxu0 0.0
        %1078 = vmatmul.mubr.f32.gmra.mrb[0].mxu0 %v981
        %v1079 = vpop.f32.mrb[0].mxu0
        %v1080 = vadd.f32 0.0, %v1079
        %v1081 = vpop.f32.mrb[0].mxu0
        %1082 = vmatprep.mubr.f32.mxu0 0.0
        %1083 = vmatmul.mubr.f32.gmra.mrb[0].mxu0 %v984
        %v1084 = vpop.f32.mrb[0].mxu0
        %v1085 = vadd.f32 0.0, %v1084
        %v1086 = vpop.f32.mrb[0].mxu0
        %1087 = vmatprep.mubr.f32.mxu0 0.0
        %1088 = vmatmul.mubr.f32.gmra.mrb[0].mxu0 %v987
        %v1089 = vpop.f32.mrb[0].mxu0
        %v1090 = vadd.f32 0.0, %v1089
        %v1091 = vpop.f32.mrb[0].mxu0
        %1092 = vmatprep.mubr.f32.mxu0 0.0
        %1093 = vmatmul.mubr.f32.gmra.mrb[0].mxu0 %v990
        %v1094 = vpop.f32.mrb[0].mxu0
        %v1095 = vadd.f32 0.0, %v1094
        %v1096 = vpop.f32.mrb[0].mxu0
        %1097 = vmatprep.mubr.f32.mxu0 0.0
        %1098 = vmatmul.mubr.f32.gmra.mrb[0].mxu0 %v993
        %v1099 = vpop.f32.mrb[0].mxu0
        %v1100 = vadd.f32 0.0, %v1099
        %v1101 = vpop.f32.mrb[0].mxu0
        %1102 = vmatprep.mubr.f32.mxu0 0.0
        %1103 = vmatmul.mubr.f32.gmra.mrb[0].mxu0 %v996
        %v1104 = vpop.f32.mrb[0].mxu0
        %v1105 = vadd.f32 0.0, %v1104
        %v1106 = vpop.f32.mrb[0].mxu0
        %1107 = vmatprep.mubr.f32.mxu0 0.0
        %1108 = vmatmul.mubr.f32.gmra.mrb[0].mxu0 %v999
        %v1109 = vpop.f32.mrb[0].mxu0
        %v1110 = vadd.f32 0.0, %v1109
        %v1111 = vpop.f32.mrb[0].mxu0
        %1112 = vmatprep.mubr.f32.mxu0 0.0
        %1113 = vmatmul.mubr.f32.gmra.mrb[0].mxu0 %v1002
        %v1114 = vpop.f32.mrb[0].mxu0
        %v1115 = vadd.f32 0.0, %v1114
        %v1116 = vpop.f32.mrb[0].mxu0
        %1117 = vmatprep.mubr.f32.mxu0 0.0
        %1118 = vmatmul.mubr.f32.gmra.mrb[0].mxu0 %v1005
        %v1119 = vpop.f32.mrb[0].mxu0
        %v1120 = vadd.f32 0.0, %v1119
        %v1121 = vpop.f32.mrb[0].mxu0
        %1122 = vmatprep.mubr.f32.mxu0 0.0
        %1123 = vmatmul.mubr.f32.gmra.mrb[0].mxu0 %v1008
        %v1124 = vpop.f32.mrb[0].mxu0
        %v1125 = vadd.f32 0.0, %v1124
        %v1126 = vpop.f32.mrb[0].mxu0
        %1127 = vdwg.mxu0
        %v1128 = vadd.f32 %v958, %v1080
        %v1129 = vadd.f32 %v959, %v1085
        %v1130 = vadd.f32 %v960, %v1090
        %v1131 = vadd.f32 %v961, %v1095
        %v1132 = vadd.f32 %v962, %v1100
        %v1133 = vadd.f32 %v963, %v1105
        %v1134 = vadd.f32 %v964, %v1110
        %v1135 = vadd.f32 %v965, %v1115
        %v1136 = vadd.f32 %v966, %v1120
        %v1137 = vadd.f32 %v967, %v1125
        %v1138 = vld [vmem:[#allocation2 + $0xb] sm:$0xff]
        %v1139 = vld [vmem:[#allocation2 + $0x13] sm:$0xff]
        %v1140 = vld [vmem:[#allocation2 + $0x1b] sm:$0xff]
        %v1141 = vld [vmem:[#allocation2 + $0x23] sm:$0xff]
        %v1142 = vld [vmem:[#allocation2 + $0x2b] sm:$0xff]
        %v1143 = vld [vmem:[#allocation2 + $0x33] sm:$0xff]
        %v1144 = vld [vmem:[#allocation2 + $0x3b] sm:$0xff]
        %v1145 = vld [vmem:[#allocation2 + $0x43] sm:$0xff]
        %v1146 = vld [vmem:[#allocation2 + $0x4b] sm:$0xff]
        %v1147 = vld [vmem:[#allocation2 + $0x53] sm:$0xff]
        %s1148 = scalar_lea.vmem %s1, 16
        %v1149 = vld [vmem:[%s1148] sm:$0xf]
        %v1151 = vsel %vm440, %v1138, 0
        %v1154 = vsel %vm440, %v1139, 0
        %v1157 = vsel %vm440, %v1140, 0
        %v1160 = vsel %vm440, %v1141, 0
        %v1163 = vsel %vm440, %v1142, 0
        %v1166 = vsel %vm440, %v1143, 0
        %v1169 = vsel %vm440, %v1144, 0
        %v1172 = vsel %vm440, %v1145, 0
        %v1175 = vsel %vm440, %v1146, 0
        %v1178 = vsel %vm440, %v1147, 0
        %v1181 = vsel %vm531, %v1149, 0
        %1183 = vmatprep.subr.mxu0 0.0
        %1184 = vmatpush1.msra.mxu0 %v1181
        %1185 = vmatprep.subr.mxu0 0.0
        %1186 = vmatpush1.msra.mxu0 0.0
        %1187 = vmatprep.subr.mxu0 0.0
        %1188 = vmatpush1.msra.mxu0 0.0
        %1189 = vmatprep.subr.mxu0 0.0
        %1190 = vmatpush1.msra.mxu0 0.0
        %1191 = vmatprep.subr.mxu0 0.0
        %1192 = vmatpush1.msra.mxu0 0.0
        %1193 = vmatprep.subr.mxu0 0.0
        %1194 = vmatpush1.msra.mxu0 0.0
        %1195 = vmatprep.subr.mxu0 0.0
        %1196 = vmatpush1.msra.mxu0 0.0
        %1197 = vmatprep.subr.mxu0 0.0
        %1198 = vmatpush1.msra.mxu0 0.0
        %1199 = vmatprep.subr.mxu0 0.0
        %1200 = vmatpush1.msra.mxu0 0.0
        %1201 = vmatprep.subr.mxu0 0.0
        %1202 = vmatpush1.msra.mxu0 0.0
        %1203 = vmatprep.subr.mxu0 0.0
        %1204 = vmatpush1.msra.mxu0 0.0
        %1205 = vmatprep.subr.mxu0 0.0
        %1206 = vmatpush1.msra.mxu0 0.0
        %1207 = vmatprep.subr.mxu0 0.0
        %1208 = vmatpush1.msra.mxu0 0.0
        %1209 = vmatprep.subr.mxu0 0.0
        %1210 = vmatpush1.msra.mxu0 0.0
        %1211 = vmatprep.subr.mxu0 0.0
        %1212 = vmatpush1.msra.mxu0 0.0
        %1213 = vmatprep.subr.mxu0 0.0
        %1214 = vmatpush1.msra.mxu0 0.0
        %1215 = vmatprep.subr.mxu0 0.0
        %1216 = vmatpush1.msra.mxu0 0.0
        %1217 = vmatprep.subr.mxu0 0.0
        %1218 = vmatpush1.msra.mxu0 0.0
        %1219 = vmatprep.subr.mxu0 0.0
        %1220 = vmatpush1.msra.mxu0 0.0
        %1221 = vmatprep.subr.mxu0 0.0
        %1222 = vmatpush1.msra.mxu0 0.0
        %1223 = vmatprep.subr.mxu0 0.0
        %1224 = vmatpush1.msra.mxu0 0.0
        %1225 = vmatprep.subr.mxu0 0.0
        %1226 = vmatpush1.msra.mxu0 0.0
        %1227 = vmatprep.subr.mxu0 0.0
        %1228 = vmatpush1.msra.mxu0 0.0
        %1229 = vmatprep.subr.mxu0 0.0
        %1230 = vmatpush1.msra.mxu0 0.0
        %1231 = vmatprep.subr.mxu0 0.0
        %1232 = vmatpush1.msra.mxu0 0.0
        %1233 = vmatprep.subr.mxu0 0.0
        %1234 = vmatpush1.msra.mxu0 0.0
        %1235 = vmatprep.subr.mxu0 0.0
        %1236 = vmatpush1.msra.mxu0 0.0
        %1237 = vmatprep.subr.mxu0 0.0
        %1238 = vmatpush1.msra.mxu0 0.0
        %1239 = vmatprep.subr.mxu0 0.0
        %1240 = vmatpush1.msra.mxu0 0.0
        %1241 = vmatprep.subr.mxu0 0.0
        %1242 = vmatpush1.msra.mxu0 0.0
        %1243 = vmatprep.subr.mxu0 0.0
        %1244 = vmatpush1.msra.mxu0 0.0
        %1245 = vmatprep.subr.mxu0 0.0
        %1246 = vmatpush1.msra.mxu0 0.0
        %1247 = vmatprep.mubr.f32.mxu0 0.0
        %1248 = vmatmul.mubr.f32.gmra.mrb[0].mxu0 %v1151
        %v1249 = vpop.f32.mrb[0].mxu0
        %v1250 = vadd.f32 0.0, %v1249
        %v1251 = vpop.f32.mrb[0].mxu0
        %1252 = vmatprep.mubr.f32.mxu0 0.0
        %1253 = vmatmul.mubr.f32.gmra.mrb[0].mxu0 %v1154
        %v1254 = vpop.f32.mrb[0].mxu0
        %v1255 = vadd.f32 0.0, %v1254
        %v1256 = vpop.f32.mrb[0].mxu0
        %1257 = vmatprep.mubr.f32.mxu0 0.0
        %1258 = vmatmul.mubr.f32.gmra.mrb[0].mxu0 %v1157
        %v1259 = vpop.f32.mrb[0].mxu0
        %v1260 = vadd.f32 0.0, %v1259
        %v1261 = vpop.f32.mrb[0].mxu0
        %1262 = vmatprep.mubr.f32.mxu0 0.0
        %1263 = vmatmul.mubr.f32.gmra.mrb[0].mxu0 %v1160
        %v1264 = vpop.f32.mrb[0].mxu0
        %v1265 = vadd.f32 0.0, %v1264
        %v1266 = vpop.f32.mrb[0].mxu0
        %1267 = vmatprep.mubr.f32.mxu0 0.0
        %1268 = vmatmul.mubr.f32.gmra.mrb[0].mxu0 %v1163
        %v1269 = vpop.f32.mrb[0].mxu0
        %v1270 = vadd.f32 0.0, %v1269
        %v1271 = vpop.f32.mrb[0].mxu0
        %1272 = vmatprep.mubr.f32.mxu0 0.0
        %1273 = vmatmul.mubr.f32.gmra.mrb[0].mxu0 %v1166
        %v1274 = vpop.f32.mrb[0].mxu0
        %v1275 = vadd.f32 0.0, %v1274
        %v1276 = vpop.f32.mrb[0].mxu0
        %1277 = vmatprep.mubr.f32.mxu0 0.0
        %1278 = vmatmul.mubr.f32.gmra.mrb[0].mxu0 %v1169
        %v1279 = vpop.f32.mrb[0].mxu0
        %v1280 = vadd.f32 0.0, %v1279
        %v1281 = vpop.f32.mrb[0].mxu0
        %1282 = vmatprep.mubr.f32.mxu0 0.0
        %1283 = vmatmul.mubr.f32.gmra.mrb[0].mxu0 %v1172
        %v1284 = vpop.f32.mrb[0].mxu0
        %v1285 = vadd.f32 0.0, %v1284
        %v1286 = vpop.f32.mrb[0].mxu0
        %1287 = vmatprep.mubr.f32.mxu0 0.0
        %1288 = vmatmul.mubr.f32.gmra.mrb[0].mxu0 %v1175
        %v1289 = vpop.f32.mrb[0].mxu0
        %v1290 = vadd.f32 0.0, %v1289
        %v1291 = vpop.f32.mrb[0].mxu0
        %1292 = vmatprep.mubr.f32.mxu0 0.0
        %1293 = vmatmul.mubr.f32.gmra.mrb[0].mxu0 %v1178
        %v1294 = vpop.f32.mrb[0].mxu0
        %v1295 = vadd.f32 0.0, %v1294
        %v1296 = vpop.f32.mrb[0].mxu0
        %1297 = vdwg.mxu0
        %v1298 = vadd.f32 %v1128, %v1250
        %v1299 = vadd.f32 %v1129, %v1255
        %v1300 = vadd.f32 %v1130, %v1260
        %v1301 = vadd.f32 %v1131, %v1265
        %v1302 = vadd.f32 %v1132, %v1270
        %v1303 = vadd.f32 %v1133, %v1275
        %v1304 = vadd.f32 %v1134, %v1280
        %v1305 = vadd.f32 %v1135, %v1285
        %v1306 = vadd.f32 %v1136, %v1290
        %v1307 = vadd.f32 %v1137, %v1295
        %v1308 = vld [vmem:[#allocation2 + $0xc] sm:$0xff]
        %v1309 = vld [vmem:[#allocation2 + $0x14] sm:$0xff]
        %v1310 = vld [vmem:[#allocation2 + $0x1c] sm:$0xff]
        %v1311 = vld [vmem:[#allocation2 + $0x24] sm:$0xff]
        %v1312 = vld [vmem:[#allocation2 + $0x2c] sm:$0xff]
        %v1313 = vld [vmem:[#allocation2 + $0x34] sm:$0xff]
        %v1314 = vld [vmem:[#allocation2 + $0x3c] sm:$0xff]
        %v1315 = vld [vmem:[#allocation2 + $0x44] sm:$0xff]
        %v1316 = vld [vmem:[#allocation2 + $0x4c] sm:$0xff]
        %v1317 = vld [vmem:[#allocation2 + $0x54] sm:$0xff]
        %s1318 = scalar_lea.vmem %s1, 20
        %v1319 = vld [vmem:[%s1318] sm:$0xf]
        %v1321 = vsel %vm440, %v1308, 0
        %v1324 = vsel %vm440, %v1309, 0
        %v1327 = vsel %vm440, %v1310, 0
        %v1330 = vsel %vm440, %v1311, 0
        %v1333 = vsel %vm440, %v1312, 0
        %v1336 = vsel %vm440, %v1313, 0
        %v1339 = vsel %vm440, %v1314, 0
        %v1342 = vsel %vm440, %v1315, 0
        %v1345 = vsel %vm440, %v1316, 0
        %v1348 = vsel %vm440, %v1317, 0
        %v1351 = vsel %vm531, %v1319, 0
        %1353 = vmatprep.subr.mxu0 0.0
        %1354 = vmatpush1.msra.mxu0 %v1351
        %1355 = vmatprep.subr.mxu0 0.0
        %1356 = vmatpush1.msra.mxu0 0.0
        %1357 = vmatprep.subr.mxu0 0.0
        %1358 = vmatpush1.msra.mxu0 0.0
        %1359 = vmatprep.subr.mxu0 0.0
        %1360 = vmatpush1.msra.mxu0 0.0
        %1361 = vmatprep.subr.mxu0 0.0
        %1362 = vmatpush1.msra.mxu0 0.0
        %1363 = vmatprep.subr.mxu0 0.0
        %1364 = vmatpush1.msra.mxu0 0.0
        %1365 = vmatprep.subr.mxu0 0.0
        %1366 = vmatpush1.msra.mxu0 0.0
        %1367 = vmatprep.subr.mxu0 0.0
        %1368 = vmatpush1.msra.mxu0 0.0
        %1369 = vmatprep.subr.mxu0 0.0
        %1370 = vmatpush1.msra.mxu0 0.0
        %1371 = vmatprep.subr.mxu0 0.0
        %1372 = vmatpush1.msra.mxu0 0.0
        %1373 = vmatprep.subr.mxu0 0.0
        %1374 = vmatpush1.msra.mxu0 0.0
        %1375 = vmatprep.subr.mxu0 0.0
        %1376 = vmatpush1.msra.mxu0 0.0
        %1377 = vmatprep.subr.mxu0 0.0
        %1378 = vmatpush1.msra.mxu0 0.0
        %1379 = vmatprep.subr.mxu0 0.0
        %1380 = vmatpush1.msra.mxu0 0.0
        %1381 = vmatprep.subr.mxu0 0.0
        %1382 = vmatpush1.msra.mxu0 0.0
        %1383 = vmatprep.subr.mxu0 0.0
        %1384 = vmatpush1.msra.mxu0 0.0
        %1385 = vmatprep.subr.mxu0 0.0
        %1386 = vmatpush1.msra.mxu0 0.0
        %1387 = vmatprep.subr.mxu0 0.0
        %1388 = vmatpush1.msra.mxu0 0.0
        %1389 = vmatprep.subr.mxu0 0.0
        %1390 = vmatpush1.msra.mxu0 0.0
        %1391 = vmatprep.subr.mxu0 0.0
        %1392 = vmatpush1.msra.mxu0 0.0
        %1393 = vmatprep.subr.mxu0 0.0
        %1394 = vmatpush1.msra.mxu0 0.0
        %1395 = vmatprep.subr.mxu0 0.0
        %1396 = vmatpush1.msra.mxu0 0.0
        %1397 = vmatprep.subr.mxu0 0.0
        %1398 = vmatpush1.msra.mxu0 0.0
        %1399 = vmatprep.subr.mxu0 0.0
        %1400 = vmatpush1.msra.mxu0 0.0
        %1401 = vmatprep.subr.mxu0 0.0
        %1402 = vmatpush1.msra.mxu0 0.0
        %1403 = vmatprep.subr.mxu0 0.0
        %1404 = vmatpush1.msra.mxu0 0.0
        %1405 = vmatprep.subr.mxu0 0.0
        %1406 = vmatpush1.msra.mxu0 0.0
        %1407 = vmatprep.subr.mxu0 0.0
        %1408 = vmatpush1.msra.mxu0 0.0
        %1409 = vmatprep.subr.mxu0 0.0
        %1410 = vmatpush1.msra.mxu0 0.0
        %1411 = vmatprep.subr.mxu0 0.0
        %1412 = vmatpush1.msra.mxu0 0.0
        %1413 = vmatprep.subr.mxu0 0.0
        %1414 = vmatpush1.msra.mxu0 0.0
        %1415 = vmatprep.subr.mxu0 0.0
        %1416 = vmatpush1.msra.mxu0 0.0
        %1417 = vmatprep.mubr.f32.mxu0 0.0
        %1418 = vmatmul.mubr.f32.gmra.mrb[0].mxu0 %v1321
        %v1419 = vpop.f32.mrb[0].mxu0
        %v1420 = vadd.f32 0.0, %v1419
        %v1421 = vpop.f32.mrb[0].mxu0
        %1422 = vmatprep.mubr.f32.mxu0 0.0
        %1423 = vmatmul.mubr.f32.gmra.mrb[0].mxu0 %v1324
        %v1424 = vpop.f32.mrb[0].mxu0
        %v1425 = vadd.f32 0.0, %v1424
        %v1426 = vpop.f32.mrb[0].mxu0
        %1427 = vmatprep.mubr.f32.mxu0 0.0
        %1428 = vmatmul.mubr.f32.gmra.mrb[0].mxu0 %v1327
        %v1429 = vpop.f32.mrb[0].mxu0
        %v1430 = vadd.f32 0.0, %v1429
        %v1431 = vpop.f32.mrb[0].mxu0
        %1432 = vmatprep.mubr.f32.mxu0 0.0
        %1433 = vmatmul.mubr.f32.gmra.mrb[0].mxu0 %v1330
        %v1434 = vpop.f32.mrb[0].mxu0
        %v1435 = vadd.f32 0.0, %v1434
        %v1436 = vpop.f32.mrb[0].mxu0
        %1437 = vmatprep.mubr.f32.mxu0 0.0
        %1438 = vmatmul.mubr.f32.gmra.mrb[0].mxu0 %v1333
        %v1439 = vpop.f32.mrb[0].mxu0
        %v1440 = vadd.f32 0.0, %v1439
        %v1441 = vpop.f32.mrb[0].mxu0
        %1442 = vmatprep.mubr.f32.mxu0 0.0
        %1443 = vmatmul.mubr.f32.gmra.mrb[0].mxu0 %v1336
        %v1444 = vpop.f32.mrb[0].mxu0
        %v1445 = vadd.f32 0.0, %v1444
        %v1446 = vpop.f32.mrb[0].mxu0
        %1447 = vmatprep.mubr.f32.mxu0 0.0
        %1448 = vmatmul.mubr.f32.gmra.mrb[0].mxu0 %v1339
        %v1449 = vpop.f32.mrb[0].mxu0
        %v1450 = vadd.f32 0.0, %v1449
        %v1451 = vpop.f32.mrb[0].mxu0
        %1452 = vmatprep.mubr.f32.mxu0 0.0
        %1453 = vmatmul.mubr.f32.gmra.mrb[0].mxu0 %v1342
        %v1454 = vpop.f32.mrb[0].mxu0
        %v1455 = vadd.f32 0.0, %v1454
        %v1456 = vpop.f32.mrb[0].mxu0
        %1457 = vmatprep.mubr.f32.mxu0 0.0
        %1458 = vmatmul.mubr.f32.gmra.mrb[0].mxu0 %v1345
        %v1459 = vpop.f32.mrb[0].mxu0
        %v1460 = vadd.f32 0.0, %v1459
        %v1461 = vpop.f32.mrb[0].mxu0
        %1462 = vmatprep.mubr.f32.mxu0 0.0
        %1463 = vmatmul.mubr.f32.gmra.mrb[0].mxu0 %v1348
        %v1464 = vpop.f32.mrb[0].mxu0
        %v1465 = vadd.f32 0.0, %v1464
        %v1466 = vpop.f32.mrb[0].mxu0
        %1467 = vdwg.mxu0
        %v1468 = vadd.f32 %v1298, %v1420
        %v1469 = vadd.f32 %v1299, %v1425
        %v1470 = vadd.f32 %v1300, %v1430
        %v1471 = vadd.f32 %v1301, %v1435
        %v1472 = vadd.f32 %v1302, %v1440
        %v1473 = vadd.f32 %v1303, %v1445
        %v1474 = vadd.f32 %v1304, %v1450
        %v1475 = vadd.f32 %v1305, %v1455
        %v1476 = vadd.f32 %v1306, %v1460
        %v1477 = vadd.f32 %v1307, %v1465
        %v1478 = vld [vmem:[#allocation2 + $0x14] sm:$0xff]
        %v1479 = vld [vmem:[#allocation2 + $0x1c] sm:$0xff]
        %v1480 = vld [vmem:[#allocation2 + $0x24] sm:$0xff]
        %v1481 = vld [vmem:[#allocation2 + $0x2c] sm:$0xff]
        %v1482 = vld [vmem:[#allocation2 + $0x34] sm:$0xff]
        %v1483 = vld [vmem:[#allocation2 + $0x3c] sm:$0xff]
        %v1484 = vld [vmem:[#allocation2 + $0x44] sm:$0xff]
        %v1485 = vld [vmem:[#allocation2 + $0x4c] sm:$0xff]
        %v1486 = vld [vmem:[#allocation2 + $0x54] sm:$0xff]
        %v1487 = vld [vmem:[#allocation2 + $0x5c] sm:$0xff]
        %s1488 = scalar_lea.vmem %s1, 24
        %v1489 = vld [vmem:[%s1488] sm:$0xf]
        %v1491 = vsel %vm440, %v1478, 0
        %v1494 = vsel %vm440, %v1479, 0
        %v1497 = vsel %vm440, %v1480, 0
        %v1500 = vsel %vm440, %v1481, 0
        %v1503 = vsel %vm440, %v1482, 0
        %v1506 = vsel %vm440, %v1483, 0
        %v1509 = vsel %vm440, %v1484, 0
        %v1512 = vsel %vm440, %v1485, 0
        %v1515 = vsel %vm440, %v1486, 0
        %v1518 = vsel %vm440, %v1487, 0
        %v1521 = vsel %vm531, %v1489, 0
        %1523 = vmatprep.subr.mxu0 0.0
        %1524 = vmatpush1.msra.mxu0 %v1521
        %1525 = vmatprep.subr.mxu0 0.0
        %1526 = vmatpush1.msra.mxu0 0.0
        %1527 = vmatprep.subr.mxu0 0.0
        %1528 = vmatpush1.msra.mxu0 0.0
        %1529 = vmatprep.subr.mxu0 0.0
        %1530 = vmatpush1.msra.mxu0 0.0
        %1531 = vmatprep.subr.mxu0 0.0
        %1532 = vmatpush1.msra.mxu0 0.0
        %1533 = vmatprep.subr.mxu0 0.0
        %1534 = vmatpush1.msra.mxu0 0.0
        %1535 = vmatprep.subr.mxu0 0.0
        %1536 = vmatpush1.msra.mxu0 0.0
        %1537 = vmatprep.subr.mxu0 0.0
        %1538 = vmatpush1.msra.mxu0 0.0
        %1539 = vmatprep.subr.mxu0 0.0
        %1540 = vmatpush1.msra.mxu0 0.0
        %1541 = vmatprep.subr.mxu0 0.0
        %1542 = vmatpush1.msra.mxu0 0.0
        %1543 = vmatprep.subr.mxu0 0.0
        %1544 = vmatpush1.msra.mxu0 0.0
        %1545 = vmatprep.subr.mxu0 0.0
        %1546 = vmatpush1.msra.mxu0 0.0
        %1547 = vmatprep.subr.mxu0 0.0
        %1548 = vmatpush1.msra.mxu0 0.0
        %1549 = vmatprep.subr.mxu0 0.0
        %1550 = vmatpush1.msra.mxu0 0.0
        %1551 = vmatprep.subr.mxu0 0.0
        %1552 = vmatpush1.msra.mxu0 0.0
        %1553 = vmatprep.subr.mxu0 0.0
        %1554 = vmatpush1.msra.mxu0 0.0
        %1555 = vmatprep.subr.mxu0 0.0
        %1556 = vmatpush1.msra.mxu0 0.0
        %1557 = vmatprep.subr.mxu0 0.0
        %1558 = vmatpush1.msra.mxu0 0.0
        %1559 = vmatprep.subr.mxu0 0.0
        %1560 = vmatpush1.msra.mxu0 0.0
        %1561 = vmatprep.subr.mxu0 0.0
        %1562 = vmatpush1.msra.mxu0 0.0
        %1563 = vmatprep.subr.mxu0 0.0
        %1564 = vmatpush1.msra.mxu0 0.0
        %1565 = vmatprep.subr.mxu0 0.0
        %1566 = vmatpush1.msra.mxu0 0.0
        %1567 = vmatprep.subr.mxu0 0.0
        %1568 = vmatpush1.msra.mxu0 0.0
        %1569 = vmatprep.subr.mxu0 0.0
        %1570 = vmatpush1.msra.mxu0 0.0
        %1571 = vmatprep.subr.mxu0 0.0
        %1572 = vmatpush1.msra.mxu0 0.0
        %1573 = vmatprep.subr.mxu0 0.0
        %1574 = vmatpush1.msra.mxu0 0.0
        %1575 = vmatprep.subr.mxu0 0.0
        %1576 = vmatpush1.msra.mxu0 0.0
        %1577 = vmatprep.subr.mxu0 0.0
        %1578 = vmatpush1.msra.mxu0 0.0
        %1579 = vmatprep.subr.mxu0 0.0
        %1580 = vmatpush1.msra.mxu0 0.0
        %1581 = vmatprep.subr.mxu0 0.0
        %1582 = vmatpush1.msra.mxu0 0.0
        %1583 = vmatprep.subr.mxu0 0.0
        %1584 = vmatpush1.msra.mxu0 0.0
        %1585 = vmatprep.subr.mxu0 0.0
        %1586 = vmatpush1.msra.mxu0 0.0
        %1587 = vmatprep.mubr.f32.mxu0 0.0
        %1588 = vmatmul.mubr.f32.gmra.mrb[0].mxu0 %v1491
        %v1589 = vpop.f32.mrb[0].mxu0
        %v1590 = vadd.f32 0.0, %v1589
        %v1591 = vpop.f32.mrb[0].mxu0
        %1592 = vmatprep.mubr.f32.mxu0 0.0
        %1593 = vmatmul.mubr.f32.gmra.mrb[0].mxu0 %v1494
        %v1594 = vpop.f32.mrb[0].mxu0
        %v1595 = vadd.f32 0.0, %v1594
        %v1596 = vpop.f32.mrb[0].mxu0
        %1597 = vmatprep.mubr.f32.mxu0 0.0
        %1598 = vmatmul.mubr.f32.gmra.mrb[0].mxu0 %v1497
        %v1599 = vpop.f32.mrb[0].mxu0
        %v1600 = vadd.f32 0.0, %v1599
        %v1601 = vpop.f32.mrb[0].mxu0
        %1602 = vmatprep.mubr.f32.mxu0 0.0
        %1603 = vmatmul.mubr.f32.gmra.mrb[0].mxu0 %v1500
        %v1604 = vpop.f32.mrb[0].mxu0
        %v1605 = vadd.f32 0.0, %v1604
        %v1606 = vpop.f32.mrb[0].mxu0
        %1607 = vmatprep.mubr.f32.mxu0 0.0
        %1608 = vmatmul.mubr.f32.gmra.mrb[0].mxu0 %v1503
        %v1609 = vpop.f32.mrb[0].mxu0
        %v1610 = vadd.f32 0.0, %v1609
        %v1611 = vpop.f32.mrb[0].mxu0
        %1612 = vmatprep.mubr.f32.mxu0 0.0
        %1613 = vmatmul.mubr.f32.gmra.mrb[0].mxu0 %v1506
        %v1614 = vpop.f32.mrb[0].mxu0
        %v1615 = vadd.f32 0.0, %v1614
        %v1616 = vpop.f32.mrb[0].mxu0
        %1617 = vmatprep.mubr.f32.mxu0 0.0
        %1618 = vmatmul.mubr.f32.gmra.mrb[0].mxu0 %v1509
        %v1619 = vpop.f32.mrb[0].mxu0
        %v1620 = vadd.f32 0.0, %v1619
        %v1621 = vpop.f32.mrb[0].mxu0
        %1622 = vmatprep.mubr.f32.mxu0 0.0
        %1623 = vmatmul.mubr.f32.gmra.mrb[0].mxu0 %v1512
        %v1624 = vpop.f32.mrb[0].mxu0
        %v1625 = vadd.f32 0.0, %v1624
        %v1626 = vpop.f32.mrb[0].mxu0
        %1627 = vmatprep.mubr.f32.mxu0 0.0
        %1628 = vmatmul.mubr.f32.gmra.mrb[0].mxu0 %v1515
        %v1629 = vpop.f32.mrb[0].mxu0
        %v1630 = vadd.f32 0.0, %v1629
        %v1631 = vpop.f32.mrb[0].mxu0
        %1632 = vmatprep.mubr.f32.mxu0 0.0
        %1633 = vmatmul.mubr.f32.gmra.mrb[0].mxu0 %v1518
        %v1634 = vpop.f32.mrb[0].mxu0
        %v1635 = vadd.f32 0.0, %v1634
        %v1636 = vpop.f32.mrb[0].mxu0
        %1637 = vdwg.mxu0
        %v1638 = vadd.f32 %v1468, %v1590
        %v1639 = vadd.f32 %v1469, %v1595
        %v1640 = vadd.f32 %v1470, %v1600
        %v1641 = vadd.f32 %v1471, %v1605
        %v1642 = vadd.f32 %v1472, %v1610
        %v1643 = vadd.f32 %v1473, %v1615
        %v1644 = vadd.f32 %v1474, %v1620
        %v1645 = vadd.f32 %v1475, %v1625
        %v1646 = vadd.f32 %v1476, %v1630
        %v1647 = vadd.f32 %v1477, %v1635
        %v1648 = vld [vmem:[#allocation2 + $0x15] sm:$0xff]
        %v1649 = vld [vmem:[#allocation2 + $0x1d] sm:$0xff]
        %v1650 = vld [vmem:[#allocation2 + $0x25] sm:$0xff]
        %v1651 = vld [vmem:[#allocation2 + $0x2d] sm:$0xff]
        %v1652 = vld [vmem:[#allocation2 + $0x35] sm:$0xff]
        %v1653 = vld [vmem:[#allocation2 + $0x3d] sm:$0xff]
        %v1654 = vld [vmem:[#allocation2 + $0x45] sm:$0xff]
        %v1655 = vld [vmem:[#allocation2 + $0x4d] sm:$0xff]
        %v1656 = vld [vmem:[#allocation2 + $0x55] sm:$0xff]
        %v1657 = vld [vmem:[#allocation2 + $0x5d] sm:$0xff]
        %s1658 = scalar_lea.vmem %s1, 28
        %v1659 = vld [vmem:[%s1658] sm:$0xf]
        %v1661 = vsel %vm440, %v1648, 0
        %v1664 = vsel %vm440, %v1649, 0
        %v1667 = vsel %vm440, %v1650, 0
        %v1670 = vsel %vm440, %v1651, 0
        %v1673 = vsel %vm440, %v1652, 0
        %v1676 = vsel %vm440, %v1653, 0
        %v1679 = vsel %vm440, %v1654, 0
        %v1682 = vsel %vm440, %v1655, 0
        %v1685 = vsel %vm440, %v1656, 0
        %v1688 = vsel %vm440, %v1657, 0
        %v1691 = vsel %vm531, %v1659, 0
        %1693 = vmatprep.subr.mxu0 0.0
        %1694 = vmatpush1.msra.mxu0 %v1691
        %1695 = vmatprep.subr.mxu0 0.0
        %1696 = vmatpush1.msra.mxu0 0.0
        %1697 = vmatprep.subr.mxu0 0.0
        %1698 = vmatpush1.msra.mxu0 0.0
        %1699 = vmatprep.subr.mxu0 0.0
        %1700 = vmatpush1.msra.mxu0 0.0
        %1701 = vmatprep.subr.mxu0 0.0
        %1702 = vmatpush1.msra.mxu0 0.0
        %1703 = vmatprep.subr.mxu0 0.0
        %1704 = vmatpush1.msra.mxu0 0.0
        %1705 = vmatprep.subr.mxu0 0.0
        %1706 = vmatpush1.msra.mxu0 0.0
        %1707 = vmatprep.subr.mxu0 0.0
        %1708 = vmatpush1.msra.mxu0 0.0
        %1709 = vmatprep.subr.mxu0 0.0
        %1710 = vmatpush1.msra.mxu0 0.0
        %1711 = vmatprep.subr.mxu0 0.0
        %1712 = vmatpush1.msra.mxu0 0.0
        %1713 = vmatprep.subr.mxu0 0.0
        %1714 = vmatpush1.msra.mxu0 0.0
        %1715 = vmatprep.subr.mxu0 0.0
        %1716 = vmatpush1.msra.mxu0 0.0
        %1717 = vmatprep.subr.mxu0 0.0
        %1718 = vmatpush1.msra.mxu0 0.0
        %1719 = vmatprep.subr.mxu0 0.0
        %1720 = vmatpush1.msra.mxu0 0.0
        %1721 = vmatprep.subr.mxu0 0.0
        %1722 = vmatpush1.msra.mxu0 0.0
        %1723 = vmatprep.subr.mxu0 0.0
        %1724 = vmatpush1.msra.mxu0 0.0
        %1725 = vmatprep.subr.mxu0 0.0
        %1726 = vmatpush1.msra.mxu0 0.0
        %1727 = vmatprep.subr.mxu0 0.0
        %1728 = vmatpush1.msra.mxu0 0.0
        %1729 = vmatprep.subr.mxu0 0.0
        %1730 = vmatpush1.msra.mxu0 0.0
        %1731 = vmatprep.subr.mxu0 0.0
        %1732 = vmatpush1.msra.mxu0 0.0
        %1733 = vmatprep.subr.mxu0 0.0
        %1734 = vmatpush1.msra.mxu0 0.0
        %1735 = vmatprep.subr.mxu0 0.0
        %1736 = vmatpush1.msra.mxu0 0.0
        %1737 = vmatprep.subr.mxu0 0.0
        %1738 = vmatpush1.msra.mxu0 0.0
        %1739 = vmatprep.subr.mxu0 0.0
        %1740 = vmatpush1.msra.mxu0 0.0
        %1741 = vmatprep.subr.mxu0 0.0
        %1742 = vmatpush1.msra.mxu0 0.0
        %1743 = vmatprep.subr.mxu0 0.0
        %1744 = vmatpush1.msra.mxu0 0.0
        %1745 = vmatprep.subr.mxu0 0.0
        %1746 = vmatpush1.msra.mxu0 0.0
        %1747 = vmatprep.subr.mxu0 0.0
        %1748 = vmatpush1.msra.mxu0 0.0
        %1749 = vmatprep.subr.mxu0 0.0
        %1750 = vmatpush1.msra.mxu0 0.0
        %1751 = vmatprep.subr.mxu0 0.0
        %1752 = vmatpush1.msra.mxu0 0.0
        %1753 = vmatprep.subr.mxu0 0.0
        %1754 = vmatpush1.msra.mxu0 0.0
        %1755 = vmatprep.subr.mxu0 0.0
        %1756 = vmatpush1.msra.mxu0 0.0
        %1757 = vmatprep.mubr.f32.mxu0 0.0
        %1758 = vmatmul.mubr.f32.gmra.mrb[0].mxu0 %v1661
        %v1759 = vpop.f32.mrb[0].mxu0
        %v1760 = vadd.f32 0.0, %v1759
        %v1761 = vpop.f32.mrb[0].mxu0
        %1762 = vmatprep.mubr.f32.mxu0 0.0
        %1763 = vmatmul.mubr.f32.gmra.mrb[0].mxu0 %v1664
        %v1764 = vpop.f32.mrb[0].mxu0
        %v1765 = vadd.f32 0.0, %v1764
        %v1766 = vpop.f32.mrb[0].mxu0
        %1767 = vmatprep.mubr.f32.mxu0 0.0
        %1768 = vmatmul.mubr.f32.gmra.mrb[0].mxu0 %v1667
        %v1769 = vpop.f32.mrb[0].mxu0
        %v1770 = vadd.f32 0.0, %v1769
        %v1771 = vpop.f32.mrb[0].mxu0
        %1772 = vmatprep.mubr.f32.mxu0 0.0
        %1773 = vmatmul.mubr.f32.gmra.mrb[0].mxu0 %v1670
        %v1774 = vpop.f32.mrb[0].mxu0
        %v1775 = vadd.f32 0.0, %v1774
        %v1776 = vpop.f32.mrb[0].mxu0
        %1777 = vmatprep.mubr.f32.mxu0 0.0
        %1778 = vmatmul.mubr.f32.gmra.mrb[0].mxu0 %v1673
        %v1779 = vpop.f32.mrb[0].mxu0
        %v1780 = vadd.f32 0.0, %v1779
        %v1781 = vpop.f32.mrb[0].mxu0
        %1782 = vmatprep.mubr.f32.mxu0 0.0
        %1783 = vmatmul.mubr.f32.gmra.mrb[0].mxu0 %v1676
        %v1784 = vpop.f32.mrb[0].mxu0
        %v1785 = vadd.f32 0.0, %v1784
        %v1786 = vpop.f32.mrb[0].mxu0
        %1787 = vmatprep.mubr.f32.mxu0 0.0
        %1788 = vmatmul.mubr.f32.gmra.mrb[0].mxu0 %v1679
        %v1789 = vpop.f32.mrb[0].mxu0
        %v1790 = vadd.f32 0.0, %v1789
        %v1791 = vpop.f32.mrb[0].mxu0
        %1792 = vmatprep.mubr.f32.mxu0 0.0
        %1793 = vmatmul.mubr.f32.gmra.mrb[0].mxu0 %v1682
        %v1794 = vpop.f32.mrb[0].mxu0
        %v1795 = vadd.f32 0.0, %v1794
        %v1796 = vpop.f32.mrb[0].mxu0
        %1797 = vmatprep.mubr.f32.mxu0 0.0
        %1798 = vmatmul.mubr.f32.gmra.mrb[0].mxu0 %v1685
        %v1799 = vpop.f32.mrb[0].mxu0
        %v1800 = vadd.f32 0.0, %v1799
        %v1801 = vpop.f32.mrb[0].mxu0
        %1802 = vmatprep.mubr.f32.mxu0 0.0
        %1803 = vmatmul.mubr.f32.gmra.mrb[0].mxu0 %v1688
        %v1804 = vpop.f32.mrb[0].mxu0
        %v1805 = vadd.f32 0.0, %v1804
        %v1806 = vpop.f32.mrb[0].mxu0
        %1807 = vdwg.mxu0
        %v1808 = vadd.f32 %v1638, %v1760
        %v1809 = vadd.f32 %v1639, %v1765
        %v1810 = vadd.f32 %v1640, %v1770
        %v1811 = vadd.f32 %v1641, %v1775
        %v1812 = vadd.f32 %v1642, %v1780
        %v1813 = vadd.f32 %v1643, %v1785
        %v1814 = vadd.f32 %v1644, %v1790
        %v1815 = vadd.f32 %v1645, %v1795
        %v1816 = vadd.f32 %v1646, %v1800
        %v1817 = vadd.f32 %v1647, %v1805
        %v1818 = vld [vmem:[#allocation2 + $0x16] sm:$0xff]
        %v1819 = vld [vmem:[#allocation2 + $0x1e] sm:$0xff]
        %v1820 = vld [vmem:[#allocation2 + $0x26] sm:$0xff]
        %v1821 = vld [vmem:[#allocation2 + $0x2e] sm:$0xff]
        %v1822 = vld [vmem:[#allocation2 + $0x36] sm:$0xff]
        %v1823 = vld [vmem:[#allocation2 + $0x3e] sm:$0xff]
        %v1824 = vld [vmem:[#allocation2 + $0x46] sm:$0xff]
        %v1825 = vld [vmem:[#allocation2 + $0x4e] sm:$0xff]
        %v1826 = vld [vmem:[#allocation2 + $0x56] sm:$0xff]
        %v1827 = vld [vmem:[#allocation2 + $0x5e] sm:$0xff]
        %s1828 = scalar_lea.vmem %s1, 32
        %v1829 = vld [vmem:[%s1828] sm:$0xf]
        %v1831 = vsel %vm440, %v1818, 0
        %v1834 = vsel %vm440, %v1819, 0
        %v1837 = vsel %vm440, %v1820, 0
        %v1840 = vsel %vm440, %v1821, 0
        %v1843 = vsel %vm440, %v1822, 0
        %v1846 = vsel %vm440, %v1823, 0
        %v1849 = vsel %vm440, %v1824, 0
        %v1852 = vsel %vm440, %v1825, 0
        %v1855 = vsel %vm440, %v1826, 0
        %v1858 = vsel %vm440, %v1827, 0
        %v1861 = vsel %vm531, %v1829, 0
        %1863 = vmatprep.subr.mxu0 0.0
        %1864 = vmatpush1.msra.mxu0 %v1861
        %1865 = vmatprep.subr.mxu0 0.0
        %1866 = vmatpush1.msra.mxu0 0.0
        %1867 = vmatprep.subr.mxu0 0.0
        %1868 = vmatpush1.msra.mxu0 0.0
        %1869 = vmatprep.subr.mxu0 0.0
        %1870 = vmatpush1.msra.mxu0 0.0
        %1871 = vmatprep.subr.mxu0 0.0
        %1872 = vmatpush1.msra.mxu0 0.0
        %1873 = vmatprep.subr.mxu0 0.0
        %1874 = vmatpush1.msra.mxu0 0.0
        %1875 = vmatprep.subr.mxu0 0.0
        %1876 = vmatpush1.msra.mxu0 0.0
        %1877 = vmatprep.subr.mxu0 0.0
        %1878 = vmatpush1.msra.mxu0 0.0
        %1879 = vmatprep.subr.mxu0 0.0
        %1880 = vmatpush1.msra.mxu0 0.0
        %1881 = vmatprep.subr.mxu0 0.0
        %1882 = vmatpush1.msra.mxu0 0.0
        %1883 = vmatprep.subr.mxu0 0.0
        %1884 = vmatpush1.msra.mxu0 0.0
        %1885 = vmatprep.subr.mxu0 0.0
        %1886 = vmatpush1.msra.mxu0 0.0
        %1887 = vmatprep.subr.mxu0 0.0
        %1888 = vmatpush1.msra.mxu0 0.0
        %1889 = vmatprep.subr.mxu0 0.0
        %1890 = vmatpush1.msra.mxu0 0.0
        %1891 = vmatprep.subr.mxu0 0.0
        %1892 = vmatpush1.msra.mxu0 0.0
        %1893 = vmatprep.subr.mxu0 0.0
        %1894 = vmatpush1.msra.mxu0 0.0
        %1895 = vmatprep.subr.mxu0 0.0
        %1896 = vmatpush1.msra.mxu0 0.0
        %1897 = vmatprep.subr.mxu0 0.0
        %1898 = vmatpush1.msra.mxu0 0.0
        %1899 = vmatprep.subr.mxu0 0.0
        %1900 = vmatpush1.msra.mxu0 0.0
        %1901 = vmatprep.subr.mxu0 0.0
        %1902 = vmatpush1.msra.mxu0 0.0
        %1903 = vmatprep.subr.mxu0 0.0
        %1904 = vmatpush1.msra.mxu0 0.0
        %1905 = vmatprep.subr.mxu0 0.0
        %1906 = vmatpush1.msra.mxu0 0.0
        %1907 = vmatprep.subr.mxu0 0.0
        %1908 = vmatpush1.msra.mxu0 0.0
        %1909 = vmatprep.subr.mxu0 0.0
        %1910 = vmatpush1.msra.mxu0 0.0
        %1911 = vmatprep.subr.mxu0 0.0
        %1912 = vmatpush1.msra.mxu0 0.0
        %1913 = vmatprep.subr.mxu0 0.0
        %1914 = vmatpush1.msra.mxu0 0.0
        %1915 = vmatprep.subr.mxu0 0.0
        %1916 = vmatpush1.msra.mxu0 0.0
        %1917 = vmatprep.subr.mxu0 0.0
        %1918 = vmatpush1.msra.mxu0 0.0
        %1919 = vmatprep.subr.mxu0 0.0
        %1920 = vmatpush1.msra.mxu0 0.0
        %1921 = vmatprep.subr.mxu0 0.0
        %1922 = vmatpush1.msra.mxu0 0.0
        %1923 = vmatprep.subr.mxu0 0.0
        %1924 = vmatpush1.msra.mxu0 0.0
        %1925 = vmatprep.subr.mxu0 0.0
        %1926 = vmatpush1.msra.mxu0 0.0
        %1927 = vmatprep.mubr.f32.mxu0 0.0
        %1928 = vmatmul.mubr.f32.gmra.mrb[0].mxu0 %v1831
        %v1929 = vpop.f32.mrb[0].mxu0
        %v1930 = vadd.f32 0.0, %v1929
        %v1931 = vpop.f32.mrb[0].mxu0
        %1932 = vmatprep.mubr.f32.mxu0 0.0
        %1933 = vmatmul.mubr.f32.gmra.mrb[0].mxu0 %v1834
        %v1934 = vpop.f32.mrb[0].mxu0
        %v1935 = vadd.f32 0.0, %v1934
        %v1936 = vpop.f32.mrb[0].mxu0
        %1937 = vmatprep.mubr.f32.mxu0 0.0
        %1938 = vmatmul.mubr.f32.gmra.mrb[0].mxu0 %v1837
        %v1939 = vpop.f32.mrb[0].mxu0
        %v1940 = vadd.f32 0.0, %v1939
        %v1941 = vpop.f32.mrb[0].mxu0
        %1942 = vmatprep.mubr.f32.mxu0 0.0
        %1943 = vmatmul.mubr.f32.gmra.mrb[0].mxu0 %v1840
        %v1944 = vpop.f32.mrb[0].mxu0
        %v1945 = vadd.f32 0.0, %v1944
        %v1946 = vpop.f32.mrb[0].mxu0
        %1947 = vmatprep.mubr.f32.mxu0 0.0
        %1948 = vmatmul.mubr.f32.gmra.mrb[0].mxu0 %v1843
        %v1949 = vpop.f32.mrb[0].mxu0
        %v1950 = vadd.f32 0.0, %v1949
        %v1951 = vpop.f32.mrb[0].mxu0
        %1952 = vmatprep.mubr.f32.mxu0 0.0
        %1953 = vmatmul.mubr.f32.gmra.mrb[0].mxu0 %v1846
        %v1954 = vpop.f32.mrb[0].mxu0
        %v1955 = vadd.f32 0.0, %v1954
        %v1956 = vpop.f32.mrb[0].mxu0
        %1957 = vmatprep.mubr.f32.mxu0 0.0
        %1958 = vmatmul.mubr.f32.gmra.mrb[0].mxu0 %v1849
        %v1959 = vpop.f32.mrb[0].mxu0
        %v1960 = vadd.f32 0.0, %v1959
        %v1961 = vpop.f32.mrb[0].mxu0
        %1962 = vmatprep.mubr.f32.mxu0 0.0
        %1963 = vmatmul.mubr.f32.gmra.mrb[0].mxu0 %v1852
        %v1964 = vpop.f32.mrb[0].mxu0
        %v1965 = vadd.f32 0.0, %v1964
        %v1966 = vpop.f32.mrb[0].mxu0
        %1967 = vmatprep.mubr.f32.mxu0 0.0
        %1968 = vmatmul.mubr.f32.gmra.mrb[0].mxu0 %v1855
        %v1969 = vpop.f32.mrb[0].mxu0
        %v1970 = vadd.f32 0.0, %v1969
        %v1971 = vpop.f32.mrb[0].mxu0
        %1972 = vmatprep.mubr.f32.mxu0 0.0
        %1973 = vmatmul.mubr.f32.gmra.mrb[0].mxu0 %v1858
        %v1974 = vpop.f32.mrb[0].mxu0
        %v1975 = vadd.f32 0.0, %v1974
        %v1976 = vpop.f32.mrb[0].mxu0
        %1977 = vdwg.mxu0
        %v1978 = vadd.f32 %v1808, %v1930
        %v1979 = vadd.f32 %v1809, %v1935
        %v1980 = vadd.f32 %v1810, %v1940
        %v1981 = vadd.f32 %v1811, %v1945
        %v1982 = vadd.f32 %v1812, %v1950
        %v1983 = vadd.f32 %v1813, %v1955
        %v1984 = vadd.f32 %v1814, %v1960
        %v1985 = vadd.f32 %v1815, %v1965
        %v1986 = vadd.f32 %v1816, %v1970
        %v1987 = vadd.f32 %v1817, %v1975
        %v1988 = vld [vmem:[%s2] sm:$0x1]
        %v1990 = vlaneseq
        %v1991 = vshrl.u32 %v1990, 7
        %v1992 = vsub.s32 0, %v1991
        %v1993 = vrot.slane %v1988, %v1992
        %v1995 = vadd.f32 %v1978, %v1993
        %v1996 = vadd.f32 %v1979, %v1993
        %v1997 = vadd.f32 %v1980, %v1993
        %v1998 = vadd.f32 %v1981, %v1993
        %v1999 = vadd.f32 %v1982, %v1993
        %v2000 = vadd.f32 %v1983, %v1993
        %v2001 = vadd.f32 %v1984, %v1993
        %v2002 = vadd.f32 %v1985, %v1993
        %v2003 = vadd.f32 %v1986, %v1993
        %v2004 = vadd.f32 %v1987, %v1993
        %v2005 = vmax.f32 %v1995, 0.0
        %v2006 = vmax.f32 %v1996, 0.0
        %v2007 = vmax.f32 %v1997, 0.0
        %v2008 = vmax.f32 %v1998, 0.0
        %v2009 = vmax.f32 %v1999, 0.0
        %v2010 = vmax.f32 %v2000, 0.0
        %v2011 = vmax.f32 %v2001, 0.0
        %v2012 = vmax.f32 %v2002, 0.0
        %v2013 = vmax.f32 %v2003, 0.0
        %v2014 = vmax.f32 %v2004, 0.0
        %vm2015 = vcmask 523264
        %2016 = vst.msk [vmem:[#allocation3] sm:$0xff] %vm2015, %v2005
        %2017 = vst.msk [vmem:[#allocation3 + $0x8] sm:$0xff] %vm2015, %v2006
        %2018 = vst.msk [vmem:[#allocation3 + $0x10] sm:$0xff] %vm2015, %v2007
        %2019 = vst.msk [vmem:[#allocation3 + $0x18] sm:$0xff] %vm2015, %v2008
        %2020 = vst.msk [vmem:[#allocation3 + $0x20] sm:$0xff] %vm2015, %v2009
        %2021 = vst.msk [vmem:[#allocation3 + $0x28] sm:$0xff] %vm2015, %v2010
        %2022 = vst.msk [vmem:[#allocation3 + $0x30] sm:$0xff] %vm2015, %v2011
        %2023 = vst.msk [vmem:[#allocation3 + $0x38] sm:$0xff] %vm2015, %v2012
        %2024 = vst.msk [vmem:[#allocation3 + $0x40] sm:$0xff] %vm2015, %v2013
        %2025 = vst.msk [vmem:[#allocation3 + $0x48] sm:$0xff] %vm2015, %v2014
        %2026 = vst.msk [vmem:[#allocation4] sm:$0xff] %vm2015, 0.0
        %2027 = vst.msk [vmem:[#allocation4 + $0x8] sm:$0xff] %vm2015, 0.0
        %2028 = vst.msk [vmem:[#allocation4 + $0x10] sm:$0xff] %vm2015, 0.0
        %2029 = vst.msk [vmem:[#allocation4 + $0x18] sm:$0xff] %vm2015, 0.0
        %vm2030 = vcmask 521216
        %2031 = vst.msk [vmem:[#allocation4 + $0x20] sm:$0x3f] %vm2030, 0.0
        %v2032 = vld [vmem:[#allocation3] ss:$2 sm:$0xff]
        %s2033 = scalar_lea.vmem [#allocation3], 16
        %v2034 = vld [vmem:[%s2033] ss:$2 sm:$0xff]
        %s2035 = scalar_lea.vmem [#allocation3], 32
        %v2036 = vld [vmem:[%s2035] ss:$2 sm:$0xff]
        %s2037 = scalar_lea.vmem [#allocation3], 48
        %v2038 = vld [vmem:[%s2037] ss:$2 sm:$0xff]
        %s2039 = scalar_lea.vmem [#allocation3], 64
        %v2040 = vld [vmem:[%s2039] ss:$2 sm:$0xff]
        %s2041 = scalar_lea.vmem [#allocation3], 1
        %v2042 = vld [vmem:[%s2041] ss:$2 sm:$0xff]
        %s2043 = scalar_lea.vmem [#allocation3], 17
        %v2044 = vld [vmem:[%s2043] ss:$2 sm:$0xff]
        %s2045 = scalar_lea.vmem [#allocation3], 33
        %v2046 = vld [vmem:[%s2045] ss:$2 sm:$0xff]
        %s2047 = scalar_lea.vmem [#allocation3], 49
        %v2048 = vld [vmem:[%s2047] ss:$2 sm:$0xff]
        %s2049 = scalar_lea.vmem [#allocation3], 65
        %v2050 = vld [vmem:[%s2049] ss:$2 sm:$0xff]
        %v2051 = vmax.f32 %v2032, %v2042
        %v2052 = vmax.f32 %v2034, %v2044
        %v2053 = vmax.f32 %v2036, %v2046
        %v2054 = vmax.f32 %v2038, %v2048
        %v2055 = vmax.f32 %v2040, %v2050
        %vm2058 = vcmask 1042432
        %v2059 = vrot.slane %v2051, 5
        %v2060 = vrot.slane %v2052, 5
        %v2061 = vsel %vm2058, %v2059, %v2060
        %v2063 = vmax.f32 %v2051, %v2061
        %vm2064 = vcmask 519168
        %2065 = vst.msk [vmem:[#allocation4 + $0x7] sm:$0xf] %vm2064, %v2063
        %v2067 = vrot.slane %v2053, 5
        %v2068 = vsel %vm2058, %v2060, %v2067
        %v2070 = vmax.f32 %v2052, %v2068
        %vm2071 = vcmask 521218
        %2072 = vst.msk [vmem:[#allocation4 + $0xb] sm:$0x3c] %vm2071, %v2070
        %v2074 = vrot.slane %v2054, 5
        %v2076 = vmax.f32 %v2053, %v2074
        %vm2077 = vcmask 523268
        %2078 = vst.msk [vmem:[#allocation4 + $0xf] sm:$0xf0] %vm2077, %v2076
        %v2080 = vrot.slane %v2055, 5
        %v2082 = vmax.f32 %v2054, %v2080
        %v2083 = vmax.f32 %v2055, %v2080
        %vm2084 = vcmask 523270
        %2085 = vst.msk [vmem:[#allocation4 + $0x13] sm:$0xc0] %vm2084, %v2082
        %vm2086 = vcmask 517120
        %2087 = vst.msk [vmem:[#allocation4 + $0x1b] sm:$0x3] %vm2086, %v2083
        %v2088 = vld [vmem:[#allocation4] sm:$0xff]
        %v2089 = vld [vmem:[#allocation4 + $0x8] sm:$0xff]
        %v2090 = vld [vmem:[#allocation4 + $0x10] sm:$0xff]
        %v2091 = vld [vmem:[%s3] sm:$0xff]
        %v2092 = vld [vmem:[%s3 + $0x8] sm:$0xff]
        %v2093 = vld [vmem:[%s3 + $0x10] sm:$0xff]
        %v2094 = vld [vmem:[%s3 + $0x18] sm:$0xff]
        %v2095 = vld [vmem:[%s3 + $0x20] sm:$0xff]
        %v2096 = vld [vmem:[%s3 + $0x28] sm:$0xff]
        %v2097 = vld [vmem:[%s3 + $0x30] sm:$0xff]
        %v2098 = vld [vmem:[%s3 + $0x38] sm:$0xff]
        %v2099 = vld [vmem:[#allocation4 + $0x1] sm:$0xff]
        %v2100 = vld [vmem:[#allocation4 + $0x9] sm:$0xff]
        %v2101 = vld [vmem:[#allocation4 + $0x11] sm:$0xff]
        %s2102 = scalar_lea.vmem %s3, 64
        %v2103 = vld [vmem:[%s2102] sm:$0xff]
        %v2104 = vld [vmem:[%s2102 + $0x8] sm:$0xff]
        %v2105 = vld [vmem:[%s2102 + $0x10] sm:$0xff]
        %v2106 = vld [vmem:[%s2102 + $0x18] sm:$0xff]
        %v2107 = vld [vmem:[%s2102 + $0x20] sm:$0xff]
        %v2108 = vld [vmem:[%s2102 + $0x28] sm:$0xff]
        %v2109 = vld [vmem:[%s2102 + $0x30] sm:$0xff]
        %v2110 = vld [vmem:[%s2102 + $0x38] sm:$0xff]
        %v2112 = vsel %vm2015, %v2099, 0
        %v2115 = vsel %vm2015, %v2100, 0
        %v2118 = vsel %vm2015, %v2101, 0
        %2120 = vmatprep.subr.mxu0 0.0
        %2121 = vmatpush1.msra.mxu0 %v2103
        %2122 = vmatprep.subr.mxu0 0.0
        %2123 = vmatpush1.msra.mxu0 %v2104
        %2124 = vmatprep.subr.mxu0 0.0
        %2125 = vmatpush1.msra.mxu0 %v2105
        %2126 = vmatprep.subr.mxu0 0.0
        %2127 = vmatpush1.msra.mxu0 %v2106
        %2128 = vmatprep.subr.mxu0 0.0
        %2129 = vmatpush1.msra.mxu0 %v2107
        %2130 = vmatprep.subr.mxu0 0.0
        %2131 = vmatpush1.msra.mxu0 %v2108
        %2132 = vmatprep.subr.mxu0 0.0
        %2133 = vmatpush1.msra.mxu0 %v2109
        %2134 = vmatprep.subr.mxu0 0.0
        %2135 = vmatpush1.msra.mxu0 %v2110
        %2136 = vmatprep.subr.mxu0 0.0
        %2137 = vmatpush1.msra.mxu0 0.0
        %2138 = vmatprep.subr.mxu0 0.0
        %2139 = vmatpush1.msra.mxu0 0.0
        %2140 = vmatprep.subr.mxu0 0.0
        %2141 = vmatpush1.msra.mxu0 0.0
        %2142 = vmatprep.subr.mxu0 0.0
        %2143 = vmatpush1.msra.mxu0 0.0
        %2144 = vmatprep.subr.mxu0 0.0
        %2145 = vmatpush1.msra.mxu0 0.0
        %2146 = vmatprep.subr.mxu0 0.0
        %2147 = vmatpush1.msra.mxu0 0.0
        %2148 = vmatprep.subr.mxu0 0.0
        %2149 = vmatpush1.msra.mxu0 0.0
        %2150 = vmatprep.subr.mxu0 0.0
        %2151 = vmatpush1.msra.mxu0 0.0
        %2152 = vmatprep.subr.mxu0 0.0
        %2153 = vmatpush1.msra.mxu0 0.0
        %2154 = vmatprep.subr.mxu0 0.0
        %2155 = vmatpush1.msra.mxu0 0.0
        %2156 = vmatprep.subr.mxu0 0.0
        %2157 = vmatpush1.msra.mxu0 0.0
        %2158 = vmatprep.subr.mxu0 0.0
        %2159 = vmatpush1.msra.mxu0 0.0
        %2160 = vmatprep.subr.mxu0 0.0
        %2161 = vmatpush1.msra.mxu0 0.0
        %2162 = vmatprep.subr.mxu0 0.0
        %2163 = vmatpush1.msra.mxu0 0.0
        %2164 = vmatprep.subr.mxu0 0.0
        %2165 = vmatpush1.msra.mxu0 0.0
        %2166 = vmatprep.subr.mxu0 0.0
        %2167 = vmatpush1.msra.mxu0 0.0
        %2168 = vmatprep.subr.mxu0 0.0
        %2169 = vmatpush1.msra.mxu0 0.0
        %2170 = vmatprep.subr.mxu0 0.0
        %2171 = vmatpush1.msra.mxu0 0.0
        %2172 = vmatprep.subr.mxu0 0.0
        %2173 = vmatpush1.msra.mxu0 0.0
        %2174 = vmatprep.subr.mxu0 0.0
        %2175 = vmatpush1.msra.mxu0 0.0
        %2176 = vmatprep.subr.mxu0 0.0
        %2177 = vmatpush1.msra.mxu0 0.0
        %2178 = vmatprep.subr.mxu0 0.0
        %2179 = vmatpush1.msra.mxu0 0.0
        %2180 = vmatprep.subr.mxu0 0.0
        %2181 = vmatpush1.msra.mxu0 0.0
        %2182 = vmatprep.subr.mxu0 0.0
        %2183 = vmatpush1.msra.mxu0 0.0
        %2184 = vmatprep.mubr.f32.mxu0 0.0
        %2185 = vmatmul.mubr.f32.gmra.mrb[0].mxu0 %v2112
        %v2186 = vpop.f32.mrb[0].mxu0
        %v2187 = vadd.f32 0.0, %v2186
        %v2188 = vpop.f32.mrb[0].mxu0
        %2189 = vmatprep.mubr.f32.mxu0 0.0
        %2190 = vmatmul.mubr.f32.gmra.mrb[0].mxu0 %v2115
        %v2191 = vpop.f32.mrb[0].mxu0
        %v2192 = vadd.f32 0.0, %v2191
        %v2193 = vpop.f32.mrb[0].mxu0
        %2194 = vmatprep.mubr.f32.mxu0 0.0
        %2195 = vmatmul.mubr.f32.gmra.mrb[0].mxu0 %v2118
        %v2196 = vpop.f32.mrb[0].mxu0
        %v2197 = vadd.f32 0.0, %v2196
        %v2198 = vpop.f32.mrb[0].mxu0
        %2199 = vdwg.mxu0
        %v2201 = vsel %vm2015, %v2088, 0
        %v2204 = vsel %vm2015, %v2089, 0
        %v2207 = vsel %vm2015, %v2090, 0
        %2209 = vmatprep.subr.mxu0 0.0
        %2210 = vmatpush1.msra.mxu0 %v2091
        %2211 = vmatprep.subr.mxu0 0.0
        %2212 = vmatpush1.msra.mxu0 %v2092
        %2213 = vmatprep.subr.mxu0 0.0
        %2214 = vmatpush1.msra.mxu0 %v2093
        %2215 = vmatprep.subr.mxu0 0.0
        %2216 = vmatpush1.msra.mxu0 %v2094
        %2217 = vmatprep.subr.mxu0 0.0
        %2218 = vmatpush1.msra.mxu0 %v2095
        %2219 = vmatprep.subr.mxu0 0.0
        %2220 = vmatpush1.msra.mxu0 %v2096
        %2221 = vmatprep.subr.mxu0 0.0
        %2222 = vmatpush1.msra.mxu0 %v2097
        %2223 = vmatprep.subr.mxu0 0.0
        %2224 = vmatpush1.msra.mxu0 %v2098
        %2225 = vmatprep.subr.mxu0 0.0
        %2226 = vmatpush1.msra.mxu0 0.0
        %2227 = vmatprep.subr.mxu0 0.0
        %2228 = vmatpush1.msra.mxu0 0.0
        %2229 = vmatprep.subr.mxu0 0.0
        %2230 = vmatpush1.msra.mxu0 0.0
        %2231 = vmatprep.subr.mxu0 0.0
        %2232 = vmatpush1.msra.mxu0 0.0
        %2233 = vmatprep.subr.mxu0 0.0
        %2234 = vmatpush1.msra.mxu0 0.0
        %2235 = vmatprep.subr.mxu0 0.0
        %2236 = vmatpush1.msra.mxu0 0.0
        %2237 = vmatprep.subr.mxu0 0.0
        %2238 = vmatpush1.msra.mxu0 0.0
        %2239 = vmatprep.subr.mxu0 0.0
        %2240 = vmatpush1.msra.mxu0 0.0
        %2241 = vmatprep.subr.mxu0 0.0
        %2242 = vmatpush1.msra.mxu0 0.0
        %2243 = vmatprep.subr.mxu0 0.0
        %2244 = vmatpush1.msra.mxu0 0.0
        %2245 = vmatprep.subr.mxu0 0.0
        %2246 = vmatpush1.msra.mxu0 0.0
        %2247 = vmatprep.subr.mxu0 0.0
        %2248 = vmatpush1.msra.mxu0 0.0
        %2249 = vmatprep.subr.mxu0 0.0
        %2250 = vmatpush1.msra.mxu0 0.0
        %2251 = vmatprep.subr.mxu0 0.0
        %2252 = vmatpush1.msra.mxu0 0.0
        %2253 = vmatprep.subr.mxu0 0.0
        %2254 = vmatpush1.msra.mxu0 0.0
        %2255 = vmatprep.subr.mxu0 0.0
        %2256 = vmatpush1.msra.mxu0 0.0
        %2257 = vmatprep.subr.mxu0 0.0
        %2258 = vmatpush1.msra.mxu0 0.0
        %2259 = vmatprep.subr.mxu0 0.0
        %2260 = vmatpush1.msra.mxu0 0.0
        %2261 = vmatprep.subr.mxu0 0.0
        %2262 = vmatpush1.msra.mxu0 0.0
        %2263 = vmatprep.subr.mxu0 0.0
        %2264 = vmatpush1.msra.mxu0 0.0
        %2265 = vmatprep.subr.mxu0 0.0
        %2266 = vmatpush1.msra.mxu0 0.0
        %2267 = vmatprep.subr.mxu0 0.0
        %2268 = vmatpush1.msra.mxu0 0.0
        %2269 = vmatprep.subr.mxu0 0.0
        %2270 = vmatpush1.msra.mxu0 0.0
        %2271 = vmatprep.subr.mxu0 0.0
        %2272 = vmatpush1.msra.mxu0 0.0
        %2273 = vmatprep.mubr.f32.mxu0 0.0
        %2274 = vmatmul.mubr.f32.gmra.mrb[0].mxu0 %v2201
        %v2275 = vpop.f32.mrb[0].mxu0
        %v2276 = vadd.f32 %v2187, %v2275
        %v2277 = vpop.f32.mrb[0].mxu0
        %2278 = vmatprep.mubr.f32.mxu0 0.0
        %2279 = vmatmul.mubr.f32.gmra.mrb[0].mxu0 %v2204
        %v2280 = vpop.f32.mrb[0].mxu0
        %v2281 = vadd.f32 %v2192, %v2280
        %v2282 = vpop.f32.mrb[0].mxu0
        %2283 = vmatprep.mubr.f32.mxu0 0.0
        %2284 = vmatmul.mubr.f32.gmra.mrb[0].mxu0 %v2207
        %v2285 = vpop.f32.mrb[0].mxu0
        %v2286 = vadd.f32 %v2197, %v2285
        %v2287 = vpop.f32.mrb[0].mxu0
        %2288 = vdwg.mxu0
        %v2289 = vld [vmem:[#allocation4 + $0x2] sm:$0xff]
        %v2290 = vld [vmem:[#allocation4 + $0xa] sm:$0xff]
        %v2291 = vld [vmem:[#allocation4 + $0x12] sm:$0xff]
        %s2292 = scalar_lea.vmem %s3, 128
        %v2293 = vld [vmem:[%s2292] sm:$0xff]
        %v2294 = vld [vmem:[%s2292 + $0x8] sm:$0xff]
        %v2295 = vld [vmem:[%s2292 + $0x10] sm:$0xff]
        %v2296 = vld [vmem:[%s2292 + $0x18] sm:$0xff]
        %v2297 = vld [vmem:[%s2292 + $0x20] sm:$0xff]
        %v2298 = vld [vmem:[%s2292 + $0x28] sm:$0xff]
        %v2299 = vld [vmem:[%s2292 + $0x30] sm:$0xff]
        %v2300 = vld [vmem:[%s2292 + $0x38] sm:$0xff]
        %v2302 = vsel %vm2015, %v2289, 0
        %v2305 = vsel %vm2015, %v2290, 0
        %v2308 = vsel %vm2015, %v2291, 0
        %2310 = vmatprep.subr.mxu0 0.0
        %2311 = vmatpush1.msra.mxu0 %v2293
        %2312 = vmatprep.subr.mxu0 0.0
        %2313 = vmatpush1.msra.mxu0 %v2294
        %2314 = vmatprep.subr.mxu0 0.0
        %2315 = vmatpush1.msra.mxu0 %v2295
        %2316 = vmatprep.subr.mxu0 0.0
        %2317 = vmatpush1.msra.mxu0 %v2296
        %2318 = vmatprep.subr.mxu0 0.0
        %2319 = vmatpush1.msra.mxu0 %v2297
        %2320 = vmatprep.subr.mxu0 0.0
        %2321 = vmatpush1.msra.mxu0 %v2298
        %2322 = vmatprep.subr.mxu0 0.0
        %2323 = vmatpush1.msra.mxu0 %v2299
        %2324 = vmatprep.subr.mxu0 0.0
        %2325 = vmatpush1.msra.mxu0 %v2300
        %2326 = vmatprep.subr.mxu0 0.0
        %2327 = vmatpush1.msra.mxu0 0.0
        %2328 = vmatprep.subr.mxu0 0.0
        %2329 = vmatpush1.msra.mxu0 0.0
        %2330 = vmatprep.subr.mxu0 0.0
        %2331 = vmatpush1.msra.mxu0 0.0
        %2332 = vmatprep.subr.mxu0 0.0
        %2333 = vmatpush1.msra.mxu0 0.0
        %2334 = vmatprep.subr.mxu0 0.0
        %2335 = vmatpush1.msra.mxu0 0.0
        %2336 = vmatprep.subr.mxu0 0.0
        %2337 = vmatpush1.msra.mxu0 0.0
        %2338 = vmatprep.subr.mxu0 0.0
        %2339 = vmatpush1.msra.mxu0 0.0
        %2340 = vmatprep.subr.mxu0 0.0
        %2341 = vmatpush1.msra.mxu0 0.0
        %2342 = vmatprep.subr.mxu0 0.0
        %2343 = vmatpush1.msra.mxu0 0.0
        %2344 = vmatprep.subr.mxu0 0.0
        %2345 = vmatpush1.msra.mxu0 0.0
        %2346 = vmatprep.subr.mxu0 0.0
        %2347 = vmatpush1.msra.mxu0 0.0
        %2348 = vmatprep.subr.mxu0 0.0
        %2349 = vmatpush1.msra.mxu0 0.0
        %2350 = vmatprep.subr.mxu0 0.0
        %2351 = vmatpush1.msra.mxu0 0.0
        %2352 = vmatprep.subr.mxu0 0.0
        %2353 = vmatpush1.msra.mxu0 0.0
        %2354 = vmatprep.subr.mxu0 0.0
        %2355 = vmatpush1.msra.mxu0 0.0
        %2356 = vmatprep.subr.mxu0 0.0
        %2357 = vmatpush1.msra.mxu0 0.0
        %2358 = vmatprep.subr.mxu0 0.0
        %2359 = vmatpush1.msra.mxu0 0.0
        %2360 = vmatprep.subr.mxu0 0.0
        %2361 = vmatpush1.msra.mxu0 0.0
        %2362 = vmatprep.subr.mxu0 0.0
        %2363 = vmatpush1.msra.mxu0 0.0
        %2364 = vmatprep.subr.mxu0 0.0
        %2365 = vmatpush1.msra.mxu0 0.0
        %2366 = vmatprep.subr.mxu0 0.0
        %2367 = vmatpush1.msra.mxu0 0.0
        %2368 = vmatprep.subr.mxu0 0.0
        %2369 = vmatpush1.msra.mxu0 0.0
        %2370 = vmatprep.subr.mxu0 0.0
        %2371 = vmatpush1.msra.mxu0 0.0
        %2372 = vmatprep.subr.mxu0 0.0
        %2373 = vmatpush1.msra.mxu0 0.0
        %2374 = vmatprep.mubr.f32.mxu0 0.0
        %2375 = vmatmul.mubr.f32.gmra.mrb[0].mxu0 %v2302
        %v2376 = vpop.f32.mrb[0].mxu0
        %v2377 = vadd.f32 0.0, %v2376
        %v2378 = vpop.f32.mrb[0].mxu0
        %2379 = vmatprep.mubr.f32.mxu0 0.0
        %2380 = vmatmul.mubr.f32.gmra.mrb[0].mxu0 %v2305
        %v2381 = vpop.f32.mrb[0].mxu0
        %v2382 = vadd.f32 0.0, %v2381
        %v2383 = vpop.f32.mrb[0].mxu0
        %2384 = vmatprep.mubr.f32.mxu0 0.0
        %2385 = vmatmul.mubr.f32.gmra.mrb[0].mxu0 %v2308
        %v2386 = vpop.f32.mrb[0].mxu0
        %v2387 = vadd.f32 0.0, %v2386
        %v2388 = vpop.f32.mrb[0].mxu0
        %2389 = vdwg.mxu0
        %v2390 = vadd.f32 %v2276, %v2377
        %v2391 = vadd.f32 %v2281, %v2382
        %v2392 = vadd.f32 %v2286, %v2387
        %v2393 = vld [vmem:[#allocation4 + $0x6] sm:$0xff]
        %v2394 = vld [vmem:[#allocation4 + $0xe] sm:$0xff]
        %v2395 = vld [vmem:[#allocation4 + $0x16] sm:$0xff]
        %s2396 = scalar_lea.vmem %s3, 192
        %v2397 = vld [vmem:[%s2396] sm:$0xff]
        %v2398 = vld [vmem:[%s2396 + $0x8] sm:$0xff]
        %v2399 = vld [vmem:[%s2396 + $0x10] sm:$0xff]
        %v2400 = vld [vmem:[%s2396 + $0x18] sm:$0xff]
        %v2401 = vld [vmem:[%s2396 + $0x20] sm:$0xff]
        %v2402 = vld [vmem:[%s2396 + $0x28] sm:$0xff]
        %v2403 = vld [vmem:[%s2396 + $0x30] sm:$0xff]
        %v2404 = vld [vmem:[%s2396 + $0x38] sm:$0xff]
        %v2406 = vsel %vm2015, %v2393, 0
        %v2409 = vsel %vm2015, %v2394, 0
        %v2412 = vsel %vm2015, %v2395, 0
        %2414 = vmatprep.subr.mxu0 0.0
        %2415 = vmatpush1.msra.mxu0 %v2397
        %2416 = vmatprep.subr.mxu0 0.0
        %2417 = vmatpush1.msra.mxu0 %v2398
        %2418 = vmatprep.subr.mxu0 0.0
        %2419 = vmatpush1.msra.mxu0 %v2399
        %2420 = vmatprep.subr.mxu0 0.0
        %2421 = vmatpush1.msra.mxu0 %v2400
        %2422 = vmatprep.subr.mxu0 0.0
        %2423 = vmatpush1.msra.mxu0 %v2401
        %2424 = vmatprep.subr.mxu0 0.0
        %2425 = vmatpush1.msra.mxu0 %v2402
        %2426 = vmatprep.subr.mxu0 0.0
        %2427 = vmatpush1.msra.mxu0 %v2403
        %2428 = vmatprep.subr.mxu0 0.0
        %2429 = vmatpush1.msra.mxu0 %v2404
        %2430 = vmatprep.subr.mxu0 0.0
        %2431 = vmatpush1.msra.mxu0 0.0
        %2432 = vmatprep.subr.mxu0 0.0
        %2433 = vmatpush1.msra.mxu0 0.0
        %2434 = vmatprep.subr.mxu0 0.0
        %2435 = vmatpush1.msra.mxu0 0.0
        %2436 = vmatprep.subr.mxu0 0.0
        %2437 = vmatpush1.msra.mxu0 0.0
        %2438 = vmatprep.subr.mxu0 0.0
        %2439 = vmatpush1.msra.mxu0 0.0
        %2440 = vmatprep.subr.mxu0 0.0
        %2441 = vmatpush1.msra.mxu0 0.0
        %2442 = vmatprep.subr.mxu0 0.0
        %2443 = vmatpush1.msra.mxu0 0.0
        %2444 = vmatprep.subr.mxu0 0.0
        %2445 = vmatpush1.msra.mxu0 0.0
        %2446 = vmatprep.subr.mxu0 0.0
        %2447 = vmatpush1.msra.mxu0 0.0
        %2448 = vmatprep.subr.mxu0 0.0
        %2449 = vmatpush1.msra.mxu0 0.0
        %2450 = vmatprep.subr.mxu0 0.0
        %2451 = vmatpush1.msra.mxu0 0.0
        %2452 = vmatprep.subr.mxu0 0.0
        %2453 = vmatpush1.msra.mxu0 0.0
        %2454 = vmatprep.subr.mxu0 0.0
        %2455 = vmatpush1.msra.mxu0 0.0
        %2456 = vmatprep.subr.mxu0 0.0
        %2457 = vmatpush1.msra.mxu0 0.0
        %2458 = vmatprep.subr.mxu0 0.0
        %2459 = vmatpush1.msra.mxu0 0.0
        %2460 = vmatprep.subr.mxu0 0.0
        %2461 = vmatpush1.msra.mxu0 0.0
        %2462 = vmatprep.subr.mxu0 0.0
        %2463 = vmatpush1.msra.mxu0 0.0
        %2464 = vmatprep.subr.mxu0 0.0
        %2465 = vmatpush1.msra.mxu0 0.0
        %2466 = vmatprep.subr.mxu0 0.0
        %2467 = vmatpush1.msra.mxu0 0.0
        %2468 = vmatprep.subr.mxu0 0.0
        %2469 = vmatpush1.msra.mxu0 0.0
        %2470 = vmatprep.subr.mxu0 0.0
        %2471 = vmatpush1.msra.mxu0 0.0
        %2472 = vmatprep.subr.mxu0 0.0
        %2473 = vmatpush1.msra.mxu0 0.0
        %2474 = vmatprep.subr.mxu0 0.0
        %2475 = vmatpush1.msra.mxu0 0.0
        %2476 = vmatprep.subr.mxu0 0.0
        %2477 = vmatpush1.msra.mxu0 0.0
        %2478 = vmatprep.mubr.f32.mxu0 0.0
        %2479 = vmatmul.mubr.f32.gmra.mrb[0].mxu0 %v2406
        %v2480 = vpop.f32.mrb[0].mxu0
        %v2481 = vadd.f32 0.0, %v2480
        %v2482 = vpop.f32.mrb[0].mxu0
        %2483 = vmatprep.mubr.f32.mxu0 0.0
        %2484 = vmatmul.mubr.f32.gmra.mrb[0].mxu0 %v2409
        %v2485 = vpop.f32.mrb[0].mxu0
        %v2486 = vadd.f32 0.0, %v2485
        %v2487 = vpop.f32.mrb[0].mxu0
        %2488 = vmatprep.mubr.f32.mxu0 0.0
        %2489 = vmatmul.mubr.f32.gmra.mrb[0].mxu0 %v2412
        %v2490 = vpop.f32.mrb[0].mxu0
        %v2491 = vadd.f32 0.0, %v2490
        %v2492 = vpop.f32.mrb[0].mxu0
        %2493 = vdwg.mxu0
        %v2494 = vadd.f32 %v2390, %v2481
        %v2495 = vadd.f32 %v2391, %v2486
        %v2496 = vadd.f32 %v2392, %v2491
        %v2497 = vld [vmem:[#allocation4 + $0x7] sm:$0xff]
        %v2498 = vld [vmem:[#allocation4 + $0xf] sm:$0xff]
        %v2499 = vld [vmem:[#allocation4 + $0x17] sm:$0xff]
        %s2500 = scalar_lea.vmem %s3, 256
        %v2501 = vld [vmem:[%s2500] sm:$0xff]
        %v2502 = vld [vmem:[%s2500 + $0x8] sm:$0xff]
        %v2503 = vld [vmem:[%s2500 + $0x10] sm:$0xff]
        %v2504 = vld [vmem:[%s2500 + $0x18] sm:$0xff]
        %v2505 = vld [vmem:[%s2500 + $0x20] sm:$0xff]
        %v2506 = vld [vmem:[%s2500 + $0x28] sm:$0xff]
        %v2507 = vld [vmem:[%s2500 + $0x30] sm:$0xff]
        %v2508 = vld [vmem:[%s2500 + $0x38] sm:$0xff]
        %v2510 = vsel %vm2015, %v2497, 0
        %v2513 = vsel %vm2015, %v2498, 0
        %v2516 = vsel %vm2015, %v2499, 0
        %2518 = vmatprep.subr.mxu0 0.0
        %2519 = vmatpush1.msra.mxu0 %v2501
        %2520 = vmatprep.subr.mxu0 0.0
        %2521 = vmatpush1.msra.mxu0 %v2502
        %2522 = vmatprep.subr.mxu0 0.0
        %2523 = vmatpush1.msra.mxu0 %v2503
        %2524 = vmatprep.subr.mxu0 0.0
        %2525 = vmatpush1.msra.mxu0 %v2504
        %2526 = vmatprep.subr.mxu0 0.0
        %2527 = vmatpush1.msra.mxu0 %v2505
        %2528 = vmatprep.subr.mxu0 0.0
        %2529 = vmatpush1.msra.mxu0 %v2506
        %2530 = vmatprep.subr.mxu0 0.0
        %2531 = vmatpush1.msra.mxu0 %v2507
        %2532 = vmatprep.subr.mxu0 0.0
        %2533 = vmatpush1.msra.mxu0 %v2508
        %2534 = vmatprep.subr.mxu0 0.0
        %2535 = vmatpush1.msra.mxu0 0.0
        %2536 = vmatprep.subr.mxu0 0.0
        %2537 = vmatpush1.msra.mxu0 0.0
        %2538 = vmatprep.subr.mxu0 0.0
        %2539 = vmatpush1.msra.mxu0 0.0
        %2540 = vmatprep.subr.mxu0 0.0
        %2541 = vmatpush1.msra.mxu0 0.0
        %2542 = vmatprep.subr.mxu0 0.0
        %2543 = vmatpush1.msra.mxu0 0.0
        %2544 = vmatprep.subr.mxu0 0.0
        %2545 = vmatpush1.msra.mxu0 0.0
        %2546 = vmatprep.subr.mxu0 0.0
        %2547 = vmatpush1.msra.mxu0 0.0
        %2548 = vmatprep.subr.mxu0 0.0
        %2549 = vmatpush1.msra.mxu0 0.0
        %2550 = vmatprep.subr.mxu0 0.0
        %2551 = vmatpush1.msra.mxu0 0.0
        %2552 = vmatprep.subr.mxu0 0.0
        %2553 = vmatpush1.msra.mxu0 0.0
        %2554 = vmatprep.subr.mxu0 0.0
        %2555 = vmatpush1.msra.mxu0 0.0
        %2556 = vmatprep.subr.mxu0 0.0
        %2557 = vmatpush1.msra.mxu0 0.0
        %2558 = vmatprep.subr.mxu0 0.0
        %2559 = vmatpush1.msra.mxu0 0.0
        %2560 = vmatprep.subr.mxu0 0.0
        %2561 = vmatpush1.msra.mxu0 0.0
        %2562 = vmatprep.subr.mxu0 0.0
        %2563 = vmatpush1.msra.mxu0 0.0
        %2564 = vmatprep.subr.mxu0 0.0
        %2565 = vmatpush1.msra.mxu0 0.0
        %2566 = vmatprep.subr.mxu0 0.0
        %2567 = vmatpush1.msra.mxu0 0.0
        %2568 = vmatprep.subr.mxu0 0.0
        %2569 = vmatpush1.msra.mxu0 0.0
        %2570 = vmatprep.subr.mxu0 0.0
        %2571 = vmatpush1.msra.mxu0 0.0
        %2572 = vmatprep.subr.mxu0 0.0
        %2573 = vmatpush1.msra.mxu0 0.0
        %2574 = vmatprep.subr.mxu0 0.0
        %2575 = vmatpush1.msra.mxu0 0.0
        %2576 = vmatprep.subr.mxu0 0.0
        %2577 = vmatpush1.msra.mxu0 0.0
        %2578 = vmatprep.subr.mxu0 0.0
        %2579 = vmatpush1.msra.mxu0 0.0
        %2580 = vmatprep.subr.mxu0 0.0
        %2581 = vmatpush1.msra.mxu0 0.0
        %2582 = vmatprep.mubr.f32.mxu0 0.0
        %2583 = vmatmul.mubr.f32.gmra.mrb[0].mxu0 %v2510
        %v2584 = vpop.f32.mrb[0].mxu0
        %v2585 = vadd.f32 0.0, %v2584
        %v2586 = vpop.f32.mrb[0].mxu0
        %2587 = vmatprep.mubr.f32.mxu0 0.0
        %2588 = vmatmul.mubr.f32.gmra.mrb[0].mxu0 %v2513
        %v2589 = vpop.f32.mrb[0].mxu0
        %v2590 = vadd.f32 0.0, %v2589
        %v2591 = vpop.f32.mrb[0].mxu0
        %2592 = vmatprep.mubr.f32.mxu0 0.0
        %2593 = vmatmul.mubr.f32.gmra.mrb[0].mxu0 %v2516
        %v2594 = vpop.f32.mrb[0].mxu0
        %v2595 = vadd.f32 0.0, %v2594
        %v2596 = vpop.f32.mrb[0].mxu0
        %2597 = vdwg.mxu0
        %v2598 = vadd.f32 %v2494, %v2585
        %v2599 = vadd.f32 %v2495, %v2590
        %v2600 = vadd.f32 %v2496, %v2595
        %v2601 = vld [vmem:[#allocation4 + $0x8] sm:$0xff]
        %v2602 = vld [vmem:[#allocation4 + $0x10] sm:$0xff]
        %v2603 = vld [vmem:[#allocation4 + $0x18] sm:$0xff]
        %s2604 = scalar_lea.vmem %s3, 320
        %v2605 = vld [vmem:[%s2604] sm:$0xff]
        %v2606 = vld [vmem:[%s2604 + $0x8] sm:$0xff]
        %v2607 = vld [vmem:[%s2604 + $0x10] sm:$0xff]
        %v2608 = vld [vmem:[%s2604 + $0x18] sm:$0xff]
        %v2609 = vld [vmem:[%s2604 + $0x20] sm:$0xff]
        %v2610 = vld [vmem:[%s2604 + $0x28] sm:$0xff]
        %v2611 = vld [vmem:[%s2604 + $0x30] sm:$0xff]
        %v2612 = vld [vmem:[%s2604 + $0x38] sm:$0xff]
        %v2614 = vsel %vm2015, %v2601, 0
        %v2617 = vsel %vm2015, %v2602, 0
        %v2620 = vsel %vm2015, %v2603, 0
        %2622 = vmatprep.subr.mxu0 0.0
        %2623 = vmatpush1.msra.mxu0 %v2605
        %2624 = vmatprep.subr.mxu0 0.0
        %2625 = vmatpush1.msra.mxu0 %v2606
        %2626 = vmatprep.subr.mxu0 0.0
        %2627 = vmatpush1.msra.mxu0 %v2607
        %2628 = vmatprep.subr.mxu0 0.0
        %2629 = vmatpush1.msra.mxu0 %v2608
        %2630 = vmatprep.subr.mxu0 0.0
        %2631 = vmatpush1.msra.mxu0 %v2609
        %2632 = vmatprep.subr.mxu0 0.0
        %2633 = vmatpush1.msra.mxu0 %v2610
        %2634 = vmatprep.subr.mxu0 0.0
        %2635 = vmatpush1.msra.mxu0 %v2611
        %2636 = vmatprep.subr.mxu0 0.0
        %2637 = vmatpush1.msra.mxu0 %v2612
        %2638 = vmatprep.subr.mxu0 0.0
        %2639 = vmatpush1.msra.mxu0 0.0
        %2640 = vmatprep.subr.mxu0 0.0
        %2641 = vmatpush1.msra.mxu0 0.0
        %2642 = vmatprep.subr.mxu0 0.0
        %2643 = vmatpush1.msra.mxu0 0.0
        %2644 = vmatprep.subr.mxu0 0.0
        %2645 = vmatpush1.msra.mxu0 0.0
        %2646 = vmatprep.subr.mxu0 0.0
        %2647 = vmatpush1.msra.mxu0 0.0
        %2648 = vmatprep.subr.mxu0 0.0
        %2649 = vmatpush1.msra.mxu0 0.0
        %2650 = vmatprep.subr.mxu0 0.0
        %2651 = vmatpush1.msra.mxu0 0.0
        %2652 = vmatprep.subr.mxu0 0.0
        %2653 = vmatpush1.msra.mxu0 0.0
        %2654 = vmatprep.subr.mxu0 0.0
        %2655 = vmatpush1.msra.mxu0 0.0
        %2656 = vmatprep.subr.mxu0 0.0
        %2657 = vmatpush1.msra.mxu0 0.0
        %2658 = vmatprep.subr.mxu0 0.0
        %2659 = vmatpush1.msra.mxu0 0.0
        %2660 = vmatprep.subr.mxu0 0.0
        %2661 = vmatpush1.msra.mxu0 0.0
        %2662 = vmatprep.subr.mxu0 0.0
        %2663 = vmatpush1.msra.mxu0 0.0
        %2664 = vmatprep.subr.mxu0 0.0
        %2665 = vmatpush1.msra.mxu0 0.0
        %2666 = vmatprep.subr.mxu0 0.0
        %2667 = vmatpush1.msra.mxu0 0.0
        %2668 = vmatprep.subr.mxu0 0.0
        %2669 = vmatpush1.msra.mxu0 0.0
        %2670 = vmatprep.subr.mxu0 0.0
        %2671 = vmatpush1.msra.mxu0 0.0
        %2672 = vmatprep.subr.mxu0 0.0
        %2673 = vmatpush1.msra.mxu0 0.0
        %2674 = vmatprep.subr.mxu0 0.0
        %2675 = vmatpush1.msra.mxu0 0.0
        %2676 = vmatprep.subr.mxu0 0.0
        %2677 = vmatpush1.msra.mxu0 0.0
        %2678 = vmatprep.subr.mxu0 0.0
        %2679 = vmatpush1.msra.mxu0 0.0
        %2680 = vmatprep.subr.mxu0 0.0
        %2681 = vmatpush1.msra.mxu0 0.0
        %2682 = vmatprep.subr.mxu0 0.0
        %2683 = vmatpush1.msra.mxu0 0.0
        %2684 = vmatprep.subr.mxu0 0.0
        %2685 = vmatpush1.msra.mxu0 0.0
        %2686 = vmatprep.mubr.f32.mxu0 0.0
        %2687 = vmatmul.mubr.f32.gmra.mrb[0].mxu0 %v2614
        %v2688 = vpop.f32.mrb[0].mxu0
        %v2689 = vadd.f32 0.0, %v2688
        %v2690 = vpop.f32.mrb[0].mxu0
        %2691 = vmatprep.mubr.f32.mxu0 0.0
        %2692 = vmatmul.mubr.f32.gmra.mrb[0].mxu0 %v2617
        %v2693 = vpop.f32.mrb[0].mxu0
        %v2694 = vadd.f32 0.0, %v2693
        %v2695 = vpop.f32.mrb[0].mxu0
        %2696 = vmatprep.mubr.f32.mxu0 0.0
        %2697 = vmatmul.mubr.f32.gmra.mrb[0].mxu0 %v2620
        %v2698 = vpop.f32.mrb[0].mxu0
        %v2699 = vadd.f32 0.0, %v2698
        %v2700 = vpop.f32.mrb[0].mxu0
        %2701 = vdwg.mxu0
        %v2702 = vadd.f32 %v2598, %v2689
        %v2703 = vadd.f32 %v2599, %v2694
        %v2704 = vadd.f32 %v2600, %v2699
        %v2705 = vld [vmem:[#allocation4 + $0xc] sm:$0xff]
        %v2706 = vld [vmem:[#allocation4 + $0x14] sm:$0xff]
        %v2707 = vld [vmem:[#allocation4 + $0x1c] sm:$0xff]
        %s2708 = scalar_lea.vmem %s3, 384
        %v2709 = vld [vmem:[%s2708] sm:$0xff]
        %v2710 = vld [vmem:[%s2708 + $0x8] sm:$0xff]
        %v2711 = vld [vmem:[%s2708 + $0x10] sm:$0xff]
        %v2712 = vld [vmem:[%s2708 + $0x18] sm:$0xff]
        %v2713 = vld [vmem:[%s2708 + $0x20] sm:$0xff]
        %v2714 = vld [vmem:[%s2708 + $0x28] sm:$0xff]
        %v2715 = vld [vmem:[%s2708 + $0x30] sm:$0xff]
        %v2716 = vld [vmem:[%s2708 + $0x38] sm:$0xff]
        %v2718 = vsel %vm2015, %v2705, 0
        %v2721 = vsel %vm2015, %v2706, 0
        %v2724 = vsel %vm2015, %v2707, 0
        %2726 = vmatprep.subr.mxu0 0.0
        %2727 = vmatpush1.msra.mxu0 %v2709
        %2728 = vmatprep.subr.mxu0 0.0
        %2729 = vmatpush1.msra.mxu0 %v2710
        %2730 = vmatprep.subr.mxu0 0.0
        %2731 = vmatpush1.msra.mxu0 %v2711
        %2732 = vmatprep.subr.mxu0 0.0
        %2733 = vmatpush1.msra.mxu0 %v2712
        %2734 = vmatprep.subr.mxu0 0.0
        %2735 = vmatpush1.msra.mxu0 %v2713
        %2736 = vmatprep.subr.mxu0 0.0
        %2737 = vmatpush1.msra.mxu0 %v2714
        %2738 = vmatprep.subr.mxu0 0.0
        %2739 = vmatpush1.msra.mxu0 %v2715
        %2740 = vmatprep.subr.mxu0 0.0
        %2741 = vmatpush1.msra.mxu0 %v2716
        %2742 = vmatprep.subr.mxu0 0.0
        %2743 = vmatpush1.msra.mxu0 0.0
        %2744 = vmatprep.subr.mxu0 0.0
        %2745 = vmatpush1.msra.mxu0 0.0
        %2746 = vmatprep.subr.mxu0 0.0
        %2747 = vmatpush1.msra.mxu0 0.0
        %2748 = vmatprep.subr.mxu0 0.0
        %2749 = vmatpush1.msra.mxu0 0.0
        %2750 = vmatprep.subr.mxu0 0.0
        %2751 = vmatpush1.msra.mxu0 0.0
        %2752 = vmatprep.subr.mxu0 0.0
        %2753 = vmatpush1.msra.mxu0 0.0
        %2754 = vmatprep.subr.mxu0 0.0
        %2755 = vmatpush1.msra.mxu0 0.0
        %2756 = vmatprep.subr.mxu0 0.0
        %2757 = vmatpush1.msra.mxu0 0.0
        %2758 = vmatprep.subr.mxu0 0.0
        %2759 = vmatpush1.msra.mxu0 0.0
        %2760 = vmatprep.subr.mxu0 0.0
        %2761 = vmatpush1.msra.mxu0 0.0
        %2762 = vmatprep.subr.mxu0 0.0
        %2763 = vmatpush1.msra.mxu0 0.0
        %2764 = vmatprep.subr.mxu0 0.0
        %2765 = vmatpush1.msra.mxu0 0.0
        %2766 = vmatprep.subr.mxu0 0.0
        %2767 = vmatpush1.msra.mxu0 0.0
        %2768 = vmatprep.subr.mxu0 0.0
        %2769 = vmatpush1.msra.mxu0 0.0
        %2770 = vmatprep.subr.mxu0 0.0
        %2771 = vmatpush1.msra.mxu0 0.0
        %2772 = vmatprep.subr.mxu0 0.0
        %2773 = vmatpush1.msra.mxu0 0.0
        %2774 = vmatprep.subr.mxu0 0.0
        %2775 = vmatpush1.msra.mxu0 0.0
        %2776 = vmatprep.subr.mxu0 0.0
        %2777 = vmatpush1.msra.mxu0 0.0
        %2778 = vmatprep.subr.mxu0 0.0
        %2779 = vmatpush1.msra.mxu0 0.0
        %2780 = vmatprep.subr.mxu0 0.0
        %2781 = vmatpush1.msra.mxu0 0.0
        %2782 = vmatprep.subr.mxu0 0.0
        %2783 = vmatpush1.msra.mxu0 0.0
        %2784 = vmatprep.subr.mxu0 0.0
        %2785 = vmatpush1.msra.mxu0 0.0
        %2786 = vmatprep.subr.mxu0 0.0
        %2787 = vmatpush1.msra.mxu0 0.0
        %2788 = vmatprep.subr.mxu0 0.0
        %2789 = vmatpush1.msra.mxu0 0.0
        %2790 = vmatprep.mubr.f32.mxu0 0.0
        %2791 = vmatmul.mubr.f32.gmra.mrb[0].mxu0 %v2718
        %v2792 = vpop.f32.mrb[0].mxu0
        %v2793 = vadd.f32 0.0, %v2792
        %v2794 = vpop.f32.mrb[0].mxu0
        %2795 = vmatprep.mubr.f32.mxu0 0.0
        %2796 = vmatmul.mubr.f32.gmra.mrb[0].mxu0 %v2721
        %v2797 = vpop.f32.mrb[0].mxu0
        %v2798 = vadd.f32 0.0, %v2797
        %v2799 = vpop.f32.mrb[0].mxu0
        %2800 = vmatprep.mubr.f32.mxu0 0.0
        %2801 = vmatmul.mubr.f32.gmra.mrb[0].mxu0 %v2724
        %v2802 = vpop.f32.mrb[0].mxu0
        %v2803 = vadd.f32 0.0, %v2802
        %v2804 = vpop.f32.mrb[0].mxu0
        %2805 = vdwg.mxu0
        %v2806 = vadd.f32 %v2702, %v2793
        %v2807 = vadd.f32 %v2703, %v2798
        %v2808 = vadd.f32 %v2704, %v2803
        %v2809 = vld [vmem:[#allocation4 + $0xd] sm:$0xff]
        %v2810 = vld [vmem:[#allocation4 + $0x15] sm:$0xff]
        %v2811 = vld [vmem:[#allocation4 + $0x1d] sm:$0xff]
        %s2812 = scalar_lea.vmem %s3, 448
        %v2813 = vld [vmem:[%s2812] sm:$0xff]
        %v2814 = vld [vmem:[%s2812 + $0x8] sm:$0xff]
        %v2815 = vld [vmem:[%s2812 + $0x10] sm:$0xff]
        %v2816 = vld [vmem:[%s2812 + $0x18] sm:$0xff]
        %v2817 = vld [vmem:[%s2812 + $0x20] sm:$0xff]
        %v2818 = vld [vmem:[%s2812 + $0x28] sm:$0xff]
        %v2819 = vld [vmem:[%s2812 + $0x30] sm:$0xff]
        %v2820 = vld [vmem:[%s2812 + $0x38] sm:$0xff]
        %v2822 = vsel %vm2015, %v2809, 0
        %v2825 = vsel %vm2015, %v2810, 0
        %v2828 = vsel %vm2015, %v2811, 0
        %2830 = vmatprep.subr.mxu0 0.0
        %2831 = vmatpush1.msra.mxu0 %v2813
        %2832 = vmatprep.subr.mxu0 0.0
        %2833 = vmatpush1.msra.mxu0 %v2814
        %2834 = vmatprep.subr.mxu0 0.0
        %2835 = vmatpush1.msra.mxu0 %v2815
        %2836 = vmatprep.subr.mxu0 0.0
        %2837 = vmatpush1.msra.mxu0 %v2816
        %2838 = vmatprep.subr.mxu0 0.0
        %2839 = vmatpush1.msra.mxu0 %v2817
        %2840 = vmatprep.subr.mxu0 0.0
        %2841 = vmatpush1.msra.mxu0 %v2818
        %2842 = vmatprep.subr.mxu0 0.0
        %2843 = vmatpush1.msra.mxu0 %v2819
        %2844 = vmatprep.subr.mxu0 0.0
        %2845 = vmatpush1.msra.mxu0 %v2820
        %2846 = vmatprep.subr.mxu0 0.0
        %2847 = vmatpush1.msra.mxu0 0.0
        %2848 = vmatprep.subr.mxu0 0.0
        %2849 = vmatpush1.msra.mxu0 0.0
        %2850 = vmatprep.subr.mxu0 0.0
        %2851 = vmatpush1.msra.mxu0 0.0
        %2852 = vmatprep.subr.mxu0 0.0
        %2853 = vmatpush1.msra.mxu0 0.0
        %2854 = vmatprep.subr.mxu0 0.0
        %2855 = vmatpush1.msra.mxu0 0.0
        %2856 = vmatprep.subr.mxu0 0.0
        %2857 = vmatpush1.msra.mxu0 0.0
        %2858 = vmatprep.subr.mxu0 0.0
        %2859 = vmatpush1.msra.mxu0 0.0
        %2860 = vmatprep.subr.mxu0 0.0
        %2861 = vmatpush1.msra.mxu0 0.0
        %2862 = vmatprep.subr.mxu0 0.0
        %2863 = vmatpush1.msra.mxu0 0.0
        %2864 = vmatprep.subr.mxu0 0.0
        %2865 = vmatpush1.msra.mxu0 0.0
        %2866 = vmatprep.subr.mxu0 0.0
        %2867 = vmatpush1.msra.mxu0 0.0
        %2868 = vmatprep.subr.mxu0 0.0
        %2869 = vmatpush1.msra.mxu0 0.0
        %2870 = vmatprep.subr.mxu0 0.0
        %2871 = vmatpush1.msra.mxu0 0.0
        %2872 = vmatprep.subr.mxu0 0.0
        %2873 = vmatpush1.msra.mxu0 0.0
        %2874 = vmatprep.subr.mxu0 0.0
        %2875 = vmatpush1.msra.mxu0 0.0
        %2876 = vmatprep.subr.mxu0 0.0
        %2877 = vmatpush1.msra.mxu0 0.0
        %2878 = vmatprep.subr.mxu0 0.0
        %2879 = vmatpush1.msra.mxu0 0.0
        %2880 = vmatprep.subr.mxu0 0.0
        %2881 = vmatpush1.msra.mxu0 0.0
        %2882 = vmatprep.subr.mxu0 0.0
        %2883 = vmatpush1.msra.mxu0 0.0
        %2884 = vmatprep.subr.mxu0 0.0
        %2885 = vmatpush1.msra.mxu0 0.0
        %2886 = vmatprep.subr.mxu0 0.0
        %2887 = vmatpush1.msra.mxu0 0.0
        %2888 = vmatprep.subr.mxu0 0.0
        %2889 = vmatpush1.msra.mxu0 0.0
        %2890 = vmatprep.subr.mxu0 0.0
        %2891 = vmatpush1.msra.mxu0 0.0
        %2892 = vmatprep.subr.mxu0 0.0
        %2893 = vmatpush1.msra.mxu0 0.0
        %2894 = vmatprep.mubr.f32.mxu0 0.0
        %2895 = vmatmul.mubr.f32.gmra.mrb[0].mxu0 %v2822
        %v2896 = vpop.f32.mrb[0].mxu0
        %v2897 = vadd.f32 0.0, %v2896
        %v2898 = vpop.f32.mrb[0].mxu0
        %2899 = vmatprep.mubr.f32.mxu0 0.0
        %2900 = vmatmul.mubr.f32.gmra.mrb[0].mxu0 %v2825
        %v2901 = vpop.f32.mrb[0].mxu0
        %v2902 = vadd.f32 0.0, %v2901
        %v2903 = vpop.f32.mrb[0].mxu0
        %2904 = vmatprep.mubr.f32.mxu0 0.0
        %2905 = vmatmul.mubr.f32.gmra.mrb[0].mxu0 %v2828
        %v2906 = vpop.f32.mrb[0].mxu0
        %v2907 = vadd.f32 0.0, %v2906
        %v2908 = vpop.f32.mrb[0].mxu0
        %2909 = vdwg.mxu0
        %v2910 = vadd.f32 %v2806, %v2897
        %v2911 = vadd.f32 %v2807, %v2902
        %v2912 = vadd.f32 %v2808, %v2907
        %v2913 = vld [vmem:[#allocation4 + $0xe] sm:$0xff]
        %v2914 = vld [vmem:[#allocation4 + $0x16] sm:$0xff]
        %v2915 = vld [vmem:[#allocation4 + $0x1e] sm:$0xff]
        %s2916 = scalar_lea.vmem %s3, 512
        %v2917 = vld [vmem:[%s2916] sm:$0xff]
        %v2918 = vld [vmem:[%s2916 + $0x8] sm:$0xff]
        %v2919 = vld [vmem:[%s2916 + $0x10] sm:$0xff]
        %v2920 = vld [vmem:[%s2916 + $0x18] sm:$0xff]
        %v2921 = vld [vmem:[%s2916 + $0x20] sm:$0xff]
        %v2922 = vld [vmem:[%s2916 + $0x28] sm:$0xff]
        %v2923 = vld [vmem:[%s2916 + $0x30] sm:$0xff]
        %v2924 = vld [vmem:[%s2916 + $0x38] sm:$0xff]
        %v2926 = vsel %vm2015, %v2913, 0
        %v2929 = vsel %vm2015, %v2914, 0
        %v2932 = vsel %vm2015, %v2915, 0
        %2934 = vmatprep.subr.mxu0 0.0
        %2935 = vmatpush1.msra.mxu0 %v2917
        %2936 = vmatprep.subr.mxu0 0.0
        %2937 = vmatpush1.msra.mxu0 %v2918
        %2938 = vmatprep.subr.mxu0 0.0
        %2939 = vmatpush1.msra.mxu0 %v2919
        %2940 = vmatprep.subr.mxu0 0.0
        %2941 = vmatpush1.msra.mxu0 %v2920
        %2942 = vmatprep.subr.mxu0 0.0
        %2943 = vmatpush1.msra.mxu0 %v2921
        %2944 = vmatprep.subr.mxu0 0.0
        %2945 = vmatpush1.msra.mxu0 %v2922
        %2946 = vmatprep.subr.mxu0 0.0
        %2947 = vmatpush1.msra.mxu0 %v2923
        %2948 = vmatprep.subr.mxu0 0.0
        %2949 = vmatpush1.msra.mxu0 %v2924
        %2950 = vmatprep.subr.mxu0 0.0
        %2951 = vmatpush1.msra.mxu0 0.0
        %2952 = vmatprep.subr.mxu0 0.0
        %2953 = vmatpush1.msra.mxu0 0.0
        %2954 = vmatprep.subr.mxu0 0.0
        %2955 = vmatpush1.msra.mxu0 0.0
        %2956 = vmatprep.subr.mxu0 0.0
        %2957 = vmatpush1.msra.mxu0 0.0
        %2958 = vmatprep.subr.mxu0 0.0
        %2959 = vmatpush1.msra.mxu0 0.0
        %2960 = vmatprep.subr.mxu0 0.0
        %2961 = vmatpush1.msra.mxu0 0.0
        %2962 = vmatprep.subr.mxu0 0.0
        %2963 = vmatpush1.msra.mxu0 0.0
        %2964 = vmatprep.subr.mxu0 0.0
        %2965 = vmatpush1.msra.mxu0 0.0
        %2966 = vmatprep.subr.mxu0 0.0
        %2967 = vmatpush1.msra.mxu0 0.0
        %2968 = vmatprep.subr.mxu0 0.0
        %2969 = vmatpush1.msra.mxu0 0.0
        %2970 = vmatprep.subr.mxu0 0.0
        %2971 = vmatpush1.msra.mxu0 0.0
        %2972 = vmatprep.subr.mxu0 0.0
        %2973 = vmatpush1.msra.mxu0 0.0
        %2974 = vmatprep.subr.mxu0 0.0
        %2975 = vmatpush1.msra.mxu0 0.0
        %2976 = vmatprep.subr.mxu0 0.0
        %2977 = vmatpush1.msra.mxu0 0.0
        %2978 = vmatprep.subr.mxu0 0.0
        %2979 = vmatpush1.msra.mxu0 0.0
        %2980 = vmatprep.subr.mxu0 0.0
        %2981 = vmatpush1.msra.mxu0 0.0
        %2982 = vmatprep.subr.mxu0 0.0
        %2983 = vmatpush1.msra.mxu0 0.0
        %2984 = vmatprep.subr.mxu0 0.0
        %2985 = vmatpush1.msra.mxu0 0.0
        %2986 = vmatprep.subr.mxu0 0.0
        %2987 = vmatpush1.msra.mxu0 0.0
        %2988 = vmatprep.subr.mxu0 0.0
        %2989 = vmatpush1.msra.mxu0 0.0
        %2990 = vmatprep.subr.mxu0 0.0
        %2991 = vmatpush1.msra.mxu0 0.0
        %2992 = vmatprep.subr.mxu0 0.0
        %2993 = vmatpush1.msra.mxu0 0.0
        %2994 = vmatprep.subr.mxu0 0.0
        %2995 = vmatpush1.msra.mxu0 0.0
        %2996 = vmatprep.subr.mxu0 0.0
        %2997 = vmatpush1.msra.mxu0 0.0
        %2998 = vmatprep.mubr.f32.mxu0 0.0
        %2999 = vmatmul.mubr.f32.gmra.mrb[0].mxu0 %v2926
        %v3000 = vpop.f32.mrb[0].mxu0
        %v3001 = vadd.f32 0.0, %v3000
        %v3002 = vpop.f32.mrb[0].mxu0
        %3003 = vmatprep.mubr.f32.mxu0 0.0
        %3004 = vmatmul.mubr.f32.gmra.mrb[0].mxu0 %v2929
        %v3005 = vpop.f32.mrb[0].mxu0
        %v3006 = vadd.f32 0.0, %v3005
        %v3007 = vpop.f32.mrb[0].mxu0
        %3008 = vmatprep.mubr.f32.mxu0 0.0
        %3009 = vmatmul.mubr.f32.gmra.mrb[0].mxu0 %v2932
        %v3010 = vpop.f32.mrb[0].mxu0
        %v3011 = vadd.f32 0.0, %v3010
        %v3012 = vpop.f32.mrb[0].mxu0
        %3013 = vdwg.mxu0
        %v3014 = vadd.f32 %v2910, %v3001
        %v3015 = vadd.f32 %v2911, %v3006
        %v3016 = vadd.f32 %v2912, %v3011
        %v3017 = vld [vmem:[%s4] sm:$0x1]
        %v3019 = vlaneseq
        %v3020 = vshrl.u32 %v3019, 7
        %v3021 = vsub.s32 0, %v3020
        %v3022 = vrot.slane %v3017, %v3021
        %v3024 = vadd.f32 %v3014, %v3022
        %v3025 = vadd.f32 %v3015, %v3022
        %v3026 = vadd.f32 %v3016, %v3022
        %v3027 = vmax.f32 %v3024, 0.0
        %v3028 = vmax.f32 %v3025, 0.0
        %v3029 = vmax.f32 %v3026, 0.0
        %3030 = vst [vmem:[#allocation5] sm:$0xff] %v3027
        %3031 = vst [vmem:[#allocation5 + $0x8] sm:$0xff] %v3028
        %3032 = vst [vmem:[#allocation5 + $0x10] sm:$0xff] %v3029
        %v3033 = vld [vmem:[#allocation5] ss:$2 sm:$0xff]
        %s3034 = scalar_lea.vmem [#allocation5], 16
        %v3035 = vld [vmem:[%s3034] ss:$2 sm:$0xf]
        %s3036 = scalar_lea.vmem [#allocation5], 1
        %v3037 = vld [vmem:[%s3036] ss:$2 sm:$0xff]
        %s3038 = scalar_lea.vmem [#allocation5], 17
        %v3039 = vld [vmem:[%s3038] ss:$2 sm:$0xf]
        %v3040 = vmax.f32 %v3033, %v3037
        %v3041 = vmax.f32 %v3035, %v3039
        %v3042 = vld [vmem:[%s6] sm:$0xf]
        %v3044 = vrot.slane %v3040, 3
        %v3046 = vmax.f32 %v3040, %v3044
        %v3047 = vld [vmem:[%s5] sm:$0xff]
        %v3048 = vld [vmem:[%s5 + $0x8] sm:$0xff]
        %v3049 = vld [vmem:[%s5 + $0x10] sm:$0xff]
        %v3050 = vld [vmem:[%s5 + $0x18] sm:$0xff]
        %v3051 = vld [vmem:[%s5 + $0x20] sm:$0xff]
        %v3052 = vld [vmem:[%s5 + $0x28] sm:$0xff]
        %v3053 = vld [vmem:[%s5 + $0x30] sm:$0xff]
        %v3054 = vld [vmem:[%s5 + $0x38] sm:$0xff]
        %v3055 = vld [vmem:[%s5 + $0x40] sm:$0xff]
        %v3056 = vld [vmem:[%s5 + $0x48] sm:$0xff]
        %v3057 = vld [vmem:[%s5 + $0x50] sm:$0xff]
        %v3058 = vld [vmem:[%s5 + $0x58] sm:$0xff]
        %v3059 = vld [vmem:[%s5 + $0x60] sm:$0xff]
        %v3060 = vld [vmem:[%s5 + $0x68] sm:$0xff]
        %v3061 = vld [vmem:[%s5 + $0x70] sm:$0xff]
        %v3062 = vld [vmem:[%s5 + $0x78] sm:$0xff]
        %v3063 = vld [vmem:[%s5 + $0x80] sm:$0xff]
        %v3064 = vld [vmem:[%s5 + $0x88] sm:$0xff]
        %v3065 = vld [vmem:[%s5 + $0x90] sm:$0xff]
        %v3066 = vld [vmem:[%s5 + $0x98] sm:$0xff]
        %v3067 = vld [vmem:[%s5 + $0xa0] sm:$0xff]
        %v3068 = vld [vmem:[%s5 + $0xa8] sm:$0xff]
        %v3069 = vld [vmem:[%s5 + $0xb0] sm:$0xff]
        %v3070 = vld [vmem:[%s5 + $0xb8] sm:$0xff]
        %v3071 = vld [vmem:[%s5 + $0xc0] sm:$0xff]
        %v3072 = vld [vmem:[%s5 + $0xc8] sm:$0xff]
        %v3073 = vld [vmem:[%s5 + $0xd0] sm:$0xff]
        %v3074 = vld [vmem:[%s5 + $0xd8] sm:$0xff]
        %v3075 = vld [vmem:[%s5 + $0xe0] sm:$0xff]
        %v3076 = vld [vmem:[%s5 + $0xe8] sm:$0xff]
        %v3077 = vld [vmem:[%s5 + $0xf0] sm:$0xff]
        %v3078 = vld [vmem:[%s5 + $0xf8] sm:$0xff]
        %v3079 = vld [vmem:[%s5 + $0x100] sm:$0xff]
        %v3080 = vld [vmem:[%s5 + $0x108] sm:$0xff]
        %v3081 = vld [vmem:[%s5 + $0x110] sm:$0xff]
        %v3082 = vld [vmem:[%s5 + $0x118] sm:$0xff]
        %v3083 = vld [vmem:[%s5 + $0x120] sm:$0xff]
        %v3084 = vld [vmem:[%s5 + $0x128] sm:$0xff]
        %v3085 = vld [vmem:[%s5 + $0x130] sm:$0xff]
        %v3086 = vld [vmem:[%s5 + $0x138] sm:$0xff]
        %v3087 = vld [vmem:[%s5 + $0x140] sm:$0xff]
        %v3088 = vld [vmem:[%s5 + $0x148] sm:$0xff]
        %v3089 = vld [vmem:[%s5 + $0x150] sm:$0xff]
        %v3090 = vld [vmem:[%s5 + $0x158] sm:$0xff]
        %v3091 = vld [vmem:[%s5 + $0x160] sm:$0xff]
        %v3092 = vld [vmem:[%s5 + $0x168] sm:$0xff]
        %v3093 = vld [vmem:[%s5 + $0x170] sm:$0xff]
        %v3094 = vld [vmem:[%s5 + $0x178] sm:$0xff]
        %v3095 = vld [vmem:[%s5 + $0x180] sm:$0xff]
        %v3096 = vld [vmem:[%s5 + $0x188] sm:$0xff]
        %v3097 = vld [vmem:[%s5 + $0x190] sm:$0xff]
        %v3098 = vld [vmem:[%s5 + $0x198] sm:$0xff]
        %v3099 = vld [vmem:[%s5 + $0x1a0] sm:$0xff]
        %v3100 = vld [vmem:[%s5 + $0x1a8] sm:$0xff]
        %v3101 = vld [vmem:[%s5 + $0x1b0] sm:$0xff]
        %v3102 = vld [vmem:[%s5 + $0x1b8] sm:$0xff]
        %v3103 = vld [vmem:[%s5 + $0x1c0] sm:$0xff]
        %v3104 = vld [vmem:[%s5 + $0x1c8] sm:$0xff]
        %v3105 = vld [vmem:[%s5 + $0x1d0] sm:$0xff]
        %v3106 = vld [vmem:[%s5 + $0x1d8] sm:$0xff]
        %v3107 = vld [vmem:[%s5 + $0x1e0] sm:$0xff]
        %v3108 = vld [vmem:[%s5 + $0x1e8] sm:$0xff]
        %v3109 = vld [vmem:[%s5 + $0x1f0] sm:$0xff]
        %v3110 = vld [vmem:[%s5 + $0x1f8] sm:$0xff]
        %3111 = vmatprep.subr.mxu0 %v3048
        %3112 = vmatpush1.msra.mxu0 %v3047
        %3113 = vmatprep.subr.mxu0 %v3052
        %3114 = vmatpush1.msra.mxu0 %v3051
        %3115 = vmatprep.subr.mxu0 %v3056
        %3116 = vmatpush1.msra.mxu0 %v3055
        %3117 = vmatprep.subr.mxu0 %v3060
        %3118 = vmatpush1.msra.mxu0 %v3059
        %3119 = vmatprep.subr.mxu0 %v3064
        %3120 = vmatpush1.msra.mxu0 %v3063
        %3121 = vmatprep.subr.mxu0 %v3068
        %3122 = vmatpush1.msra.mxu0 %v3067
        %3123 = vmatprep.subr.mxu0 %v3072
        %3124 = vmatpush1.msra.mxu0 %v3071
        %3125 = vmatprep.subr.mxu0 %v3076
        %3126 = vmatpush1.msra.mxu0 %v3075
        %3127 = vmatprep.subr.mxu0 %v3080
        %3128 = vmatpush1.msra.mxu0 %v3079
        %3129 = vmatprep.subr.mxu0 %v3084
        %3130 = vmatpush1.msra.mxu0 %v3083
        %3131 = vmatprep.subr.mxu0 %v3088
        %3132 = vmatpush1.msra.mxu0 %v3087
        %3133 = vmatprep.subr.mxu0 %v3092
        %3134 = vmatpush1.msra.mxu0 %v3091
        %3135 = vmatprep.subr.mxu0 %v3096
        %3136 = vmatpush1.msra.mxu0 %v3095
        %3137 = vmatprep.subr.mxu0 %v3100
        %3138 = vmatpush1.msra.mxu0 %v3099
        %3139 = vmatprep.subr.mxu0 %v3104
        %3140 = vmatpush1.msra.mxu0 %v3103
        %3141 = vmatprep.subr.mxu0 %v3108
        %3142 = vmatpush1.msra.mxu0 %v3107
        %3143 = vmatprep.subr.mxu0 0.0
        %3144 = vmatpush1.msra.mxu0 0.0
        %3145 = vmatprep.subr.mxu0 0.0
        %3146 = vmatpush1.msra.mxu0 0.0
        %3147 = vmatprep.subr.mxu0 0.0
        %3148 = vmatpush1.msra.mxu0 0.0
        %3149 = vmatprep.subr.mxu0 0.0
        %3150 = vmatpush1.msra.mxu0 0.0
        %3151 = vmatprep.subr.mxu0 0.0
        %3152 = vmatpush1.msra.mxu0 0.0
        %3153 = vmatprep.subr.mxu0 0.0
        %3154 = vmatpush1.msra.mxu0 0.0
        %3155 = vmatprep.subr.mxu0 0.0
        %3156 = vmatpush1.msra.mxu0 0.0
        %3157 = vmatprep.subr.mxu0 0.0
        %3158 = vmatpush1.msra.mxu0 0.0
        %3159 = vmatprep.subr.mxu0 0.0
        %3160 = vmatpush1.msra.mxu0 0.0
        %3161 = vmatprep.subr.mxu0 0.0
        %3162 = vmatpush1.msra.mxu0 0.0
        %3163 = vmatprep.subr.mxu0 0.0
        %3164 = vmatpush1.msra.mxu0 0.0
        %3165 = vmatprep.subr.mxu0 0.0
        %3166 = vmatpush1.msra.mxu0 0.0
        %3167 = vmatprep.subr.mxu0 0.0
        %3168 = vmatpush1.msra.mxu0 0.0
        %3169 = vmatprep.subr.mxu0 0.0
        %3170 = vmatpush1.msra.mxu0 0.0
        %3171 = vmatprep.subr.mxu0 0.0
        %3172 = vmatpush1.msra.mxu0 0.0
        %3173 = vmatprep.subr.mxu0 0.0
        %3174 = vmatpush1.msra.mxu0 0.0
        %3175 = vmatprep.mubr.f32.mxu0 0.0
        %3176 = vmatmul.mubr.f32.gmra.mrb[0].mxu0 %v3046
        %v3177 = vpop.f32.mrb[0].mxu0
        %v3178 = vadd.f32 0.0, %v3177
        %v3179 = vpop.f32.mrb[0].mxu0
        %v3180 = vadd.f32 0.0, %v3179
        %3181 = vdwg.mxu0
        %3182 = vmatprep.subr.mxu0 %v3050
        %3183 = vmatpush1.msra.mxu0 %v3049
        %3184 = vmatprep.subr.mxu0 %v3054
        %3185 = vmatpush1.msra.mxu0 %v3053
        %3186 = vmatprep.subr.mxu0 %v3058
        %3187 = vmatpush1.msra.mxu0 %v3057
        %3188 = vmatprep.subr.mxu0 %v3062
        %3189 = vmatpush1.msra.mxu0 %v3061
        %3190 = vmatprep.subr.mxu0 %v3066
        %3191 = vmatpush1.msra.mxu0 %v3065
        %3192 = vmatprep.subr.mxu0 %v3070
        %3193 = vmatpush1.msra.mxu0 %v3069
        %3194 = vmatprep.subr.mxu0 %v3074
        %3195 = vmatpush1.msra.mxu0 %v3073
        %3196 = vmatprep.subr.mxu0 %v3078
        %3197 = vmatpush1.msra.mxu0 %v3077
        %3198 = vmatprep.subr.mxu0 %v3082
        %3199 = vmatpush1.msra.mxu0 %v3081
        %3200 = vmatprep.subr.mxu0 %v3086
        %3201 = vmatpush1.msra.mxu0 %v3085
        %3202 = vmatprep.subr.mxu0 %v3090
        %3203 = vmatpush1.msra.mxu0 %v3089
        %3204 = vmatprep.subr.mxu0 %v3094
        %3205 = vmatpush1.msra.mxu0 %v3093
        %3206 = vmatprep.subr.mxu0 %v3098
        %3207 = vmatpush1.msra.mxu0 %v3097
        %3208 = vmatprep.subr.mxu0 %v3102
        %3209 = vmatpush1.msra.mxu0 %v3101
        %3210 = vmatprep.subr.mxu0 %v3106
        %3211 = vmatpush1.msra.mxu0 %v3105
        %3212 = vmatprep.subr.mxu0 %v3110
        %3213 = vmatpush1.msra.mxu0 %v3109
        %3214 = vmatprep.subr.mxu0 0.0
        %3215 = vmatpush1.msra.mxu0 0.0
        %3216 = vmatprep.subr.mxu0 0.0
        %3217 = vmatpush1.msra.mxu0 0.0
        %3218 = vmatprep.subr.mxu0 0.0
        %3219 = vmatpush1.msra.mxu0 0.0
        %3220 = vmatprep.subr.mxu0 0.0
        %3221 = vmatpush1.msra.mxu0 0.0
        %3222 = vmatprep.subr.mxu0 0.0
        %3223 = vmatpush1.msra.mxu0 0.0
        %3224 = vmatprep.subr.mxu0 0.0
        %3225 = vmatpush1.msra.mxu0 0.0
        %3226 = vmatprep.subr.mxu0 0.0
        %3227 = vmatpush1.msra.mxu0 0.0
        %3228 = vmatprep.subr.mxu0 0.0
        %3229 = vmatpush1.msra.mxu0 0.0
        %3230 = vmatprep.subr.mxu0 0.0
        %3231 = vmatpush1.msra.mxu0 0.0
        %3232 = vmatprep.subr.mxu0 0.0
        %3233 = vmatpush1.msra.mxu0 0.0
        %3234 = vmatprep.subr.mxu0 0.0
        %3235 = vmatpush1.msra.mxu0 0.0
        %3236 = vmatprep.subr.mxu0 0.0
        %3237 = vmatpush1.msra.mxu0 0.0
        %3238 = vmatprep.subr.mxu0 0.0
        %3239 = vmatpush1.msra.mxu0 0.0
        %3240 = vmatprep.subr.mxu0 0.0
        %3241 = vmatpush1.msra.mxu0 0.0
        %3242 = vmatprep.subr.mxu0 0.0
        %3243 = vmatpush1.msra.mxu0 0.0
        %3244 = vmatprep.subr.mxu0 0.0
        %3245 = vmatpush1.msra.mxu0 0.0
        %3246 = vmatprep.mubr.f32.mxu0 0.0
        %3247 = vmatmul.mubr.f32.gmra.mrb[0].mxu0 %v3046
        %v3248 = vpop.f32.mrb[0].mxu0
        %v3249 = vadd.f32 0.0, %v3248
        %v3250 = vpop.f32.mrb[0].mxu0
        %v3251 = vadd.f32 0.0, %v3250
        %3252 = vdwg.mxu0
        %v3257 = vcombine.low %v3178, %v3180
        %v3258 = vcombine.low %v3249, %v3251
        %v3260 = vunpack.c.l.s4 1966171168
        %v3261 = vunpack.c.0.s8 %v3260
        %v3262 = vlaneseq
        %v3263 = vshrl.u32 %v3262, 7
        %v3264 = vsub.s32 %v3261, %v3263
        %v3265 = vrot.slane %v3257, %v3264
        %v3267 = vunpack.c.l.s4 1966171168
        %v3268 = vunpack.c.0.s8 %v3267
        %v3269 = vlaneseq
        %v3270 = vshrl.u32 %v3269, 7
        %v3271 = vsub.s32 %v3268, %v3270
        %v3272 = vrot.slane %v3258, %v3271
        %v3273 = vcombine.low %v3265, %v3272
        %v3275 = vunpack.c.l.s4 1966171168
        %v3276 = vunpack.c.0.s8 %v3275
        %v3277 = vlaneseq
        %v3278 = vshrl.u32 %v3277, 7
        %v3279 = vsub.s32 %v3276, %v3278
        %v3280 = vrot.slane %v3273, %v3279
        %v3282 = vadd.f32 %v3042, %v3280
        %s3283 = scalar_lea.vmem %s5, 512
        %v3284 = vld [vmem:[%s3283] sm:$0xff]
        %v3285 = vld [vmem:[%s3283 + $0x8] sm:$0xff]
        %v3286 = vld [vmem:[%s3283 + $0x10] sm:$0xff]
        %v3287 = vld [vmem:[%s3283 + $0x18] sm:$0xff]
        %v3288 = vld [vmem:[%s3283 + $0x20] sm:$0xff]
        %v3289 = vld [vmem:[%s3283 + $0x28] sm:$0xff]
        %v3290 = vld [vmem:[%s3283 + $0x30] sm:$0xff]
        %v3291 = vld [vmem:[%s3283 + $0x38] sm:$0xff]
        %v3292 = vld [vmem:[%s3283 + $0x40] sm:$0xff]
        %v3293 = vld [vmem:[%s3283 + $0x48] sm:$0xff]
        %v3294 = vld [vmem:[%s3283 + $0x50] sm:$0xff]
        %v3295 = vld [vmem:[%s3283 + $0x58] sm:$0xff]
        %v3296 = vld [vmem:[%s3283 + $0x60] sm:$0xff]
        %v3297 = vld [vmem:[%s3283 + $0x68] sm:$0xff]
        %v3298 = vld [vmem:[%s3283 + $0x70] sm:$0xff]
        %v3299 = vld [vmem:[%s3283 + $0x78] sm:$0xff]
        %v3300 = vld [vmem:[%s3283 + $0x80] sm:$0xff]
        %v3301 = vld [vmem:[%s3283 + $0x88] sm:$0xff]
        %v3302 = vld [vmem:[%s3283 + $0x90] sm:$0xff]
        %v3303 = vld [vmem:[%s3283 + $0x98] sm:$0xff]
        %v3304 = vld [vmem:[%s3283 + $0xa0] sm:$0xff]
        %v3305 = vld [vmem:[%s3283 + $0xa8] sm:$0xff]
        %v3306 = vld [vmem:[%s3283 + $0xb0] sm:$0xff]
        %v3307 = vld [vmem:[%s3283 + $0xb8] sm:$0xff]
        %v3308 = vld [vmem:[%s3283 + $0xc0] sm:$0xff]
        %v3309 = vld [vmem:[%s3283 + $0xc8] sm:$0xff]
        %v3310 = vld [vmem:[%s3283 + $0xd0] sm:$0xff]
        %v3311 = vld [vmem:[%s3283 + $0xd8] sm:$0xff]
        %v3312 = vld [vmem:[%s3283 + $0xe0] sm:$0xff]
        %v3313 = vld [vmem:[%s3283 + $0xe8] sm:$0xff]
        %v3314 = vld [vmem:[%s3283 + $0xf0] sm:$0xff]
        %v3315 = vld [vmem:[%s3283 + $0xf8] sm:$0xff]
        %v3316 = vld [vmem:[%s3283 + $0x100] sm:$0xff]
        %v3317 = vld [vmem:[%s3283 + $0x108] sm:$0xff]
        %v3318 = vld [vmem:[%s3283 + $0x110] sm:$0xff]
        %v3319 = vld [vmem:[%s3283 + $0x118] sm:$0xff]
        %v3320 = vld [vmem:[%s3283 + $0x120] sm:$0xff]
        %v3321 = vld [vmem:[%s3283 + $0x128] sm:$0xff]
        %v3322 = vld [vmem:[%s3283 + $0x130] sm:$0xff]
        %v3323 = vld [vmem:[%s3283 + $0x138] sm:$0xff]
        %v3324 = vld [vmem:[%s3283 + $0x140] sm:$0xff]
        %v3325 = vld [vmem:[%s3283 + $0x148] sm:$0xff]
        %v3326 = vld [vmem:[%s3283 + $0x150] sm:$0xff]
        %v3327 = vld [vmem:[%s3283 + $0x158] sm:$0xff]
        %v3328 = vld [vmem:[%s3283 + $0x160] sm:$0xff]
        %v3329 = vld [vmem:[%s3283 + $0x168] sm:$0xff]
        %v3330 = vld [vmem:[%s3283 + $0x170] sm:$0xff]
        %v3331 = vld [vmem:[%s3283 + $0x178] sm:$0xff]
        %v3332 = vld [vmem:[%s3283 + $0x180] sm:$0xff]
        %v3333 = vld [vmem:[%s3283 + $0x188] sm:$0xff]
        %v3334 = vld [vmem:[%s3283 + $0x190] sm:$0xff]
        %v3335 = vld [vmem:[%s3283 + $0x198] sm:$0xff]
        %v3336 = vld [vmem:[%s3283 + $0x1a0] sm:$0xff]
        %v3337 = vld [vmem:[%s3283 + $0x1a8] sm:$0xff]
        %v3338 = vld [vmem:[%s3283 + $0x1b0] sm:$0xff]
        %v3339 = vld [vmem:[%s3283 + $0x1b8] sm:$0xff]
        %v3340 = vld [vmem:[%s3283 + $0x1c0] sm:$0xff]
        %v3341 = vld [vmem:[%s3283 + $0x1c8] sm:$0xff]
        %v3342 = vld [vmem:[%s3283 + $0x1d0] sm:$0xff]
        %v3343 = vld [vmem:[%s3283 + $0x1d8] sm:$0xff]
        %v3344 = vld [vmem:[%s3283 + $0x1e0] sm:$0xff]
        %v3345 = vld [vmem:[%s3283 + $0x1e8] sm:$0xff]
        %v3346 = vld [vmem:[%s3283 + $0x1f0] sm:$0xff]
        %v3347 = vld [vmem:[%s3283 + $0x1f8] sm:$0xff]
        %v3349 = vrot.slane %v3046, 1
        %3351 = vmatprep.subr.mxu0 %v3285
        %3352 = vmatpush1.msra.mxu0 %v3284
        %3353 = vmatprep.subr.mxu0 %v3289
        %3354 = vmatpush1.msra.mxu0 %v3288
        %3355 = vmatprep.subr.mxu0 %v3293
        %3356 = vmatpush1.msra.mxu0 %v3292
        %3357 = vmatprep.subr.mxu0 %v3297
        %3358 = vmatpush1.msra.mxu0 %v3296
        %3359 = vmatprep.subr.mxu0 %v3301
        %3360 = vmatpush1.msra.mxu0 %v3300
        %3361 = vmatprep.subr.mxu0 %v3305
        %3362 = vmatpush1.msra.mxu0 %v3304
        %3363 = vmatprep.subr.mxu0 %v3309
        %3364 = vmatpush1.msra.mxu0 %v3308
        %3365 = vmatprep.subr.mxu0 %v3313
        %3366 = vmatpush1.msra.mxu0 %v3312
        %3367 = vmatprep.subr.mxu0 %v3317
        %3368 = vmatpush1.msra.mxu0 %v3316
        %3369 = vmatprep.subr.mxu0 %v3321
        %3370 = vmatpush1.msra.mxu0 %v3320
        %3371 = vmatprep.subr.mxu0 %v3325
        %3372 = vmatpush1.msra.mxu0 %v3324
        %3373 = vmatprep.subr.mxu0 %v3329
        %3374 = vmatpush1.msra.mxu0 %v3328
        %3375 = vmatprep.subr.mxu0 %v3333
        %3376 = vmatpush1.msra.mxu0 %v3332
        %3377 = vmatprep.subr.mxu0 %v3337
        %3378 = vmatpush1.msra.mxu0 %v3336
        %3379 = vmatprep.subr.mxu0 %v3341
        %3380 = vmatpush1.msra.mxu0 %v3340
        %3381 = vmatprep.subr.mxu0 %v3345
        %3382 = vmatpush1.msra.mxu0 %v3344
        %3383 = vmatprep.subr.mxu0 0.0
        %3384 = vmatpush1.msra.mxu0 0.0
        %3385 = vmatprep.subr.mxu0 0.0
        %3386 = vmatpush1.msra.mxu0 0.0
        %3387 = vmatprep.subr.mxu0 0.0
        %3388 = vmatpush1.msra.mxu0 0.0
        %3389 = vmatprep.subr.mxu0 0.0
        %3390 = vmatpush1.msra.mxu0 0.0
        %3391 = vmatprep.subr.mxu0 0.0
        %3392 = vmatpush1.msra.mxu0 0.0
        %3393 = vmatprep.subr.mxu0 0.0
        %3394 = vmatpush1.msra.mxu0 0.0
        %3395 = vmatprep.subr.mxu0 0.0
        %3396 = vmatpush1.msra.mxu0 0.0
        %3397 = vmatprep.subr.mxu0 0.0
        %3398 = vmatpush1.msra.mxu0 0.0
        %3399 = vmatprep.subr.mxu0 0.0
        %3400 = vmatpush1.msra.mxu0 0.0
        %3401 = vmatprep.subr.mxu0 0.0
        %3402 = vmatpush1.msra.mxu0 0.0
        %3403 = vmatprep.subr.mxu0 0.0
        %3404 = vmatpush1.msra.mxu0 0.0
        %3405 = vmatprep.subr.mxu0 0.0
        %3406 = vmatpush1.msra.mxu0 0.0
        %3407 = vmatprep.subr.mxu0 0.0
        %3408 = vmatpush1.msra.mxu0 0.0
        %3409 = vmatprep.subr.mxu0 0.0
        %3410 = vmatpush1.msra.mxu0 0.0
        %3411 = vmatprep.subr.mxu0 0.0
        %3412 = vmatpush1.msra.mxu0 0.0
        %3413 = vmatprep.subr.mxu0 0.0
        %3414 = vmatpush1.msra.mxu0 0.0
        %3415 = vmatprep.mubr.f32.mxu0 0.0
        %3416 = vmatmul.mubr.f32.gmra.mrb[0].mxu0 %v3349
        %v3417 = vpop.f32.mrb[0].mxu0
        %v3418 = vadd.f32 0.0, %v3417
        %v3419 = vpop.f32.mrb[0].mxu0
        %v3420 = vadd.f32 0.0, %v3419
        %3421 = vdwg.mxu0
        %3422 = vmatprep.subr.mxu0 %v3287
        %3423 = vmatpush1.msra.mxu0 %v3286
        %3424 = vmatprep.subr.mxu0 %v3291
        %3425 = vmatpush1.msra.mxu0 %v3290
        %3426 = vmatprep.subr.mxu0 %v3295
        %3427 = vmatpush1.msra.mxu0 %v3294
        %3428 = vmatprep.subr.mxu0 %v3299
        %3429 = vmatpush1.msra.mxu0 %v3298
        %3430 = vmatprep.subr.mxu0 %v3303
        %3431 = vmatpush1.msra.mxu0 %v3302
        %3432 = vmatprep.subr.mxu0 %v3307
        %3433 = vmatpush1.msra.mxu0 %v3306
        %3434 = vmatprep.subr.mxu0 %v3311
        %3435 = vmatpush1.msra.mxu0 %v3310
        %3436 = vmatprep.subr.mxu0 %v3315
        %3437 = vmatpush1.msra.mxu0 %v3314
        %3438 = vmatprep.subr.mxu0 %v3319
        %3439 = vmatpush1.msra.mxu0 %v3318
        %3440 = vmatprep.subr.mxu0 %v3323
        %3441 = vmatpush1.msra.mxu0 %v3322
        %3442 = vmatprep.subr.mxu0 %v3327
        %3443 = vmatpush1.msra.mxu0 %v3326
        %3444 = vmatprep.subr.mxu0 %v3331
        %3445 = vmatpush1.msra.mxu0 %v3330
        %3446 = vmatprep.subr.mxu0 %v3335
        %3447 = vmatpush1.msra.mxu0 %v3334
        %3448 = vmatprep.subr.mxu0 %v3339
        %3449 = vmatpush1.msra.mxu0 %v3338
        %3450 = vmatprep.subr.mxu0 %v3343
        %3451 = vmatpush1.msra.mxu0 %v3342
        %3452 = vmatprep.subr.mxu0 %v3347
        %3453 = vmatpush1.msra.mxu0 %v3346
        %3454 = vmatprep.subr.mxu0 0.0
        %3455 = vmatpush1.msra.mxu0 0.0
        %3456 = vmatprep.subr.mxu0 0.0
        %3457 = vmatpush1.msra.mxu0 0.0
        %3458 = vmatprep.subr.mxu0 0.0
        %3459 = vmatpush1.msra.mxu0 0.0
        %3460 = vmatprep.subr.mxu0 0.0
        %3461 = vmatpush1.msra.mxu0 0.0
        %3462 = vmatprep.subr.mxu0 0.0
        %3463 = vmatpush1.msra.mxu0 0.0
        %3464 = vmatprep.subr.mxu0 0.0
        %3465 = vmatpush1.msra.mxu0 0.0
        %3466 = vmatprep.subr.mxu0 0.0
        %3467 = vmatpush1.msra.mxu0 0.0
        %3468 = vmatprep.subr.mxu0 0.0
        %3469 = vmatpush1.msra.mxu0 0.0
        %3470 = vmatprep.subr.mxu0 0.0
        %3471 = vmatpush1.msra.mxu0 0.0
        %3472 = vmatprep.subr.mxu0 0.0
        %3473 = vmatpush1.msra.mxu0 0.0
        %3474 = vmatprep.subr.mxu0 0.0
        %3475 = vmatpush1.msra.mxu0 0.0
        %3476 = vmatprep.subr.mxu0 0.0
        %3477 = vmatpush1.msra.mxu0 0.0
        %3478 = vmatprep.subr.mxu0 0.0
        %3479 = vmatpush1.msra.mxu0 0.0
        %3480 = vmatprep.subr.mxu0 0.0
        %3481 = vmatpush1.msra.mxu0 0.0
        %3482 = vmatprep.subr.mxu0 0.0
        %3483 = vmatpush1.msra.mxu0 0.0
        %3484 = vmatprep.subr.mxu0 0.0
        %3485 = vmatpush1.msra.mxu0 0.0
        %3486 = vmatprep.mubr.f32.mxu0 0.0
        %3487 = vmatmul.mubr.f32.gmra.mrb[0].mxu0 %v3349
        %v3488 = vpop.f32.mrb[0].mxu0
        %v3489 = vadd.f32 0.0, %v3488
        %v3490 = vpop.f32.mrb[0].mxu0
        %v3491 = vadd.f32 0.0, %v3490
        %3492 = vdwg.mxu0
        %v3497 = vcombine.low %v3418, %v3420
        %v3498 = vcombine.low %v3489, %v3491
        %v3500 = vunpack.c.l.s4 1966171168
        %v3501 = vunpack.c.0.s8 %v3500
        %v3502 = vlaneseq
        %v3503 = vshrl.u32 %v3502, 7
        %v3504 = vsub.s32 %v3501, %v3503
        %v3505 = vrot.slane %v3497, %v3504
        %v3507 = vunpack.c.l.s4 1966171168
        %v3508 = vunpack.c.0.s8 %v3507
        %v3509 = vlaneseq
        %v3510 = vshrl.u32 %v3509, 7
        %v3511 = vsub.s32 %v3508, %v3510
        %v3512 = vrot.slane %v3498, %v3511
        %v3513 = vcombine.low %v3505, %v3512
        %v3515 = vunpack.c.l.s4 1966171168
        %v3516 = vunpack.c.0.s8 %v3515
        %v3517 = vlaneseq
        %v3518 = vshrl.u32 %v3517, 7
        %v3519 = vsub.s32 %v3516, %v3518
        %v3520 = vrot.slane %v3513, %v3519
        %v3522 = vadd.f32 %v3282, %v3520
        %v3524 = vrot.slane %v3041, 3
        %v3526 = vmax.f32 %v3040, %v3524
        %s3527 = scalar_lea.vmem %s5, 1024
        %v3528 = vld [vmem:[%s3527] sm:$0xff]
        %v3529 = vld [vmem:[%s3527 + $0x8] sm:$0xff]
        %v3530 = vld [vmem:[%s3527 + $0x10] sm:$0xff]
        %v3531 = vld [vmem:[%s3527 + $0x18] sm:$0xff]
        %v3532 = vld [vmem:[%s3527 + $0x20] sm:$0xff]
        %v3533 = vld [vmem:[%s3527 + $0x28] sm:$0xff]
        %v3534 = vld [vmem:[%s3527 + $0x30] sm:$0xff]
        %v3535 = vld [vmem:[%s3527 + $0x38] sm:$0xff]
        %v3536 = vld [vmem:[%s3527 + $0x40] sm:$0xff]
        %v3537 = vld [vmem:[%s3527 + $0x48] sm:$0xff]
        %v3538 = vld [vmem:[%s3527 + $0x50] sm:$0xff]
        %v3539 = vld [vmem:[%s3527 + $0x58] sm:$0xff]
        %v3540 = vld [vmem:[%s3527 + $0x60] sm:$0xff]
        %v3541 = vld [vmem:[%s3527 + $0x68] sm:$0xff]
        %v3542 = vld [vmem:[%s3527 + $0x70] sm:$0xff]
        %v3543 = vld [vmem:[%s3527 + $0x78] sm:$0xff]
        %v3544 = vld [vmem:[%s3527 + $0x80] sm:$0xff]
        %v3545 = vld [vmem:[%s3527 + $0x88] sm:$0xff]
        %v3546 = vld [vmem:[%s3527 + $0x90] sm:$0xff]
        %v3547 = vld [vmem:[%s3527 + $0x98] sm:$0xff]
        %v3548 = vld [vmem:[%s3527 + $0xa0] sm:$0xff]
        %v3549 = vld [vmem:[%s3527 + $0xa8] sm:$0xff]
        %v3550 = vld [vmem:[%s3527 + $0xb0] sm:$0xff]
        %v3551 = vld [vmem:[%s3527 + $0xb8] sm:$0xff]
        %v3552 = vld [vmem:[%s3527 + $0xc0] sm:$0xff]
        %v3553 = vld [vmem:[%s3527 + $0xc8] sm:$0xff]
        %v3554 = vld [vmem:[%s3527 + $0xd0] sm:$0xff]
        %v3555 = vld [vmem:[%s3527 + $0xd8] sm:$0xff]
        %v3556 = vld [vmem:[%s3527 + $0xe0] sm:$0xff]
        %v3557 = vld [vmem:[%s3527 + $0xe8] sm:$0xff]
        %v3558 = vld [vmem:[%s3527 + $0xf0] sm:$0xff]
        %v3559 = vld [vmem:[%s3527 + $0xf8] sm:$0xff]
        %v3560 = vld [vmem:[%s3527 + $0x100] sm:$0xff]
        %v3561 = vld [vmem:[%s3527 + $0x108] sm:$0xff]
        %v3562 = vld [vmem:[%s3527 + $0x110] sm:$0xff]
        %v3563 = vld [vmem:[%s3527 + $0x118] sm:$0xff]
        %v3564 = vld [vmem:[%s3527 + $0x120] sm:$0xff]
        %v3565 = vld [vmem:[%s3527 + $0x128] sm:$0xff]
        %v3566 = vld [vmem:[%s3527 + $0x130] sm:$0xff]
        %v3567 = vld [vmem:[%s3527 + $0x138] sm:$0xff]
        %v3568 = vld [vmem:[%s3527 + $0x140] sm:$0xff]
        %v3569 = vld [vmem:[%s3527 + $0x148] sm:$0xff]
        %v3570 = vld [vmem:[%s3527 + $0x150] sm:$0xff]
        %v3571 = vld [vmem:[%s3527 + $0x158] sm:$0xff]
        %v3572 = vld [vmem:[%s3527 + $0x160] sm:$0xff]
        %v3573 = vld [vmem:[%s3527 + $0x168] sm:$0xff]
        %v3574 = vld [vmem:[%s3527 + $0x170] sm:$0xff]
        %v3575 = vld [vmem:[%s3527 + $0x178] sm:$0xff]
        %v3576 = vld [vmem:[%s3527 + $0x180] sm:$0xff]
        %v3577 = vld [vmem:[%s3527 + $0x188] sm:$0xff]
        %v3578 = vld [vmem:[%s3527 + $0x190] sm:$0xff]
        %v3579 = vld [vmem:[%s3527 + $0x198] sm:$0xff]
        %v3580 = vld [vmem:[%s3527 + $0x1a0] sm:$0xff]
        %v3581 = vld [vmem:[%s3527 + $0x1a8] sm:$0xff]
        %v3582 = vld [vmem:[%s3527 + $0x1b0] sm:$0xff]
        %v3583 = vld [vmem:[%s3527 + $0x1b8] sm:$0xff]
        %v3584 = vld [vmem:[%s3527 + $0x1c0] sm:$0xff]
        %v3585 = vld [vmem:[%s3527 + $0x1c8] sm:$0xff]
        %v3586 = vld [vmem:[%s3527 + $0x1d0] sm:$0xff]
        %v3587 = vld [vmem:[%s3527 + $0x1d8] sm:$0xff]
        %v3588 = vld [vmem:[%s3527 + $0x1e0] sm:$0xff]
        %v3589 = vld [vmem:[%s3527 + $0x1e8] sm:$0xff]
        %v3590 = vld [vmem:[%s3527 + $0x1f0] sm:$0xff]
        %v3591 = vld [vmem:[%s3527 + $0x1f8] sm:$0xff]
        %v3593 = vrot.slane %v3526, 6
        %3595 = vmatprep.subr.mxu0 %v3529
        %3596 = vmatpush1.msra.mxu0 %v3528
        %3597 = vmatprep.subr.mxu0 %v3533
        %3598 = vmatpush1.msra.mxu0 %v3532
        %3599 = vmatprep.subr.mxu0 %v3537
        %3600 = vmatpush1.msra.mxu0 %v3536
        %3601 = vmatprep.subr.mxu0 %v3541
        %3602 = vmatpush1.msra.mxu0 %v3540
        %3603 = vmatprep.subr.mxu0 %v3545
        %3604 = vmatpush1.msra.mxu0 %v3544
        %3605 = vmatprep.subr.mxu0 %v3549
        %3606 = vmatpush1.msra.mxu0 %v3548
        %3607 = vmatprep.subr.mxu0 %v3553
        %3608 = vmatpush1.msra.mxu0 %v3552
        %3609 = vmatprep.subr.mxu0 %v3557
        %3610 = vmatpush1.msra.mxu0 %v3556
        %3611 = vmatprep.subr.mxu0 %v3561
        %3612 = vmatpush1.msra.mxu0 %v3560
        %3613 = vmatprep.subr.mxu0 %v3565
        %3614 = vmatpush1.msra.mxu0 %v3564
        %3615 = vmatprep.subr.mxu0 %v3569
        %3616 = vmatpush1.msra.mxu0 %v3568
        %3617 = vmatprep.subr.mxu0 %v3573
        %3618 = vmatpush1.msra.mxu0 %v3572
        %3619 = vmatprep.subr.mxu0 %v3577
        %3620 = vmatpush1.msra.mxu0 %v3576
        %3621 = vmatprep.subr.mxu0 %v3581
        %3622 = vmatpush1.msra.mxu0 %v3580
        %3623 = vmatprep.subr.mxu0 %v3585
        %3624 = vmatpush1.msra.mxu0 %v3584
        %3625 = vmatprep.subr.mxu0 %v3589
        %3626 = vmatpush1.msra.mxu0 %v3588
        %3627 = vmatprep.subr.mxu0 0.0
        %3628 = vmatpush1.msra.mxu0 0.0
        %3629 = vmatprep.subr.mxu0 0.0
        %3630 = vmatpush1.msra.mxu0 0.0
        %3631 = vmatprep.subr.mxu0 0.0
        %3632 = vmatpush1.msra.mxu0 0.0
        %3633 = vmatprep.subr.mxu0 0.0
        %3634 = vmatpush1.msra.mxu0 0.0
        %3635 = vmatprep.subr.mxu0 0.0
        %3636 = vmatpush1.msra.mxu0 0.0
        %3637 = vmatprep.subr.mxu0 0.0
        %3638 = vmatpush1.msra.mxu0 0.0
        %3639 = vmatprep.subr.mxu0 0.0
        %3640 = vmatpush1.msra.mxu0 0.0
        %3641 = vmatprep.subr.mxu0 0.0
        %3642 = vmatpush1.msra.mxu0 0.0
        %3643 = vmatprep.subr.mxu0 0.0
        %3644 = vmatpush1.msra.mxu0 0.0
        %3645 = vmatprep.subr.mxu0 0.0
        %3646 = vmatpush1.msra.mxu0 0.0
        %3647 = vmatprep.subr.mxu0 0.0
        %3648 = vmatpush1.msra.mxu0 0.0
        %3649 = vmatprep.subr.mxu0 0.0
        %3650 = vmatpush1.msra.mxu0 0.0
        %3651 = vmatprep.subr.mxu0 0.0
        %3652 = vmatpush1.msra.mxu0 0.0
        %3653 = vmatprep.subr.mxu0 0.0
        %3654 = vmatpush1.msra.mxu0 0.0
        %3655 = vmatprep.subr.mxu0 0.0
        %3656 = vmatpush1.msra.mxu0 0.0
        %3657 = vmatprep.subr.mxu0 0.0
        %3658 = vmatpush1.msra.mxu0 0.0
        %3659 = vmatprep.mubr.f32.mxu0 0.0
        %3660 = vmatmul.mubr.f32.gmra.mrb[0].mxu0 %v3593
        %v3661 = vpop.f32.mrb[0].mxu0
        %v3662 = vadd.f32 0.0, %v3661
        %v3663 = vpop.f32.mrb[0].mxu0
        %v3664 = vadd.f32 0.0, %v3663
        %3665 = vdwg.mxu0
        %3666 = vmatprep.subr.mxu0 %v3531
        %3667 = vmatpush1.msra.mxu0 %v3530
        %3668 = vmatprep.subr.mxu0 %v3535
        %3669 = vmatpush1.msra.mxu0 %v3534
        %3670 = vmatprep.subr.mxu0 %v3539
        %3671 = vmatpush1.msra.mxu0 %v3538
        %3672 = vmatprep.subr.mxu0 %v3543
        %3673 = vmatpush1.msra.mxu0 %v3542
        %3674 = vmatprep.subr.mxu0 %v3547
        %3675 = vmatpush1.msra.mxu0 %v3546
        %3676 = vmatprep.subr.mxu0 %v3551
        %3677 = vmatpush1.msra.mxu0 %v3550
        %3678 = vmatprep.subr.mxu0 %v3555
        %3679 = vmatpush1.msra.mxu0 %v3554
        %3680 = vmatprep.subr.mxu0 %v3559
        %3681 = vmatpush1.msra.mxu0 %v3558
        %3682 = vmatprep.subr.mxu0 %v3563
        %3683 = vmatpush1.msra.mxu0 %v3562
        %3684 = vmatprep.subr.mxu0 %v3567
        %3685 = vmatpush1.msra.mxu0 %v3566
        %3686 = vmatprep.subr.mxu0 %v3571
        %3687 = vmatpush1.msra.mxu0 %v3570
        %3688 = vmatprep.subr.mxu0 %v3575
        %3689 = vmatpush1.msra.mxu0 %v3574
        %3690 = vmatprep.subr.mxu0 %v3579
        %3691 = vmatpush1.msra.mxu0 %v3578
        %3692 = vmatprep.subr.mxu0 %v3583
        %3693 = vmatpush1.msra.mxu0 %v3582
        %3694 = vmatprep.subr.mxu0 %v3587
        %3695 = vmatpush1.msra.mxu0 %v3586
        %3696 = vmatprep.subr.mxu0 %v3591
        %3697 = vmatpush1.msra.mxu0 %v3590
        %3698 = vmatprep.subr.mxu0 0.0
        %3699 = vmatpush1.msra.mxu0 0.0
        %3700 = vmatprep.subr.mxu0 0.0
        %3701 = vmatpush1.msra.mxu0 0.0
        %3702 = vmatprep.subr.mxu0 0.0
        %3703 = vmatpush1.msra.mxu0 0.0
        %3704 = vmatprep.subr.mxu0 0.0
        %3705 = vmatpush1.msra.mxu0 0.0
        %3706 = vmatprep.subr.mxu0 0.0
        %3707 = vmatpush1.msra.mxu0 0.0
        %3708 = vmatprep.subr.mxu0 0.0
        %3709 = vmatpush1.msra.mxu0 0.0
        %3710 = vmatprep.subr.mxu0 0.0
        %3711 = vmatpush1.msra.mxu0 0.0
        %3712 = vmatprep.subr.mxu0 0.0
        %3713 = vmatpush1.msra.mxu0 0.0
        %3714 = vmatprep.subr.mxu0 0.0
        %3715 = vmatpush1.msra.mxu0 0.0
        %3716 = vmatprep.subr.mxu0 0.0
        %3717 = vmatpush1.msra.mxu0 0.0
        %3718 = vmatprep.subr.mxu0 0.0
        %3719 = vmatpush1.msra.mxu0 0.0
        %3720 = vmatprep.subr.mxu0 0.0
        %3721 = vmatpush1.msra.mxu0 0.0
        %3722 = vmatprep.subr.mxu0 0.0
        %3723 = vmatpush1.msra.mxu0 0.0
        %3724 = vmatprep.subr.mxu0 0.0
        %3725 = vmatpush1.msra.mxu0 0.0
        %3726 = vmatprep.subr.mxu0 0.0
        %3727 = vmatpush1.msra.mxu0 0.0
        %3728 = vmatprep.subr.mxu0 0.0
        %3729 = vmatpush1.msra.mxu0 0.0
        %3730 = vmatprep.mubr.f32.mxu0 0.0
        %3731 = vmatmul.mubr.f32.gmra.mrb[0].mxu0 %v3593
        %v3732 = vpop.f32.mrb[0].mxu0
        %v3733 = vadd.f32 0.0, %v3732
        %v3734 = vpop.f32.mrb[0].mxu0
        %v3735 = vadd.f32 0.0, %v3734
        %3736 = vdwg.mxu0
        %v3741 = vcombine.low %v3662, %v3664
        %v3742 = vcombine.low %v3733, %v3735
        %v3744 = vunpack.c.l.s4 1966171168
        %v3745 = vunpack.c.0.s8 %v3744
        %v3746 = vlaneseq
        %v3747 = vshrl.u32 %v3746, 7
        %v3748 = vsub.s32 %v3745, %v3747
        %v3749 = vrot.slane %v3741, %v3748
        %v3751 = vunpack.c.l.s4 1966171168
        %v3752 = vunpack.c.0.s8 %v3751
        %v3753 = vlaneseq
        %v3754 = vshrl.u32 %v3753, 7
        %v3755 = vsub.s32 %v3752, %v3754
        %v3756 = vrot.slane %v3742, %v3755
        %v3757 = vcombine.low %v3749, %v3756
        %v3759 = vunpack.c.l.s4 1966171168
        %v3760 = vunpack.c.0.s8 %v3759
        %v3761 = vlaneseq
        %v3762 = vshrl.u32 %v3761, 7
        %v3763 = vsub.s32 %v3760, %v3762
        %v3764 = vrot.slane %v3757, %v3763
        %v3766 = vadd.f32 %v3522, %v3764
        %s3767 = scalar_lea.vmem %s5, 1536
        %v3768 = vld [vmem:[%s3767] sm:$0xff]
        %v3769 = vld [vmem:[%s3767 + $0x8] sm:$0xff]
        %v3770 = vld [vmem:[%s3767 + $0x10] sm:$0xff]
        %v3771 = vld [vmem:[%s3767 + $0x18] sm:$0xff]
        %v3772 = vld [vmem:[%s3767 + $0x20] sm:$0xff]
        %v3773 = vld [vmem:[%s3767 + $0x28] sm:$0xff]
        %v3774 = vld [vmem:[%s3767 + $0x30] sm:$0xff]
        %v3775 = vld [vmem:[%s3767 + $0x38] sm:$0xff]
        %v3776 = vld [vmem:[%s3767 + $0x40] sm:$0xff]
        %v3777 = vld [vmem:[%s3767 + $0x48] sm:$0xff]
        %v3778 = vld [vmem:[%s3767 + $0x50] sm:$0xff]
        %v3779 = vld [vmem:[%s3767 + $0x58] sm:$0xff]
        %v3780 = vld [vmem:[%s3767 + $0x60] sm:$0xff]
        %v3781 = vld [vmem:[%s3767 + $0x68] sm:$0xff]
        %v3782 = vld [vmem:[%s3767 + $0x70] sm:$0xff]
        %v3783 = vld [vmem:[%s3767 + $0x78] sm:$0xff]
        %v3784 = vld [vmem:[%s3767 + $0x80] sm:$0xff]
        %v3785 = vld [vmem:[%s3767 + $0x88] sm:$0xff]
        %v3786 = vld [vmem:[%s3767 + $0x90] sm:$0xff]
        %v3787 = vld [vmem:[%s3767 + $0x98] sm:$0xff]
        %v3788 = vld [vmem:[%s3767 + $0xa0] sm:$0xff]
        %v3789 = vld [vmem:[%s3767 + $0xa8] sm:$0xff]
        %v3790 = vld [vmem:[%s3767 + $0xb0] sm:$0xff]
        %v3791 = vld [vmem:[%s3767 + $0xb8] sm:$0xff]
        %v3792 = vld [vmem:[%s3767 + $0xc0] sm:$0xff]
        %v3793 = vld [vmem:[%s3767 + $0xc8] sm:$0xff]
        %v3794 = vld [vmem:[%s3767 + $0xd0] sm:$0xff]
        %v3795 = vld [vmem:[%s3767 + $0xd8] sm:$0xff]
        %v3796 = vld [vmem:[%s3767 + $0xe0] sm:$0xff]
        %v3797 = vld [vmem:[%s3767 + $0xe8] sm:$0xff]
        %v3798 = vld [vmem:[%s3767 + $0xf0] sm:$0xff]
        %v3799 = vld [vmem:[%s3767 + $0xf8] sm:$0xff]
        %v3800 = vld [vmem:[%s3767 + $0x100] sm:$0xff]
        %v3801 = vld [vmem:[%s3767 + $0x108] sm:$0xff]
        %v3802 = vld [vmem:[%s3767 + $0x110] sm:$0xff]
        %v3803 = vld [vmem:[%s3767 + $0x118] sm:$0xff]
        %v3804 = vld [vmem:[%s3767 + $0x120] sm:$0xff]
        %v3805 = vld [vmem:[%s3767 + $0x128] sm:$0xff]
        %v3806 = vld [vmem:[%s3767 + $0x130] sm:$0xff]
        %v3807 = vld [vmem:[%s3767 + $0x138] sm:$0xff]
        %v3808 = vld [vmem:[%s3767 + $0x140] sm:$0xff]
        %v3809 = vld [vmem:[%s3767 + $0x148] sm:$0xff]
        %v3810 = vld [vmem:[%s3767 + $0x150] sm:$0xff]
        %v3811 = vld [vmem:[%s3767 + $0x158] sm:$0xff]
        %v3812 = vld [vmem:[%s3767 + $0x160] sm:$0xff]
        %v3813 = vld [vmem:[%s3767 + $0x168] sm:$0xff]
        %v3814 = vld [vmem:[%s3767 + $0x170] sm:$0xff]
        %v3815 = vld [vmem:[%s3767 + $0x178] sm:$0xff]
        %v3816 = vld [vmem:[%s3767 + $0x180] sm:$0xff]
        %v3817 = vld [vmem:[%s3767 + $0x188] sm:$0xff]
        %v3818 = vld [vmem:[%s3767 + $0x190] sm:$0xff]
        %v3819 = vld [vmem:[%s3767 + $0x198] sm:$0xff]
        %v3820 = vld [vmem:[%s3767 + $0x1a0] sm:$0xff]
        %v3821 = vld [vmem:[%s3767 + $0x1a8] sm:$0xff]
        %v3822 = vld [vmem:[%s3767 + $0x1b0] sm:$0xff]
        %v3823 = vld [vmem:[%s3767 + $0x1b8] sm:$0xff]
        %v3824 = vld [vmem:[%s3767 + $0x1c0] sm:$0xff]
        %v3825 = vld [vmem:[%s3767 + $0x1c8] sm:$0xff]
        %v3826 = vld [vmem:[%s3767 + $0x1d0] sm:$0xff]
        %v3827 = vld [vmem:[%s3767 + $0x1d8] sm:$0xff]
        %v3828 = vld [vmem:[%s3767 + $0x1e0] sm:$0xff]
        %v3829 = vld [vmem:[%s3767 + $0x1e8] sm:$0xff]
        %v3830 = vld [vmem:[%s3767 + $0x1f0] sm:$0xff]
        %v3831 = vld [vmem:[%s3767 + $0x1f8] sm:$0xff]
        %v3832 = vrot.slane %v3526, 7
        %3834 = vmatprep.subr.mxu0 %v3769
        %3835 = vmatpush1.msra.mxu0 %v3768
        %3836 = vmatprep.subr.mxu0 %v3773
        %3837 = vmatpush1.msra.mxu0 %v3772
        %3838 = vmatprep.subr.mxu0 %v3777
        %3839 = vmatpush1.msra.mxu0 %v3776
        %3840 = vmatprep.subr.mxu0 %v3781
        %3841 = vmatpush1.msra.mxu0 %v3780
        %3842 = vmatprep.subr.mxu0 %v3785
        %3843 = vmatpush1.msra.mxu0 %v3784
        %3844 = vmatprep.subr.mxu0 %v3789
        %3845 = vmatpush1.msra.mxu0 %v3788
        %3846 = vmatprep.subr.mxu0 %v3793
        %3847 = vmatpush1.msra.mxu0 %v3792
        %3848 = vmatprep.subr.mxu0 %v3797
        %3849 = vmatpush1.msra.mxu0 %v3796
        %3850 = vmatprep.subr.mxu0 %v3801
        %3851 = vmatpush1.msra.mxu0 %v3800
        %3852 = vmatprep.subr.mxu0 %v3805
        %3853 = vmatpush1.msra.mxu0 %v3804
        %3854 = vmatprep.subr.mxu0 %v3809
        %3855 = vmatpush1.msra.mxu0 %v3808
        %3856 = vmatprep.subr.mxu0 %v3813
        %3857 = vmatpush1.msra.mxu0 %v3812
        %3858 = vmatprep.subr.mxu0 %v3817
        %3859 = vmatpush1.msra.mxu0 %v3816
        %3860 = vmatprep.subr.mxu0 %v3821
        %3861 = vmatpush1.msra.mxu0 %v3820
        %3862 = vmatprep.subr.mxu0 %v3825
        %3863 = vmatpush1.msra.mxu0 %v3824
        %3864 = vmatprep.subr.mxu0 %v3829
        %3865 = vmatpush1.msra.mxu0 %v3828
        %3866 = vmatprep.subr.mxu0 0.0
        %3867 = vmatpush1.msra.mxu0 0.0
        %3868 = vmatprep.subr.mxu0 0.0
        %3869 = vmatpush1.msra.mxu0 0.0
        %3870 = vmatprep.subr.mxu0 0.0
        %3871 = vmatpush1.msra.mxu0 0.0
        %3872 = vmatprep.subr.mxu0 0.0
        %3873 = vmatpush1.msra.mxu0 0.0
        %3874 = vmatprep.subr.mxu0 0.0
        %3875 = vmatpush1.msra.mxu0 0.0
        %3876 = vmatprep.subr.mxu0 0.0
        %3877 = vmatpush1.msra.mxu0 0.0
        %3878 = vmatprep.subr.mxu0 0.0
        %3879 = vmatpush1.msra.mxu0 0.0
        %3880 = vmatprep.subr.mxu0 0.0
        %3881 = vmatpush1.msra.mxu0 0.0
        %3882 = vmatprep.subr.mxu0 0.0
        %3883 = vmatpush1.msra.mxu0 0.0
        %3884 = vmatprep.subr.mxu0 0.0
        %3885 = vmatpush1.msra.mxu0 0.0
        %3886 = vmatprep.subr.mxu0 0.0
        %3887 = vmatpush1.msra.mxu0 0.0
        %3888 = vmatprep.subr.mxu0 0.0
        %3889 = vmatpush1.msra.mxu0 0.0
        %3890 = vmatprep.subr.mxu0 0.0
        %3891 = vmatpush1.msra.mxu0 0.0
        %3892 = vmatprep.subr.mxu0 0.0
        %3893 = vmatpush1.msra.mxu0 0.0
        %3894 = vmatprep.subr.mxu0 0.0
        %3895 = vmatpush1.msra.mxu0 0.0
        %3896 = vmatprep.subr.mxu0 0.0
        %3897 = vmatpush1.msra.mxu0 0.0
        %3898 = vmatprep.mubr.f32.mxu0 0.0
        %3899 = vmatmul.mubr.f32.gmra.mrb[0].mxu0 %v3832
        %v3900 = vpop.f32.mrb[0].mxu0
        %v3901 = vadd.f32 0.0, %v3900
        %v3902 = vpop.f32.mrb[0].mxu0
        %v3903 = vadd.f32 0.0, %v3902
        %3904 = vdwg.mxu0
        %3905 = vmatprep.subr.mxu0 %v3771
        %3906 = vmatpush1.msra.mxu0 %v3770
        %3907 = vmatprep.subr.mxu0 %v3775
        %3908 = vmatpush1.msra.mxu0 %v3774
        %3909 = vmatprep.subr.mxu0 %v3779
        %3910 = vmatpush1.msra.mxu0 %v3778
        %3911 = vmatprep.subr.mxu0 %v3783
        %3912 = vmatpush1.msra.mxu0 %v3782
        %3913 = vmatprep.subr.mxu0 %v3787
        %3914 = vmatpush1.msra.mxu0 %v3786
        %3915 = vmatprep.subr.mxu0 %v3791
        %3916 = vmatpush1.msra.mxu0 %v3790
        %3917 = vmatprep.subr.mxu0 %v3795
        %3918 = vmatpush1.msra.mxu0 %v3794
        %3919 = vmatprep.subr.mxu0 %v3799
        %3920 = vmatpush1.msra.mxu0 %v3798
        %3921 = vmatprep.subr.mxu0 %v3803
        %3922 = vmatpush1.msra.mxu0 %v3802
        %3923 = vmatprep.subr.mxu0 %v3807
        %3924 = vmatpush1.msra.mxu0 %v3806
        %3925 = vmatprep.subr.mxu0 %v3811
        %3926 = vmatpush1.msra.mxu0 %v3810
        %3927 = vmatprep.subr.mxu0 %v3815
        %3928 = vmatpush1.msra.mxu0 %v3814
        %3929 = vmatprep.subr.mxu0 %v3819
        %3930 = vmatpush1.msra.mxu0 %v3818
        %3931 = vmatprep.subr.mxu0 %v3823
        %3932 = vmatpush1.msra.mxu0 %v3822
        %3933 = vmatprep.subr.mxu0 %v3827
        %3934 = vmatpush1.msra.mxu0 %v3826
        %3935 = vmatprep.subr.mxu0 %v3831
        %3936 = vmatpush1.msra.mxu0 %v3830
        %3937 = vmatprep.subr.mxu0 0.0
        %3938 = vmatpush1.msra.mxu0 0.0
        %3939 = vmatprep.subr.mxu0 0.0
        %3940 = vmatpush1.msra.mxu0 0.0
        %3941 = vmatprep.subr.mxu0 0.0
        %3942 = vmatpush1.msra.mxu0 0.0
        %3943 = vmatprep.subr.mxu0 0.0
        %3944 = vmatpush1.msra.mxu0 0.0
        %3945 = vmatprep.subr.mxu0 0.0
        %3946 = vmatpush1.msra.mxu0 0.0
        %3947 = vmatprep.subr.mxu0 0.0
        %3948 = vmatpush1.msra.mxu0 0.0
        %3949 = vmatprep.subr.mxu0 0.0
        %3950 = vmatpush1.msra.mxu0 0.0
        %3951 = vmatprep.subr.mxu0 0.0
        %3952 = vmatpush1.msra.mxu0 0.0
        %3953 = vmatprep.subr.mxu0 0.0
        %3954 = vmatpush1.msra.mxu0 0.0
        %3955 = vmatprep.subr.mxu0 0.0
        %3956 = vmatpush1.msra.mxu0 0.0
        %3957 = vmatprep.subr.mxu0 0.0
        %3958 = vmatpush1.msra.mxu0 0.0
        %3959 = vmatprep.subr.mxu0 0.0
        %3960 = vmatpush1.msra.mxu0 0.0
        %3961 = vmatprep.subr.mxu0 0.0
        %3962 = vmatpush1.msra.mxu0 0.0
        %3963 = vmatprep.subr.mxu0 0.0
        %3964 = vmatpush1.msra.mxu0 0.0
        %3965 = vmatprep.subr.mxu0 0.0
        %3966 = vmatpush1.msra.mxu0 0.0
        %3967 = vmatprep.subr.mxu0 0.0
        %3968 = vmatpush1.msra.mxu0 0.0
        %3969 = vmatprep.mubr.f32.mxu0 0.0
        %3970 = vmatmul.mubr.f32.gmra.mrb[0].mxu0 %v3832
        %v3971 = vpop.f32.mrb[0].mxu0
        %v3972 = vadd.f32 0.0, %v3971
        %v3973 = vpop.f32.mrb[0].mxu0
        %v3974 = vadd.f32 0.0, %v3973
        %3975 = vdwg.mxu0
        %v3980 = vcombine.low %v3901, %v3903
        %v3981 = vcombine.low %v3972, %v3974
        %v3983 = vunpack.c.l.s4 1966171168
        %v3984 = vunpack.c.0.s8 %v3983
        %v3985 = vlaneseq
        %v3986 = vshrl.u32 %v3985, 7
        %v3987 = vsub.s32 %v3984, %v3986
        %v3988 = vrot.slane %v3980, %v3987
        %v3990 = vunpack.c.l.s4 1966171168
        %v3991 = vunpack.c.0.s8 %v3990
        %v3992 = vlaneseq
        %v3993 = vshrl.u32 %v3992, 7
        %v3994 = vsub.s32 %v3991, %v3993
        %v3995 = vrot.slane %v3981, %v3994
        %v3996 = vcombine.low %v3988, %v3995
        %v3998 = vunpack.c.l.s4 1966171168
        %v3999 = vunpack.c.0.s8 %v3998
        %v4000 = vlaneseq
        %v4001 = vshrl.u32 %v4000, 7
        %v4002 = vsub.s32 %v3999, %v4001
        %v4003 = vrot.slane %v3996, %v4002
        %v4005 = vadd.f32 %v3766, %v4003
        %vm4006 = vcmp.ge.f32.partialorder %v4005, 0.0
        %s4007 = sld [smem:[#allocation6]]
        %v4008 = vstv %s4007
        %v4009 = vmul.f32 %v4008, %v4005
        %v4010 = vsel %vm4006, %v4005, %v4009
        %v4011 = vld [vmem:[%s8] sm:$0xff]
        %v4012 = vld [vmem:[%s8 + $0x8] sm:$0xff]
        %v4013 = vld [vmem:[%s8 + $0x10] sm:$0xff]
        %v4014 = vld [vmem:[%s8 + $0x18] sm:$0xff]
        %v4015 = vld [vmem:[%s8 + $0x20] sm:$0xff]
        %v4016 = vld [vmem:[%s8 + $0x28] sm:$0xff]
        %v4017 = vld [vmem:[%s8 + $0x30] sm:$0xff]
        %v4018 = vld [vmem:[%s8 + $0x38] sm:$0xff]
        %v4019 = vld [vmem:[%s8 + $0x40] sm:$0xff]
        %v4020 = vld [vmem:[%s8 + $0x48] sm:$0xff]
        %v4021 = vld [vmem:[%s8 + $0x50] sm:$0xff]
        %v4022 = vld [vmem:[%s8 + $0x58] sm:$0xff]
        %v4023 = vld [vmem:[%s8 + $0x60] sm:$0xff]
        %v4024 = vld [vmem:[%s8 + $0x68] sm:$0xff]
        %v4025 = vld [vmem:[%s8 + $0x70] sm:$0xff]
        %v4026 = vld [vmem:[%s8 + $0x78] sm:$0xff]
        %v4027 = vld [vmem:[%s8 + $0x80] sm:$0xff]
        %v4028 = vld [vmem:[%s8 + $0x88] sm:$0xff]
        %v4029 = vld [vmem:[%s8 + $0x90] sm:$0xff]
        %v4030 = vld [vmem:[%s8 + $0x98] sm:$0xff]
        %v4031 = vld [vmem:[%s8 + $0xa0] sm:$0xff]
        %v4032 = vld [vmem:[%s8 + $0xa8] sm:$0xff]
        %v4033 = vld [vmem:[%s8 + $0xb0] sm:$0xff]
        %v4034 = vld [vmem:[%s8 + $0xb8] sm:$0xff]
        %v4035 = vld [vmem:[%s8 + $0xc0] sm:$0xff]
        %v4036 = vld [vmem:[%s8 + $0xc8] sm:$0xff]
        %v4037 = vld [vmem:[%s8 + $0xd0] sm:$0xff]
        %v4038 = vld [vmem:[%s8 + $0xd8] sm:$0xff]
        %v4039 = vld [vmem:[%s8 + $0xe0] sm:$0xff]
        %v4040 = vld [vmem:[%s8 + $0xe8] sm:$0xff]
        %v4041 = vld [vmem:[%s8 + $0xf0] sm:$0xff]
        %v4042 = vld [vmem:[%s8 + $0xf8] sm:$0xff]
        %v4043 = vld [vmem:[%s8 + $0x100] sm:$0xff]
        %v4044 = vld [vmem:[%s8 + $0x108] sm:$0xff]
        %v4045 = vld [vmem:[%s8 + $0x110] sm:$0xff]
        %v4046 = vld [vmem:[%s8 + $0x118] sm:$0xff]
        %v4047 = vld [vmem:[%s8 + $0x120] sm:$0xff]
        %v4048 = vld [vmem:[%s8 + $0x128] sm:$0xff]
        %v4049 = vld [vmem:[%s8 + $0x130] sm:$0xff]
        %v4050 = vld [vmem:[%s8 + $0x138] sm:$0xff]
        %v4051 = vld [vmem:[%s8 + $0x140] sm:$0xff]
        %v4052 = vld [vmem:[%s8 + $0x148] sm:$0xff]
        %v4053 = vld [vmem:[%s8 + $0x150] sm:$0xff]
        %v4054 = vld [vmem:[%s8 + $0x158] sm:$0xff]
        %v4055 = vld [vmem:[%s8 + $0x160] sm:$0xff]
        %v4056 = vld [vmem:[%s8 + $0x168] sm:$0xff]
        %v4057 = vld [vmem:[%s8 + $0x170] sm:$0xff]
        %v4058 = vld [vmem:[%s8 + $0x178] sm:$0xff]
        %v4059 = vld [vmem:[%s8 + $0x180] sm:$0xff]
        %v4060 = vld [vmem:[%s8 + $0x188] sm:$0xff]
        %v4061 = vld [vmem:[%s8 + $0x190] sm:$0xff]
        %v4062 = vld [vmem:[%s8 + $0x198] sm:$0xff]
        %v4063 = vld [vmem:[%s8 + $0x1a0] sm:$0xff]
        %v4064 = vld [vmem:[%s8 + $0x1a8] sm:$0xff]
        %v4065 = vld [vmem:[%s8 + $0x1b0] sm:$0xff]
        %v4066 = vld [vmem:[%s8 + $0x1b8] sm:$0xff]
        %v4067 = vld [vmem:[%s8 + $0x1c0] sm:$0xff]
        %v4068 = vld [vmem:[%s8 + $0x1c8] sm:$0xff]
        %v4069 = vld [vmem:[%s8 + $0x1d0] sm:$0xff]
        %v4070 = vld [vmem:[%s8 + $0x1d8] sm:$0xff]
        %v4071 = vld [vmem:[%s8 + $0x1e0] sm:$0xff]
        %v4072 = vld [vmem:[%s8 + $0x1e8] sm:$0xff]
        %v4073 = vld [vmem:[%s8 + $0x1f0] sm:$0xff]
        %v4074 = vld [vmem:[%s8 + $0x1f8] sm:$0xff]
        %v4075 = vld [vmem:[%s8 + $0x200] sm:$0xff]
        %v4076 = vld [vmem:[%s8 + $0x208] sm:$0xff]
        %v4077 = vld [vmem:[%s8 + $0x210] sm:$0xff]
        %v4078 = vld [vmem:[%s8 + $0x218] sm:$0xff]
        %v4079 = vld [vmem:[%s8 + $0x220] sm:$0xff]
        %v4080 = vld [vmem:[%s8 + $0x228] sm:$0xff]
        %v4081 = vld [vmem:[%s8 + $0x230] sm:$0xff]
        %v4082 = vld [vmem:[%s8 + $0x238] sm:$0xff]
        %v4083 = vld [vmem:[%s8 + $0x240] sm:$0xff]
        %v4084 = vld [vmem:[%s8 + $0x248] sm:$0xff]
        %v4085 = vld [vmem:[%s8 + $0x250] sm:$0xff]
        %v4086 = vld [vmem:[%s8 + $0x258] sm:$0xff]
        %v4087 = vld [vmem:[%s8 + $0x260] sm:$0xff]
        %v4088 = vld [vmem:[%s8 + $0x268] sm:$0xff]
        %v4089 = vld [vmem:[%s8 + $0x270] sm:$0xff]
        %v4090 = vld [vmem:[%s8 + $0x278] sm:$0xff]
        %v4091 = vld [vmem:[%s8 + $0x280] sm:$0xff]
        %v4092 = vld [vmem:[%s8 + $0x288] sm:$0xff]
        %v4093 = vld [vmem:[%s8 + $0x290] sm:$0xff]
        %v4094 = vld [vmem:[%s8 + $0x298] sm:$0xff]
        %v4095 = vld [vmem:[%s8 + $0x2a0] sm:$0xff]
        %v4096 = vld [vmem:[%s8 + $0x2a8] sm:$0xff]
        %v4097 = vld [vmem:[%s8 + $0x2b0] sm:$0xff]
        %v4098 = vld [vmem:[%s8 + $0x2b8] sm:$0xff]
        %v4099 = vld [vmem:[%s8 + $0x2c0] sm:$0xff]
        %v4100 = vld [vmem:[%s8 + $0x2c8] sm:$0xff]
        %v4101 = vld [vmem:[%s8 + $0x2d0] sm:$0xff]
        %v4102 = vld [vmem:[%s8 + $0x2d8] sm:$0xff]
        %v4103 = vld [vmem:[%s8 + $0x2e0] sm:$0xff]
        %v4104 = vld [vmem:[%s8 + $0x2e8] sm:$0xff]
        %v4105 = vld [vmem:[%s8 + $0x2f0] sm:$0xff]
        %v4106 = vld [vmem:[%s8 + $0x2f8] sm:$0xff]
        %v4107 = vld [vmem:[%s8 + $0x300] sm:$0xff]
        %v4108 = vld [vmem:[%s8 + $0x308] sm:$0xff]
        %v4109 = vld [vmem:[%s8 + $0x310] sm:$0xff]
        %v4110 = vld [vmem:[%s8 + $0x318] sm:$0xff]
        %v4111 = vld [vmem:[%s8 + $0x320] sm:$0xff]
        %v4112 = vld [vmem:[%s8 + $0x328] sm:$0xff]
        %v4113 = vld [vmem:[%s8 + $0x330] sm:$0xff]
        %v4114 = vld [vmem:[%s8 + $0x338] sm:$0xff]
        %v4115 = vld [vmem:[%s8 + $0x340] sm:$0xff]
        %v4116 = vld [vmem:[%s8 + $0x348] sm:$0xff]
        %v4117 = vld [vmem:[%s8 + $0x350] sm:$0xff]
        %v4118 = vld [vmem:[%s8 + $0x358] sm:$0xff]
        %v4119 = vld [vmem:[%s8 + $0x360] sm:$0xff]
        %v4120 = vld [vmem:[%s8 + $0x368] sm:$0xff]
        %v4121 = vld [vmem:[%s8 + $0x370] sm:$0xff]
        %v4122 = vld [vmem:[%s8 + $0x378] sm:$0xff]
        %v4123 = vld [vmem:[%s8 + $0x380] sm:$0xff]
        %v4124 = vld [vmem:[%s8 + $0x388] sm:$0xff]
        %v4125 = vld [vmem:[%s8 + $0x390] sm:$0xff]
        %v4126 = vld [vmem:[%s8 + $0x398] sm:$0xff]
        %v4127 = vld [vmem:[%s8 + $0x3a0] sm:$0xff]
        %v4128 = vld [vmem:[%s8 + $0x3a8] sm:$0xff]
        %v4129 = vld [vmem:[%s8 + $0x3b0] sm:$0xff]
        %v4130 = vld [vmem:[%s8 + $0x3b8] sm:$0xff]
        %v4131 = vld [vmem:[%s8 + $0x3c0] sm:$0xff]
        %v4132 = vld [vmem:[%s8 + $0x3c8] sm:$0xff]
        %v4133 = vld [vmem:[%s8 + $0x3d0] sm:$0xff]
        %v4134 = vld [vmem:[%s8 + $0x3d8] sm:$0xff]
        %v4135 = vld [vmem:[%s8 + $0x3e0] sm:$0xff]
        %v4136 = vld [vmem:[%s8 + $0x3e8] sm:$0xff]
        %v4137 = vld [vmem:[%s8 + $0x3f0] sm:$0xff]
        %v4138 = vld [vmem:[%s8 + $0x3f8] sm:$0xff]
        %v4139 = vld [vmem:[%s8 + $0x400] sm:$0xff]
        %v4140 = vld [vmem:[%s8 + $0x408] sm:$0xff]
        %v4141 = vld [vmem:[%s8 + $0x410] sm:$0xff]
        %v4142 = vld [vmem:[%s8 + $0x418] sm:$0xff]
        %v4143 = vld [vmem:[%s8 + $0x420] sm:$0xff]
        %v4144 = vld [vmem:[%s8 + $0x428] sm:$0xff]
        %v4145 = vld [vmem:[%s8 + $0x430] sm:$0xff]
        %v4146 = vld [vmem:[%s8 + $0x438] sm:$0xff]
        %v4147 = vld [vmem:[%s8 + $0x440] sm:$0xff]
        %v4148 = vld [vmem:[%s8 + $0x448] sm:$0xff]
        %v4149 = vld [vmem:[%s8 + $0x450] sm:$0xff]
        %v4150 = vld [vmem:[%s8 + $0x458] sm:$0xff]
        %v4151 = vld [vmem:[%s8 + $0x460] sm:$0xff]
        %v4152 = vld [vmem:[%s8 + $0x468] sm:$0xff]
        %v4153 = vld [vmem:[%s8 + $0x470] sm:$0xff]
        %v4154 = vld [vmem:[%s8 + $0x478] sm:$0xff]
        %v4155 = vld [vmem:[%s8 + $0x480] sm:$0xff]
        %v4156 = vld [vmem:[%s8 + $0x488] sm:$0xff]
        %v4157 = vld [vmem:[%s8 + $0x490] sm:$0xff]
        %v4158 = vld [vmem:[%s8 + $0x498] sm:$0xff]
        %v4159 = vld [vmem:[%s8 + $0x4a0] sm:$0xff]
        %v4160 = vld [vmem:[%s8 + $0x4a8] sm:$0xff]
        %v4161 = vld [vmem:[%s8 + $0x4b0] sm:$0xff]
        %v4162 = vld [vmem:[%s8 + $0x4b8] sm:$0xff]
        %v4163 = vld [vmem:[%s8 + $0x4c0] sm:$0xff]
        %v4164 = vld [vmem:[%s8 + $0x4c8] sm:$0xff]
        %v4165 = vld [vmem:[%s8 + $0x4d0] sm:$0xff]
        %v4166 = vld [vmem:[%s8 + $0x4d8] sm:$0xff]
        %v4167 = vld [vmem:[%s8 + $0x4e0] sm:$0xff]
        %v4168 = vld [vmem:[%s8 + $0x4e8] sm:$0xff]
        %v4169 = vld [vmem:[%s8 + $0x4f0] sm:$0xff]
        %v4170 = vld [vmem:[%s8 + $0x4f8] sm:$0xff]
        %v4171 = vld [vmem:[%s8 + $0x500] sm:$0xff]
        %v4172 = vld [vmem:[%s8 + $0x508] sm:$0xff]
        %v4173 = vld [vmem:[%s8 + $0x510] sm:$0xff]
        %v4174 = vld [vmem:[%s8 + $0x518] sm:$0xff]
        %v4175 = vld [vmem:[%s8 + $0x520] sm:$0xff]
        %v4176 = vld [vmem:[%s8 + $0x528] sm:$0xff]
        %v4177 = vld [vmem:[%s8 + $0x530] sm:$0xff]
        %v4178 = vld [vmem:[%s8 + $0x538] sm:$0xff]
        %v4179 = vld [vmem:[%s8 + $0x540] sm:$0xff]
        %v4180 = vld [vmem:[%s8 + $0x548] sm:$0xff]
        %v4181 = vld [vmem:[%s8 + $0x550] sm:$0xff]
        %v4182 = vld [vmem:[%s8 + $0x558] sm:$0xff]
        %v4183 = vld [vmem:[%s8 + $0x560] sm:$0xff]
        %v4184 = vld [vmem:[%s8 + $0x568] sm:$0xff]
        %v4185 = vld [vmem:[%s8 + $0x570] sm:$0xff]
        %v4186 = vld [vmem:[%s8 + $0x578] sm:$0xff]
        %v4187 = vld [vmem:[%s8 + $0x580] sm:$0xff]
        %v4188 = vld [vmem:[%s8 + $0x588] sm:$0xff]
        %v4189 = vld [vmem:[%s8 + $0x590] sm:$0xff]
        %v4190 = vld [vmem:[%s8 + $0x598] sm:$0xff]
        %v4191 = vld [vmem:[%s8 + $0x5a0] sm:$0xff]
        %v4192 = vld [vmem:[%s8 + $0x5a8] sm:$0xff]
        %v4193 = vld [vmem:[%s8 + $0x5b0] sm:$0xff]
        %v4194 = vld [vmem:[%s8 + $0x5b8] sm:$0xff]
        %v4195 = vld [vmem:[%s8 + $0x5c0] sm:$0xff]
        %v4196 = vld [vmem:[%s8 + $0x5c8] sm:$0xff]
        %v4197 = vld [vmem:[%s8 + $0x5d0] sm:$0xff]
        %v4198 = vld [vmem:[%s8 + $0x5d8] sm:$0xff]
        %v4199 = vld [vmem:[%s8 + $0x5e0] sm:$0xff]
        %v4200 = vld [vmem:[%s8 + $0x5e8] sm:$0xff]
        %v4201 = vld [vmem:[%s8 + $0x5f0] sm:$0xff]
        %v4202 = vld [vmem:[%s8 + $0x5f8] sm:$0xff]
        %v4203 = vld [vmem:[%s8 + $0x600] sm:$0xff]
        %v4204 = vld [vmem:[%s8 + $0x608] sm:$0xff]
        %v4205 = vld [vmem:[%s8 + $0x610] sm:$0xff]
        %v4206 = vld [vmem:[%s8 + $0x618] sm:$0xff]
        %v4207 = vld [vmem:[%s8 + $0x620] sm:$0xff]
        %v4208 = vld [vmem:[%s8 + $0x628] sm:$0xff]
        %v4209 = vld [vmem:[%s8 + $0x630] sm:$0xff]
        %v4210 = vld [vmem:[%s8 + $0x638] sm:$0xff]
        %v4211 = vld [vmem:[%s8 + $0x640] sm:$0xff]
        %v4212 = vld [vmem:[%s8 + $0x648] sm:$0xff]
        %v4213 = vld [vmem:[%s8 + $0x650] sm:$0xff]
        %v4214 = vld [vmem:[%s8 + $0x658] sm:$0xff]
        %v4215 = vld [vmem:[%s8 + $0x660] sm:$0xff]
        %v4216 = vld [vmem:[%s8 + $0x668] sm:$0xff]
        %v4217 = vld [vmem:[%s8 + $0x670] sm:$0xff]
        %v4218 = vld [vmem:[%s8 + $0x678] sm:$0xff]
        %v4219 = vld [vmem:[%s8 + $0x680] sm:$0xff]
        %v4220 = vld [vmem:[%s8 + $0x688] sm:$0xff]
        %v4221 = vld [vmem:[%s8 + $0x690] sm:$0xff]
        %v4222 = vld [vmem:[%s8 + $0x698] sm:$0xff]
        %v4223 = vld [vmem:[%s8 + $0x6a0] sm:$0xff]
        %v4224 = vld [vmem:[%s8 + $0x6a8] sm:$0xff]
        %v4225 = vld [vmem:[%s8 + $0x6b0] sm:$0xff]
        %v4226 = vld [vmem:[%s8 + $0x6b8] sm:$0xff]
        %v4227 = vld [vmem:[%s8 + $0x6c0] sm:$0xff]
        %v4228 = vld [vmem:[%s8 + $0x6c8] sm:$0xff]
        %v4229 = vld [vmem:[%s8 + $0x6d0] sm:$0xff]
        %v4230 = vld [vmem:[%s8 + $0x6d8] sm:$0xff]
        %v4231 = vld [vmem:[%s8 + $0x6e0] sm:$0xff]
        %v4232 = vld [vmem:[%s8 + $0x6e8] sm:$0xff]
        %v4233 = vld [vmem:[%s8 + $0x6f0] sm:$0xff]
        %v4234 = vld [vmem:[%s8 + $0x6f8] sm:$0xff]
        %v4235 = vld [vmem:[%s8 + $0x700] sm:$0xff]
        %v4236 = vld [vmem:[%s8 + $0x708] sm:$0xff]
        %v4237 = vld [vmem:[%s8 + $0x710] sm:$0xff]
        %v4238 = vld [vmem:[%s8 + $0x718] sm:$0xff]
        %v4239 = vld [vmem:[%s8 + $0x720] sm:$0xff]
        %v4240 = vld [vmem:[%s8 + $0x728] sm:$0xff]
        %v4241 = vld [vmem:[%s8 + $0x730] sm:$0xff]
        %v4242 = vld [vmem:[%s8 + $0x738] sm:$0xff]
        %v4243 = vld [vmem:[%s8 + $0x740] sm:$0xff]
        %v4244 = vld [vmem:[%s8 + $0x748] sm:$0xff]
        %v4245 = vld [vmem:[%s8 + $0x750] sm:$0xff]
        %v4246 = vld [vmem:[%s8 + $0x758] sm:$0xff]
        %v4247 = vld [vmem:[%s8 + $0x760] sm:$0xff]
        %v4248 = vld [vmem:[%s8 + $0x768] sm:$0xff]
        %v4249 = vld [vmem:[%s8 + $0x770] sm:$0xff]
        %v4250 = vld [vmem:[%s8 + $0x778] sm:$0xff]
        %v4251 = vld [vmem:[%s8 + $0x780] sm:$0xff]
        %v4252 = vld [vmem:[%s8 + $0x788] sm:$0xff]
        %v4253 = vld [vmem:[%s8 + $0x790] sm:$0xff]
        %v4254 = vld [vmem:[%s8 + $0x798] sm:$0xff]
        %v4255 = vld [vmem:[%s8 + $0x7a0] sm:$0xff]
        %v4256 = vld [vmem:[%s8 + $0x7a8] sm:$0xff]
        %v4257 = vld [vmem:[%s8 + $0x7b0] sm:$0xff]
        %v4258 = vld [vmem:[%s8 + $0x7b8] sm:$0xff]
        %v4259 = vld [vmem:[%s8 + $0x7c0] sm:$0xff]
        %v4260 = vld [vmem:[%s8 + $0x7c8] sm:$0xff]
        %v4261 = vld [vmem:[%s8 + $0x7d0] sm:$0xff]
        %v4262 = vld [vmem:[%s8 + $0x7d8] sm:$0xff]
        %v4263 = vld [vmem:[%s8 + $0x7e0] sm:$0xff]
        %v4264 = vld [vmem:[%s8 + $0x7e8] sm:$0xff]
        %v4265 = vld [vmem:[%s8 + $0x7f0] sm:$0xff]
        %v4266 = vld [vmem:[%s8 + $0x7f8] sm:$0xff]
        %v4267 = vld [vmem:[%s9] sm:$0xf]
        %v4269 = vlaneseq
        %v4270 = vshrl.u32 %v4269, 7
        %v4271 = vsub.s32 0, %v4270
        %v4272 = vrot.slane %v4010, %v4271
        %v4273 = vlaneseq
        %v4274 = vshrl.u32 %v4273, 7
        %v4275 = vsub.s32 1, %v4274
        %v4276 = vrot.slane %v4010, %v4275
        %v4277 = vlaneseq
        %v4278 = vshrl.u32 %v4277, 7
        %v4279 = vsub.s32 2, %v4278
        %v4280 = vrot.slane %v4010, %v4279
        %v4281 = vlaneseq
        %v4282 = vshrl.u32 %v4281, 7
        %v4283 = vsub.s32 3, %v4282
        %v4284 = vrot.slane %v4010, %v4283
        %v4290 = vlaneseq
        %v4291 = vshrl.u32 %v4290, 7
        %v4292 = vsub.s32 0, %v4291
        %v4293 = vrot.slane %v4267, %v4292
        %v4294 = vlaneseq
        %v4295 = vshrl.u32 %v4294, 7
        %v4296 = vsub.s32 1, %v4295
        %v4297 = vrot.slane %v4267, %v4296
        %v4298 = vlaneseq
        %v4299 = vshrl.u32 %v4298, 7
        %v4300 = vsub.s32 2, %v4299
        %v4301 = vrot.slane %v4267, %v4300
        %v4302 = vlaneseq
        %v4303 = vshrl.u32 %v4302, 7
        %v4304 = vsub.s32 3, %v4303
        %v4305 = vrot.slane %v4267, %v4304
        %4310 = vmatprep.subr.mxu0 %v4012
        %4311 = vmatpush1.msra.mxu0 %v4011
        %4312 = vmatprep.subr.mxu0 %v4016
        %4313 = vmatpush1.msra.mxu0 %v4015
        %4314 = vmatprep.subr.mxu0 %v4020
        %4315 = vmatpush1.msra.mxu0 %v4019
        %4316 = vmatprep.subr.mxu0 %v4024
        %4317 = vmatpush1.msra.mxu0 %v4023
        %4318 = vmatprep.subr.mxu0 %v4028
        %4319 = vmatpush1.msra.mxu0 %v4027
        %4320 = vmatprep.subr.mxu0 %v4032
        %4321 = vmatpush1.msra.mxu0 %v4031
        %4322 = vmatprep.subr.mxu0 %v4036
        %4323 = vmatpush1.msra.mxu0 %v4035
        %4324 = vmatprep.subr.mxu0 %v4040
        %4325 = vmatpush1.msra.mxu0 %v4039
        %4326 = vmatprep.subr.mxu0 %v4044
        %4327 = vmatpush1.msra.mxu0 %v4043
        %4328 = vmatprep.subr.mxu0 %v4048
        %4329 = vmatpush1.msra.mxu0 %v4047
        %4330 = vmatprep.subr.mxu0 %v4052
        %4331 = vmatpush1.msra.mxu0 %v4051
        %4332 = vmatprep.subr.mxu0 %v4056
        %4333 = vmatpush1.msra.mxu0 %v4055
        %4334 = vmatprep.subr.mxu0 %v4060
        %4335 = vmatpush1.msra.mxu0 %v4059
        %4336 = vmatprep.subr.mxu0 %v4064
        %4337 = vmatpush1.msra.mxu0 %v4063
        %4338 = vmatprep.subr.mxu0 %v4068
        %4339 = vmatpush1.msra.mxu0 %v4067
        %4340 = vmatprep.subr.mxu0 %v4072
        %4341 = vmatpush1.msra.mxu0 %v4071
        %4342 = vmatprep.subr.mxu0 %v4076
        %4343 = vmatpush1.msra.mxu0 %v4075
        %4344 = vmatprep.subr.mxu0 %v4080
        %4345 = vmatpush1.msra.mxu0 %v4079
        %4346 = vmatprep.subr.mxu0 %v4084
        %4347 = vmatpush1.msra.mxu0 %v4083
        %4348 = vmatprep.subr.mxu0 %v4088
        %4349 = vmatpush1.msra.mxu0 %v4087
        %4350 = vmatprep.subr.mxu0 %v4092
        %4351 = vmatpush1.msra.mxu0 %v4091
        %4352 = vmatprep.subr.mxu0 %v4096
        %4353 = vmatpush1.msra.mxu0 %v4095
        %4354 = vmatprep.subr.mxu0 %v4100
        %4355 = vmatpush1.msra.mxu0 %v4099
        %4356 = vmatprep.subr.mxu0 %v4104
        %4357 = vmatpush1.msra.mxu0 %v4103
        %4358 = vmatprep.subr.mxu0 %v4108
        %4359 = vmatpush1.msra.mxu0 %v4107
        %4360 = vmatprep.subr.mxu0 %v4112
        %4361 = vmatpush1.msra.mxu0 %v4111
        %4362 = vmatprep.subr.mxu0 %v4116
        %4363 = vmatpush1.msra.mxu0 %v4115
        %4364 = vmatprep.subr.mxu0 %v4120
        %4365 = vmatpush1.msra.mxu0 %v4119
        %4366 = vmatprep.subr.mxu0 %v4124
        %4367 = vmatpush1.msra.mxu0 %v4123
        %4368 = vmatprep.subr.mxu0 %v4128
        %4369 = vmatpush1.msra.mxu0 %v4127
        %4370 = vmatprep.subr.mxu0 %v4132
        %4371 = vmatpush1.msra.mxu0 %v4131
        %4372 = vmatprep.subr.mxu0 %v4136
        %4373 = vmatpush1.msra.mxu0 %v4135
        %4374 = vmatprep.mubr.f32.mxu0 %v4276
        %4375 = vmatmul.mubr.f32.gmra.mrb[0].mxu0 %v4272
        %v4376 = vpop.f32.mrb[0].mxu0
        %v4377 = vadd.f32 %v4293, %v4376
        %v4378 = vpop.f32.mrb[0].mxu0
        %v4379 = vadd.f32 %v4297, %v4378
        %4380 = vdwg.mxu0
        %4381 = vmatprep.subr.mxu0 %v4140
        %4382 = vmatpush1.msra.mxu0 %v4139
        %4383 = vmatprep.subr.mxu0 %v4144
        %4384 = vmatpush1.msra.mxu0 %v4143
        %4385 = vmatprep.subr.mxu0 %v4148
        %4386 = vmatpush1.msra.mxu0 %v4147
        %4387 = vmatprep.subr.mxu0 %v4152
        %4388 = vmatpush1.msra.mxu0 %v4151
        %4389 = vmatprep.subr.mxu0 %v4156
        %4390 = vmatpush1.msra.mxu0 %v4155
        %4391 = vmatprep.subr.mxu0 %v4160
        %4392 = vmatpush1.msra.mxu0 %v4159
        %4393 = vmatprep.subr.mxu0 %v4164
        %4394 = vmatpush1.msra.mxu0 %v4163
        %4395 = vmatprep.subr.mxu0 %v4168
        %4396 = vmatpush1.msra.mxu0 %v4167
        %4397 = vmatprep.subr.mxu0 %v4172
        %4398 = vmatpush1.msra.mxu0 %v4171
        %4399 = vmatprep.subr.mxu0 %v4176
        %4400 = vmatpush1.msra.mxu0 %v4175
        %4401 = vmatprep.subr.mxu0 %v4180
        %4402 = vmatpush1.msra.mxu0 %v4179
        %4403 = vmatprep.subr.mxu0 %v4184
        %4404 = vmatpush1.msra.mxu0 %v4183
        %4405 = vmatprep.subr.mxu0 %v4188
        %4406 = vmatpush1.msra.mxu0 %v4187
        %4407 = vmatprep.subr.mxu0 %v4192
        %4408 = vmatpush1.msra.mxu0 %v4191
        %4409 = vmatprep.subr.mxu0 %v4196
        %4410 = vmatpush1.msra.mxu0 %v4195
        %4411 = vmatprep.subr.mxu0 %v4200
        %4412 = vmatpush1.msra.mxu0 %v4199
        %4413 = vmatprep.subr.mxu0 %v4204
        %4414 = vmatpush1.msra.mxu0 %v4203
        %4415 = vmatprep.subr.mxu0 %v4208
        %4416 = vmatpush1.msra.mxu0 %v4207
        %4417 = vmatprep.subr.mxu0 %v4212
        %4418 = vmatpush1.msra.mxu0 %v4211
        %4419 = vmatprep.subr.mxu0 %v4216
        %4420 = vmatpush1.msra.mxu0 %v4215
        %4421 = vmatprep.subr.mxu0 %v4220
        %4422 = vmatpush1.msra.mxu0 %v4219
        %4423 = vmatprep.subr.mxu0 %v4224
        %4424 = vmatpush1.msra.mxu0 %v4223
        %4425 = vmatprep.subr.mxu0 %v4228
        %4426 = vmatpush1.msra.mxu0 %v4227
        %4427 = vmatprep.subr.mxu0 %v4232
        %4428 = vmatpush1.msra.mxu0 %v4231
        %4429 = vmatprep.subr.mxu0 %v4236
        %4430 = vmatpush1.msra.mxu0 %v4235
        %4431 = vmatprep.subr.mxu0 %v4240
        %4432 = vmatpush1.msra.mxu0 %v4239
        %4433 = vmatprep.subr.mxu0 %v4244
        %4434 = vmatpush1.msra.mxu0 %v4243
        %4435 = vmatprep.subr.mxu0 %v4248
        %4436 = vmatpush1.msra.mxu0 %v4247
        %4437 = vmatprep.subr.mxu0 %v4252
        %4438 = vmatpush1.msra.mxu0 %v4251
        %4439 = vmatprep.subr.mxu0 %v4256
        %4440 = vmatpush1.msra.mxu0 %v4255
        %4441 = vmatprep.subr.mxu0 %v4260
        %4442 = vmatpush1.msra.mxu0 %v4259
        %4443 = vmatprep.subr.mxu0 %v4264
        %4444 = vmatpush1.msra.mxu0 %v4263
        %4445 = vmatprep.mubr.f32.mxu0 %v4284
        %4446 = vmatmul.mubr.f32.gmra.mrb[0].mxu0 %v4280
        %v4447 = vpop.f32.mrb[0].mxu0
        %v4448 = vadd.f32 %v4377, %v4447
        %v4449 = vpop.f32.mrb[0].mxu0
        %v4450 = vadd.f32 %v4379, %v4449
        %4451 = vdwg.mxu0
        %4452 = vmatprep.subr.mxu0 %v4014
        %4453 = vmatpush1.msra.mxu0 %v4013
        %4454 = vmatprep.subr.mxu0 %v4018
        %4455 = vmatpush1.msra.mxu0 %v4017
        %4456 = vmatprep.subr.mxu0 %v4022
        %4457 = vmatpush1.msra.mxu0 %v4021
        %4458 = vmatprep.subr.mxu0 %v4026
        %4459 = vmatpush1.msra.mxu0 %v4025
        %4460 = vmatprep.subr.mxu0 %v4030
        %4461 = vmatpush1.msra.mxu0 %v4029
        %4462 = vmatprep.subr.mxu0 %v4034
        %4463 = vmatpush1.msra.mxu0 %v4033
        %4464 = vmatprep.subr.mxu0 %v4038
        %4465 = vmatpush1.msra.mxu0 %v4037
        %4466 = vmatprep.subr.mxu0 %v4042
        %4467 = vmatpush1.msra.mxu0 %v4041
        %4468 = vmatprep.subr.mxu0 %v4046
        %4469 = vmatpush1.msra.mxu0 %v4045
        %4470 = vmatprep.subr.mxu0 %v4050
        %4471 = vmatpush1.msra.mxu0 %v4049
        %4472 = vmatprep.subr.mxu0 %v4054
        %4473 = vmatpush1.msra.mxu0 %v4053
        %4474 = vmatprep.subr.mxu0 %v4058
        %4475 = vmatpush1.msra.mxu0 %v4057
        %4476 = vmatprep.subr.mxu0 %v4062
        %4477 = vmatpush1.msra.mxu0 %v4061
        %4478 = vmatprep.subr.mxu0 %v4066
        %4479 = vmatpush1.msra.mxu0 %v4065
        %4480 = vmatprep.subr.mxu0 %v4070
        %4481 = vmatpush1.msra.mxu0 %v4069
        %4482 = vmatprep.subr.mxu0 %v4074
        %4483 = vmatpush1.msra.mxu0 %v4073
        %4484 = vmatprep.subr.mxu0 %v4078
        %4485 = vmatpush1.msra.mxu0 %v4077
        %4486 = vmatprep.subr.mxu0 %v4082
        %4487 = vmatpush1.msra.mxu0 %v4081
        %4488 = vmatprep.subr.mxu0 %v4086
        %4489 = vmatpush1.msra.mxu0 %v4085
        %4490 = vmatprep.subr.mxu0 %v4090
        %4491 = vmatpush1.msra.mxu0 %v4089
        %4492 = vmatprep.subr.mxu0 %v4094
        %4493 = vmatpush1.msra.mxu0 %v4093
        %4494 = vmatprep.subr.mxu0 %v4098
        %4495 = vmatpush1.msra.mxu0 %v4097
        %4496 = vmatprep.subr.mxu0 %v4102
        %4497 = vmatpush1.msra.mxu0 %v4101
        %4498 = vmatprep.subr.mxu0 %v4106
        %4499 = vmatpush1.msra.mxu0 %v4105
        %4500 = vmatprep.subr.mxu0 %v4110
        %4501 = vmatpush1.msra.mxu0 %v4109
        %4502 = vmatprep.subr.mxu0 %v4114
        %4503 = vmatpush1.msra.mxu0 %v4113
        %4504 = vmatprep.subr.mxu0 %v4118
        %4505 = vmatpush1.msra.mxu0 %v4117
        %4506 = vmatprep.subr.mxu0 %v4122
        %4507 = vmatpush1.msra.mxu0 %v4121
        %4508 = vmatprep.subr.mxu0 %v4126
        %4509 = vmatpush1.msra.mxu0 %v4125
        %4510 = vmatprep.subr.mxu0 %v4130
        %4511 = vmatpush1.msra.mxu0 %v4129
        %4512 = vmatprep.subr.mxu0 %v4134
        %4513 = vmatpush1.msra.mxu0 %v4133
        %4514 = vmatprep.subr.mxu0 %v4138
        %4515 = vmatpush1.msra.mxu0 %v4137
        %4516 = vmatprep.mubr.f32.mxu0 %v4276
        %4517 = vmatmul.mubr.f32.gmra.mrb[0].mxu0 %v4272
        %v4518 = vpop.f32.mrb[0].mxu0
        %v4519 = vadd.f32 %v4301, %v4518
        %v4520 = vpop.f32.mrb[0].mxu0
        %v4521 = vadd.f32 %v4305, %v4520
        %4522 = vdwg.mxu0
        %4523 = vmatprep.subr.mxu0 %v4142
        %4524 = vmatpush1.msra.mxu0 %v4141
        %4525 = vmatprep.subr.mxu0 %v4146
        %4526 = vmatpush1.msra.mxu0 %v4145
        %4527 = vmatprep.subr.mxu0 %v4150
        %4528 = vmatpush1.msra.mxu0 %v4149
        %4529 = vmatprep.subr.mxu0 %v4154
        %4530 = vmatpush1.msra.mxu0 %v4153
        %4531 = vmatprep.subr.mxu0 %v4158
        %4532 = vmatpush1.msra.mxu0 %v4157
        %4533 = vmatprep.subr.mxu0 %v4162
        %4534 = vmatpush1.msra.mxu0 %v4161
        %4535 = vmatprep.subr.mxu0 %v4166
        %4536 = vmatpush1.msra.mxu0 %v4165
        %4537 = vmatprep.subr.mxu0 %v4170
        %4538 = vmatpush1.msra.mxu0 %v4169
        %4539 = vmatprep.subr.mxu0 %v4174
        %4540 = vmatpush1.msra.mxu0 %v4173
        %4541 = vmatprep.subr.mxu0 %v4178
        %4542 = vmatpush1.msra.mxu0 %v4177
        %4543 = vmatprep.subr.mxu0 %v4182
        %4544 = vmatpush1.msra.mxu0 %v4181
        %4545 = vmatprep.subr.mxu0 %v4186
        %4546 = vmatpush1.msra.mxu0 %v4185
        %4547 = vmatprep.subr.mxu0 %v4190
        %4548 = vmatpush1.msra.mxu0 %v4189
        %4549 = vmatprep.subr.mxu0 %v4194
        %4550 = vmatpush1.msra.mxu0 %v4193
        %4551 = vmatprep.subr.mxu0 %v4198
        %4552 = vmatpush1.msra.mxu0 %v4197
        %4553 = vmatprep.subr.mxu0 %v4202
        %4554 = vmatpush1.msra.mxu0 %v4201
        %4555 = vmatprep.subr.mxu0 %v4206
        %4556 = vmatpush1.msra.mxu0 %v4205
        %4557 = vmatprep.subr.mxu0 %v4210
        %4558 = vmatpush1.msra.mxu0 %v4209
        %4559 = vmatprep.subr.mxu0 %v4214
        %4560 = vmatpush1.msra.mxu0 %v4213
        %4561 = vmatprep.subr.mxu0 %v4218
        %4562 = vmatpush1.msra.mxu0 %v4217
        %4563 = vmatprep.subr.mxu0 %v4222
        %4564 = vmatpush1.msra.mxu0 %v4221
        %4565 = vmatprep.subr.mxu0 %v4226
        %4566 = vmatpush1.msra.mxu0 %v4225
        %4567 = vmatprep.subr.mxu0 %v4230
        %4568 = vmatpush1.msra.mxu0 %v4229
        %4569 = vmatprep.subr.mxu0 %v4234
        %4570 = vmatpush1.msra.mxu0 %v4233
        %4571 = vmatprep.subr.mxu0 %v4238
        %4572 = vmatpush1.msra.mxu0 %v4237
        %4573 = vmatprep.subr.mxu0 %v4242
        %4574 = vmatpush1.msra.mxu0 %v4241
        %4575 = vmatprep.subr.mxu0 %v4246
        %4576 = vmatpush1.msra.mxu0 %v4245
        %4577 = vmatprep.subr.mxu0 %v4250
        %4578 = vmatpush1.msra.mxu0 %v4249
        %4579 = vmatprep.subr.mxu0 %v4254
        %4580 = vmatpush1.msra.mxu0 %v4253
        %4581 = vmatprep.subr.mxu0 %v4258
        %4582 = vmatpush1.msra.mxu0 %v4257
        %4583 = vmatprep.subr.mxu0 %v4262
        %4584 = vmatpush1.msra.mxu0 %v4261
        %4585 = vmatprep.subr.mxu0 %v4266
        %4586 = vmatpush1.msra.mxu0 %v4265
        %4587 = vmatprep.mubr.f32.mxu0 %v4284
        %4588 = vmatmul.mubr.f32.gmra.mrb[0].mxu0 %v4280
        %v4589 = vpop.f32.mrb[0].mxu0
        %v4590 = vadd.f32 %v4519, %v4589
        %v4591 = vpop.f32.mrb[0].mxu0
        %v4592 = vadd.f32 %v4521, %v4591
        %4593 = vdwg.mxu0
        %vm4594 = vcmp.ge.f32.partialorder %v4448, 0.0
        %vm4595 = vcmp.ge.f32.partialorder %v4450, 0.0
        %vm4596 = vcmp.ge.f32.partialorder %v4590, 0.0
        %vm4597 = vcmp.ge.f32.partialorder %v4592, 0.0
        %s4598 = sld [smem:[#allocation7]]
        %v4599 = vstv %s4598
        %v4600 = vmul.f32 %v4599, %v4448
        %v4601 = vmul.f32 %v4599, %v4450
        %v4602 = vmul.f32 %v4599, %v4590
        %v4603 = vmul.f32 %v4599, %v4592
        %v4604 = vsel %vm4594, %v4448, %v4600
        %v4605 = vsel %vm4595, %v4450, %v4601
        %v4606 = vsel %vm4596, %v4590, %v4602
        %v4607 = vsel %vm4597, %v4592, %v4603
        %v4608 = vld [vmem:[%s11] sm:$0xff]
        %v4609 = vld [vmem:[%s11 + $0x8] sm:$0xff]
        %v4610 = vld [vmem:[%s11 + $0x10] sm:$0xff]
        %v4611 = vld [vmem:[%s11 + $0x18] sm:$0xff]
        %v4612 = vld [vmem:[%s11 + $0x20] sm:$0xff]
        %v4613 = vld [vmem:[%s11 + $0x28] sm:$0xff]
        %v4614 = vld [vmem:[%s11 + $0x30] sm:$0xff]
        %v4615 = vld [vmem:[%s11 + $0x38] sm:$0xff]
        %v4616 = vld [vmem:[%s11 + $0x40] sm:$0xff]
        %v4617 = vld [vmem:[%s11 + $0x48] sm:$0xff]
        %v4618 = vld [vmem:[%s11 + $0x50] sm:$0xff]
        %v4619 = vld [vmem:[%s11 + $0x58] sm:$0xff]
        %v4620 = vld [vmem:[%s11 + $0x60] sm:$0xff]
        %v4621 = vld [vmem:[%s11 + $0x68] sm:$0xff]
        %v4622 = vld [vmem:[%s11 + $0x70] sm:$0xff]
        %v4623 = vld [vmem:[%s11 + $0x78] sm:$0xff]
        %v4624 = vld [vmem:[%s11 + $0x80] sm:$0xff]
        %v4625 = vld [vmem:[%s11 + $0x88] sm:$0xff]
        %v4626 = vld [vmem:[%s11 + $0x90] sm:$0xff]
        %v4627 = vld [vmem:[%s11 + $0x98] sm:$0xff]
        %v4628 = vld [vmem:[%s11 + $0xa0] sm:$0xff]
        %v4629 = vld [vmem:[%s11 + $0xa8] sm:$0xff]
        %v4630 = vld [vmem:[%s11 + $0xb0] sm:$0xff]
        %v4631 = vld [vmem:[%s11 + $0xb8] sm:$0xff]
        %v4632 = vld [vmem:[%s11 + $0xc0] sm:$0xff]
        %v4633 = vld [vmem:[%s11 + $0xc8] sm:$0xff]
        %v4634 = vld [vmem:[%s11 + $0xd0] sm:$0xff]
        %v4635 = vld [vmem:[%s11 + $0xd8] sm:$0xff]
        %v4636 = vld [vmem:[%s11 + $0xe0] sm:$0xff]
        %v4637 = vld [vmem:[%s11 + $0xe8] sm:$0xff]
        %v4638 = vld [vmem:[%s11 + $0xf0] sm:$0xff]
        %v4639 = vld [vmem:[%s11 + $0xf8] sm:$0xff]
        %v4640 = vld [vmem:[%s11 + $0x100] sm:$0xff]
        %v4641 = vld [vmem:[%s11 + $0x108] sm:$0xff]
        %v4642 = vld [vmem:[%s11 + $0x110] sm:$0xff]
        %v4643 = vld [vmem:[%s11 + $0x118] sm:$0xff]
        %v4644 = vld [vmem:[%s11 + $0x120] sm:$0xff]
        %v4645 = vld [vmem:[%s11 + $0x128] sm:$0xff]
        %v4646 = vld [vmem:[%s11 + $0x130] sm:$0xff]
        %v4647 = vld [vmem:[%s11 + $0x138] sm:$0xff]
        %v4648 = vld [vmem:[%s11 + $0x140] sm:$0xff]
        %v4649 = vld [vmem:[%s11 + $0x148] sm:$0xff]
        %v4650 = vld [vmem:[%s11 + $0x150] sm:$0xff]
        %v4651 = vld [vmem:[%s11 + $0x158] sm:$0xff]
        %v4652 = vld [vmem:[%s11 + $0x160] sm:$0xff]
        %v4653 = vld [vmem:[%s11 + $0x168] sm:$0xff]
        %v4654 = vld [vmem:[%s11 + $0x170] sm:$0xff]
        %v4655 = vld [vmem:[%s11 + $0x178] sm:$0xff]
        %v4656 = vld [vmem:[%s11 + $0x180] sm:$0xff]
        %v4657 = vld [vmem:[%s11 + $0x188] sm:$0xff]
        %v4658 = vld [vmem:[%s11 + $0x190] sm:$0xff]
        %v4659 = vld [vmem:[%s11 + $0x198] sm:$0xff]
        %v4660 = vld [vmem:[%s11 + $0x1a0] sm:$0xff]
        %v4661 = vld [vmem:[%s11 + $0x1a8] sm:$0xff]
        %v4662 = vld [vmem:[%s11 + $0x1b0] sm:$0xff]
        %v4663 = vld [vmem:[%s11 + $0x1b8] sm:$0xff]
        %v4664 = vld [vmem:[%s11 + $0x1c0] sm:$0xff]
        %v4665 = vld [vmem:[%s11 + $0x1c8] sm:$0xff]
        %v4666 = vld [vmem:[%s11 + $0x1d0] sm:$0xff]
        %v4667 = vld [vmem:[%s11 + $0x1d8] sm:$0xff]
        %v4668 = vld [vmem:[%s11 + $0x1e0] sm:$0xff]
        %v4669 = vld [vmem:[%s11 + $0x1e8] sm:$0xff]
        %v4670 = vld [vmem:[%s11 + $0x1f0] sm:$0xff]
        %v4671 = vld [vmem:[%s11 + $0x1f8] sm:$0xff]
        %v4672 = vld [vmem:[%s12] sm:$0x1]
        %4673 = vmatprep.subr.mxu0 0.0
        %4674 = vmatpush1.msra.mxu0 %v4608
        %4675 = vmatprep.subr.mxu0 0.0
        %4676 = vmatpush1.msra.mxu0 %v4609
        %4677 = vmatprep.subr.mxu0 0.0
        %4678 = vmatpush1.msra.mxu0 %v4610
        %4679 = vmatprep.subr.mxu0 0.0
        %4680 = vmatpush1.msra.mxu0 %v4611
        %4681 = vmatprep.subr.mxu0 0.0
        %4682 = vmatpush1.msra.mxu0 %v4612
        %4683 = vmatprep.subr.mxu0 0.0
        %4684 = vmatpush1.msra.mxu0 %v4613
        %4685 = vmatprep.subr.mxu0 0.0
        %4686 = vmatpush1.msra.mxu0 %v4614
        %4687 = vmatprep.subr.mxu0 0.0
        %4688 = vmatpush1.msra.mxu0 %v4615
        %4689 = vmatprep.subr.mxu0 0.0
        %4690 = vmatpush1.msra.mxu0 %v4616
        %4691 = vmatprep.subr.mxu0 0.0
        %4692 = vmatpush1.msra.mxu0 %v4617
        %4693 = vmatprep.subr.mxu0 0.0
        %4694 = vmatpush1.msra.mxu0 %v4618
        %4695 = vmatprep.subr.mxu0 0.0
        %4696 = vmatpush1.msra.mxu0 %v4619
        %4697 = vmatprep.subr.mxu0 0.0
        %4698 = vmatpush1.msra.mxu0 %v4620
        %4699 = vmatprep.subr.mxu0 0.0
        %4700 = vmatpush1.msra.mxu0 %v4621
        %4701 = vmatprep.subr.mxu0 0.0
        %4702 = vmatpush1.msra.mxu0 %v4622
        %4703 = vmatprep.subr.mxu0 0.0
        %4704 = vmatpush1.msra.mxu0 %v4623
        %4705 = vmatprep.subr.mxu0 0.0
        %4706 = vmatpush1.msra.mxu0 %v4624
        %4707 = vmatprep.subr.mxu0 0.0
        %4708 = vmatpush1.msra.mxu0 %v4625
        %4709 = vmatprep.subr.mxu0 0.0
        %4710 = vmatpush1.msra.mxu0 %v4626
        %4711 = vmatprep.subr.mxu0 0.0
        %4712 = vmatpush1.msra.mxu0 %v4627
        %4713 = vmatprep.subr.mxu0 0.0
        %4714 = vmatpush1.msra.mxu0 %v4628
        %4715 = vmatprep.subr.mxu0 0.0
        %4716 = vmatpush1.msra.mxu0 %v4629
        %4717 = vmatprep.subr.mxu0 0.0
        %4718 = vmatpush1.msra.mxu0 %v4630
        %4719 = vmatprep.subr.mxu0 0.0
        %4720 = vmatpush1.msra.mxu0 %v4631
        %4721 = vmatprep.subr.mxu0 0.0
        %4722 = vmatpush1.msra.mxu0 %v4632
        %4723 = vmatprep.subr.mxu0 0.0
        %4724 = vmatpush1.msra.mxu0 %v4633
        %4725 = vmatprep.subr.mxu0 0.0
        %4726 = vmatpush1.msra.mxu0 %v4634
        %4727 = vmatprep.subr.mxu0 0.0
        %4728 = vmatpush1.msra.mxu0 %v4635
        %4729 = vmatprep.subr.mxu0 0.0
        %4730 = vmatpush1.msra.mxu0 %v4636
        %4731 = vmatprep.subr.mxu0 0.0
        %4732 = vmatpush1.msra.mxu0 %v4637
        %4733 = vmatprep.subr.mxu0 0.0
        %4734 = vmatpush1.msra.mxu0 %v4638
        %4735 = vmatprep.subr.mxu0 0.0
        %4736 = vmatpush1.msra.mxu0 %v4639
        %4737 = vmatprep.mubr.f32.mxu0 %v4605
        %4738 = vmatmul.mubr.f32.gmra.mrb[0].mxu0 %v4604
        %v4739 = vpop.f32.mrb[0].mxu0
        %v4740 = vadd.f32 %v4672, %v4739
        %v4741 = vpop.f32.mrb[0].mxu0
        %4742 = vdwg.mxu0
        %4743 = vmatprep.subr.mxu0 0.0
        %4744 = vmatpush1.msra.mxu0 %v4640
        %4745 = vmatprep.subr.mxu0 0.0
        %4746 = vmatpush1.msra.mxu0 %v4641
        %4747 = vmatprep.subr.mxu0 0.0
        %4748 = vmatpush1.msra.mxu0 %v4642
        %4749 = vmatprep.subr.mxu0 0.0
        %4750 = vmatpush1.msra.mxu0 %v4643
        %4751 = vmatprep.subr.mxu0 0.0
        %4752 = vmatpush1.msra.mxu0 %v4644
        %4753 = vmatprep.subr.mxu0 0.0
        %4754 = vmatpush1.msra.mxu0 %v4645
        %4755 = vmatprep.subr.mxu0 0.0
        %4756 = vmatpush1.msra.mxu0 %v4646
        %4757 = vmatprep.subr.mxu0 0.0
        %4758 = vmatpush1.msra.mxu0 %v4647
        %4759 = vmatprep.subr.mxu0 0.0
        %4760 = vmatpush1.msra.mxu0 %v4648
        %4761 = vmatprep.subr.mxu0 0.0
        %4762 = vmatpush1.msra.mxu0 %v4649
        %4763 = vmatprep.subr.mxu0 0.0
        %4764 = vmatpush1.msra.mxu0 %v4650
        %4765 = vmatprep.subr.mxu0 0.0
        %4766 = vmatpush1.msra.mxu0 %v4651
        %4767 = vmatprep.subr.mxu0 0.0
        %4768 = vmatpush1.msra.mxu0 %v4652
        %4769 = vmatprep.subr.mxu0 0.0
        %4770 = vmatpush1.msra.mxu0 %v4653
        %4771 = vmatprep.subr.mxu0 0.0
        %4772 = vmatpush1.msra.mxu0 %v4654
        %4773 = vmatprep.subr.mxu0 0.0
        %4774 = vmatpush1.msra.mxu0 %v4655
        %4775 = vmatprep.subr.mxu0 0.0
        %4776 = vmatpush1.msra.mxu0 %v4656
        %4777 = vmatprep.subr.mxu0 0.0
        %4778 = vmatpush1.msra.mxu0 %v4657
        %4779 = vmatprep.subr.mxu0 0.0
        %4780 = vmatpush1.msra.mxu0 %v4658
        %4781 = vmatprep.subr.mxu0 0.0
        %4782 = vmatpush1.msra.mxu0 %v4659
        %4783 = vmatprep.subr.mxu0 0.0
        %4784 = vmatpush1.msra.mxu0 %v4660
        %4785 = vmatprep.subr.mxu0 0.0
        %4786 = vmatpush1.msra.mxu0 %v4661
        %4787 = vmatprep.subr.mxu0 0.0
        %4788 = vmatpush1.msra.mxu0 %v4662
        %4789 = vmatprep.subr.mxu0 0.0
        %4790 = vmatpush1.msra.mxu0 %v4663
        %4791 = vmatprep.subr.mxu0 0.0
        %4792 = vmatpush1.msra.mxu0 %v4664
        %4793 = vmatprep.subr.mxu0 0.0
        %4794 = vmatpush1.msra.mxu0 %v4665
        %4795 = vmatprep.subr.mxu0 0.0
        %4796 = vmatpush1.msra.mxu0 %v4666
        %4797 = vmatprep.subr.mxu0 0.0
        %4798 = vmatpush1.msra.mxu0 %v4667
        %4799 = vmatprep.subr.mxu0 0.0
        %4800 = vmatpush1.msra.mxu0 %v4668
        %4801 = vmatprep.subr.mxu0 0.0
        %4802 = vmatpush1.msra.mxu0 %v4669
        %4803 = vmatprep.subr.mxu0 0.0
        %4804 = vmatpush1.msra.mxu0 %v4670
        %4805 = vmatprep.subr.mxu0 0.0
        %4806 = vmatpush1.msra.mxu0 %v4671
        %4807 = vmatprep.mubr.f32.mxu0 %v4607
        %4808 = vmatmul.mubr.f32.gmra.mrb[0].mxu0 %v4606
        %v4809 = vpop.f32.mrb[0].mxu0
        %v4810 = vadd.f32 %v4740, %v4809
        %v4811 = vpop.f32.mrb[0].mxu0
        %4812 = vdwg.mxu0
        %vm4813 = vcmask 73728
        %4814 = vst.msk [vmem:[%s434] sm:$0x1] %vm4813, %v4810
        %s4815 = sand.u32 %s315, 1
        %s4816 = scalar_lea.sflag [#allocation9], %s4815
        %s4817 = sand.u32 %s315, 1
        %s4818 = scalar_lea.vmem [#allocation8], %s4817
        // Predicated region
        $region73: #{_vgg_forward_impl.1} parent=71 // pred_check
          %p4819 = pneg %p325
        $region74: #{_vgg_forward_impl.1} parent=71 // pred_check_branch
          %4821 = sbr.rel (%p4819) target = $region76
        $region75: #{_vgg_forward_impl.1} parent=71 // pred_region
          %s4823 = ssub.s32 16, 16
          %4824 = vsyncadd %s4816, %s4823
          %s4825 = smul.addr %s29, 16
          %s4826 = scalar_lea.hbm %s13, %s4825
          %s4828 = sshll.u32 %s4818, 4
          %s4829 = int_to_ptr.vmem [resolvable:$true] %s4828
          %4831 = dma.vmem_to_hbm [thread:$0]  %s4829, 16, %s4826, %s4816
        $region76: #{_vgg_forward_impl.1} parent=71 // pred_fallthru
          _
      $region72: #{_vgg_forward_impl.1} parent=5 // pred_fallthru
        _
      %p4832 = scmp.le.s32.totalorder 2, %s24
      // Predicated region
      $region77: #{_vgg_forward_impl.1} parent=5 // pred_check
        %p4833 = pneg %p4832
      $region78: #{_vgg_forward_impl.1} parent=5 // pred_check_branch
        %4835 = sbr.rel (%p4833) target = $region80
      $region79: #{_vgg_forward_impl.1} parent=5 // pred_region
        %s4836 = ssub.s32 %s24, 2
        // Predicated region
        $region81: #{_vgg_forward_impl.1} parent=79 // pred_check
          %p4837 = pneg %p331
        $region82: #{_vgg_forward_impl.1} parent=79 // pred_check_branch
          %4839 = sbr.rel (%p4837) target = $region84
        $region83: #{_vgg_forward_impl.1} parent=79 // pred_region
          %s4840 = sand.u32 %s316, 1
          %s4841 = scalar_lea.sflag [#allocation9], %s4840
          %s4842 = sand.u32 %s316, 1
          %s4843 = scalar_lea.vmem [#allocation8], %s4842
          %4844 = dma.done %s4841, 16
        $region84: #{_vgg_forward_impl.1} parent=79 // pred_fallthru
          _
      $region80: #{_vgg_forward_impl.1} parent=5 // pred_fallthru
        _
    $region6: #{_vgg_forward_impl.1} parent=1 // loop_footer
      %s28 = sadd.s32 1, %s24
    $region7: #{_vgg_forward_impl.1} parent=1 // loop_footer_branch
      %23 = sbr.rel target = $region3
    $region8: #{_vgg_forward_impl.1} parent=1 // loop_exit
      _
    %4845 = vsyncpa [#allocation9], 1
    %s4846 = scalar_lea.sflag [#allocation9], 1
    %4847 = vsyncpa %s4846, 1

</llo_original>
